<compile_context>
chip_gen: v6e
topology: v6e:2x2x1
jax: 0.10.0
libtpu: 0.0.40
codegen_flags: <defaults>
</compile_context>

<pallas_src>
import functools

import jax
import jax.numpy as jnp
from jax.experimental import pallas as pl
from jax.experimental.pallas import tpu as pltpu


# ----------------------------- Pallas kernel ------------------------------ #

def _matmul_bias_act_kernel(x_ref, w_ref, b_ref, o_ref, *, apply_act):
    """o = act(x @ w + b).

    x:(tm,K) bf16, w:(K,N) bf16 (VMEM-resident), b:(1,N) f32 (VMEM-resident),
    o:(tm,N). f32 accumulation on the MXU, bias + ReLU in f32.
    """
    acc = jnp.dot(x_ref[...], w_ref[...], preferred_element_type=jnp.float32)
    acc = acc + b_ref[...]
    if apply_act:  # ReLU (activation='relu')
        acc = jnp.maximum(acc, 0.0)
    o_ref[...] = acc.astype(o_ref.dtype)


def matmul_bias_act(x, w, b, *, apply_act, out_dtype=jnp.float32, tile_m=512):
    """x:(M,K), w:(K,N), b:(N,) -> (M,N) in out_dtype, computed on the MXU.

    M is tiled (grid over M, partial last block masked by Pallas); weights and
    bias stay resident in VMEM across the grid. Operands are cast to bf16.
    """
    M, K = x.shape
    Kw, N = w.shape
    assert K == Kw, (K, Kw)

    xb = x.astype(jnp.bfloat16)
    wb = w.astype(jnp.bfloat16)
    b2 = b.astype(jnp.float32).reshape(1, N)

    # Full-M single block when small; otherwise 512-row tiles (multiple of 16
    # for bf16 sublane packing, comfortably under VMEM on v5e/v6e/v7x).
    tm = M if M <= tile_m else tile_m
    grid_m = pl.cdiv(M, tm)

    out_bytes = 2 if out_dtype == jnp.bfloat16 else 4
    cost = pl.CostEstimate(
        flops=2 * M * K * N,
        transcendentals=0,
        bytes_accessed=M * K * 2 + K * N * 2 + N * 4 + M * N * out_bytes,
    )

    kernel = functools.partial(_matmul_bias_act_kernel, apply_act=apply_act)
    return pl.pallas_call(
        kernel,
        out_shape=jax.ShapeDtypeStruct((M, N), out_dtype),
        grid_spec=pltpu.PrefetchScalarGridSpec(
            num_scalar_prefetch=0,
            grid=(grid_m,),
            in_specs=[
                pl.BlockSpec((tm, K), lambda i: (i, 0)),   # x: tiled over M
                pl.BlockSpec((K, N), lambda i: (0, 0)),    # w: VMEM-resident
                pl.BlockSpec((1, N), lambda i: (0, 0)),    # b: VMEM-resident
            ],
            out_specs=pl.BlockSpec((tm, N), lambda i: (i, 0)),
        ),
        compiler_params=pltpu.CompilerParams(
            dimension_semantics=("parallel",)),
        cost_estimate=cost,
    )(xb, wb, b2)


# ------------------------------ glue (JAX) -------------------------------- #

def im2col(x_nhwc, k, stride):
    """Extract kxk stride-s patches. Returns (B*OH*OW, k*k*C), OH, OW.

    Patch element ordering is (kh, kw, cin), matching the conv weight reshape
    (PyTorch conv weight (Cout, Cin, KH, KW) -> (KH, KW, Cin, Cout))."""
    B, H, W, C = x_nhwc.shape
    OH = (H - k) // stride + 1
    OW = (W - k) // stride + 1
    slabs = []
    for di in range(k):
        for dj in range(k):
            slabs.append(
                x_nhwc[:, di:di + stride * OH:stride, dj:dj + stride * OW:stride, :])
    p = jnp.stack(slabs, axis=3)              # (B, OH, OW, k*k, C)
    p = p.reshape(B, OH, OW, k * k * C)
    return p.reshape(B * OH * OW, k * k * C), OH, OW


def init_params(key, input_shape, embed_size, depth=32):
    params = {}
    in_ch = input_shape[0]
    for i in range(4):
        out_ch = depth * (2 ** i)
        key, k1, k2 = jax.random.split(key, 3)
        fan_in = in_ch * 4 * 4
        params[f"conv{i}_w"] = (
            jax.random.normal(k1, (out_ch, in_ch, 4, 4), jnp.float32)
            / jnp.sqrt(fan_in))
        params[f"conv{i}_b"] = 0.01 * jax.random.normal(k2, (out_ch,), jnp.float32)
        in_ch = out_ch
    if embed_size != 1024:
        key, k1, k2 = jax.random.split(key, 3)
        params["fc_w"] = (jax.random.normal(k1, (embed_size, 1024), jnp.float32)
                          / jnp.sqrt(1024.0))
        params["fc_b"] = 0.01 * jax.random.normal(k2, (embed_size,), jnp.float32)
    return params


def conv_encoder_forward(inputs, params, input_shape, embed_size, depth=32):
    """inputs: (..., C, H, W) in NCHW like the PyTorch module."""
    lead = inputs.shape[:-3]
    x = inputs.reshape((-1,) + tuple(input_shape))            # (B, C, H, W)
    # NHWC, bf16 activations through the trunk (halves HBM traffic).
    h = jnp.transpose(x, (0, 2, 3, 1)).astype(jnp.bfloat16)
    B = h.shape[0]
    for i in range(4):
        w = params[f"conv{i}_w"]                              # (Cout, Cin, 4, 4)
        b = params[f"conv{i}_b"]
        k = w.shape[-1]
        patches, OH, OW = im2col(h, k, stride=2)              # bf16 patches
        wmat = jnp.transpose(w, (2, 3, 1, 0)).reshape(k * k * w.shape[1], w.shape[0])
        out = matmul_bias_act(patches, wmat, b, apply_act=True,
                              out_dtype=jnp.bfloat16)         # conv + bias + ReLU
        h = out.reshape(B, OH, OW, w.shape[0])

    if embed_size != 1024:
        # PyTorch flattens NCHW; instead of transposing the activation, fold the
        # (C, H', W') -> (H', W', C) permutation into the (tiny) fc weight.
        Hq, Wq, C = h.shape[1], h.shape[2], h.shape[3]
        flat = h.reshape(B, Hq * Wq * C)                      # NHWC flatten
        fc_w = params["fc_w"]                                 # (embed, C*H'*W') in (c,h,w) order
        w_nhwc = (fc_w.reshape(embed_size, C, Hq, Wq)
                  .transpose(0, 2, 3, 1)
                  .reshape(embed_size, Hq * Wq * C))
        flat = matmul_bias_act(flat, w_nhwc.T, params["fc_b"],
                               apply_act=False, out_dtype=jnp.float32)
    else:
        # Identity fc: must reproduce the NCHW flatten ordering exactly.
        flat = jnp.transpose(h, (0, 3, 1, 2)).reshape(B, -1).astype(jnp.float32)
    return flat.reshape(lead + (flat.shape[-1],))


# --------------------------------- main ------------------------------------ #

if __name__ == "__main__":
    INPUT_SHAPE = (3, 64, 64)   # (C, H, W): required so the flatten size is 1024
    EMBED_SIZE = 32
    DEPTH = 32
    BATCH = 2

    key = jax.random.PRNGKey(0)
    key, kx = jax.random.split(key)
    x = jax.random.normal(kx, (BATCH,) + INPUT_SHAPE, jnp.float32)

    params = init_params(jax.random.PRNGKey(0), INPUT_SHAPE, EMBED_SIZE, DEPTH)

    fwd = jax.jit(functools.partial(conv_encoder_forward,
                                    input_shape=INPUT_SHAPE,
                                    embed_size=EMBED_SIZE,
                                    depth=DEPTH))
    out = fwd(x, params)
    out = jax.block_until_ready(out)
    assert out.shape == (BATCH, EMBED_SIZE), out.shape
    print("KERNEL_OK")
</pallas_src>

<mosaic_0001>
module attributes {stable_mosaic.version = 11 : i64} {
  func.func @_matmul_bias_act_kernel(%arg0: i32, %arg1: memref<512x48xbf16, #tpu.memory_space<vmem>>, %arg2: memref<48x32xbf16, #tpu.memory_space<vmem>>, %arg3: memref<1x32xf32, #tpu.memory_space<vmem>>, %arg4: memref<512x32xbf16, #tpu.memory_space<vmem>>) attributes {dimension_semantics = [#tpu.dimension_semantics<parallel>], iteration_bounds = array<i64: 4>, scalar_prefetch = 0 : i64, scratch_operands = 0 : i64, tpu.core_type = #tpu.core_type<tc>, window_params = [{transform_indices = @transform_0, window_bounds = array<i64: 512, 48>}, {pipeline_mode = #tpu.pipeline_mode<synchronous>, transform_indices = @transform_1, window_bounds = array<i64: 48, 32>}, {pipeline_mode = #tpu.pipeline_mode<synchronous>, transform_indices = @transform_2, window_bounds = array<i64: 1, 32>}, {transform_indices = @transform_3, window_bounds = array<i64: 512, 32>}]} {
    %c0 = arith.constant 0 : index
    %c0_0 = arith.constant 0 : index
    %0 = vector.load %arg1[%c0, %c0_0] : memref<512x48xbf16, #tpu.memory_space<vmem>>, vector<512x48xbf16>
    %c0_1 = arith.constant 0 : index
    %c0_2 = arith.constant 0 : index
    %1 = vector.load %arg2[%c0_1, %c0_2] : memref<48x32xbf16, #tpu.memory_space<vmem>>, vector<48x32xbf16>
    %cst = arith.constant dense<0.000000e+00> : vector<512x32xf32>
    %2 = tpu.matmul %0, %1, %cst {dimension_numbers = #tpu.dot_dimension_numbers<[1], [0], [0], [1], [0, 0, 1, 1], [], []>} : vector<512x48xbf16>, vector<48x32xbf16>, vector<512x32xf32> -> vector<512x32xf32>
    %c0_3 = arith.constant 0 : index
    %c0_4 = arith.constant 0 : index
    %3 = vector.load %arg3[%c0_3, %c0_4] : memref<1x32xf32, #tpu.memory_space<vmem>>, vector<1x32xf32>
    %4 = vector.broadcast %3 : vector<1x32xf32> to vector<512x32xf32>
    %5 = arith.addf %2, %4 : vector<512x32xf32>
    %cst_5 = arith.constant 0.000000e+00 : f32
    %6 = vector.broadcast %cst_5 : f32 to vector<512x32xf32>
    %7 = arith.maximumf %5, %6 : vector<512x32xf32>
    %8 = arith.truncf %7 : vector<512x32xf32> to vector<512x32xbf16>
    %c0_6 = arith.constant 0 : index
    %c0_7 = arith.constant 0 : index
    %9 = vector.load %arg4[%c0_6, %c0_7] : memref<512x32xbf16, #tpu.memory_space<vmem>>, vector<512x32xbf16>
    tpu.vector_store %arg4[%c0_6, %c0_7], %8 {strides = array<i32>} : memref<512x32xbf16, #tpu.memory_space<vmem>>, vector<512x32xbf16>,
    return
  }
  func.func @transform_0(%arg0: i32) -> (i32, i32) {
    %c0_i32 = arith.constant 0 : i32
    %c0_i32_0 = arith.constant 0 : i32
    return %arg0, %c0_i32 : i32, i32
  }
  func.func @transform_1(%arg0: i32) -> (i32, i32) {
    %c0_i32 = arith.constant 0 : i32
    %c0_i32_0 = arith.constant 0 : i32
    %c0_i32_1 = arith.constant 0 : i32
    return %c0_i32, %c0_i32_0 : i32, i32
  }
  func.func @transform_2(%arg0: i32) -> (i32, i32) {
    %c0_i32 = arith.constant 0 : i32
    %c0_i32_0 = arith.constant 0 : i32
    %c0_i32_1 = arith.constant 0 : i32
    return %c0_i32, %c0_i32_0 : i32, i32
  }
  func.func @transform_3(%arg0: i32) -> (i32, i32) {
    %c0_i32 = arith.constant 0 : i32
    %c0_i32_0 = arith.constant 0 : i32
    return %arg0, %c0_i32 : i32, i32
  }
}

module attributes {stable_mosaic.version = 11 : i64} {
  func.func @_matmul_bias_act_kernel(%arg0: i32, %arg1: memref<392x512xbf16, #tpu.memory_space<vmem>>, %arg2: memref<512x64xbf16, #tpu.memory_space<vmem>>, %arg3: memref<1x64xf32, #tpu.memory_space<vmem>>, %arg4: memref<392x64xbf16, #tpu.memory_space<vmem>>) attributes {dimension_semantics = [#tpu.dimension_semantics<parallel>], iteration_bounds = array<i64: 1>, scalar_prefetch = 0 : i64, scratch_operands = 0 : i64, tpu.core_type = #tpu.core_type<tc>, window_params = [{transform_indices = @transform_0, window_bounds = array<i64: 392, 512>}, {pipeline_mode = #tpu.pipeline_mode<synchronous>, transform_indices = @transform_1, window_bounds = array<i64: 512, 64>}, {pipeline_mode = #tpu.pipeline_mode<synchronous>, transform_indices = @transform_2, window_bounds = array<i64: 1, 64>}, {transform_indices = @transform_3, window_bounds = array<i64: 392, 64>}]} {
    %c0 = arith.constant 0 : index
    %c0_0 = arith.constant 0 : index
    %0 = vector.load %arg1[%c0, %c0_0] : memref<392x512xbf16, #tpu.memory_space<vmem>>, vector<392x512xbf16>
    %c0_1 = arith.constant 0 : index
    %c0_2 = arith.constant 0 : index
    %1 = vector.load %arg2[%c0_1, %c0_2] : memref<512x64xbf16, #tpu.memory_space<vmem>>, vector<512x64xbf16>
    %cst = arith.constant dense<0.000000e+00> : vector<392x64xf32>
    %2 = tpu.matmul %0, %1, %cst {dimension_numbers = #tpu.dot_dimension_numbers<[1], [0], [0], [1], [0, 0, 1, 1], [], []>} : vector<392x512xbf16>, vector<512x64xbf16>, vector<392x64xf32> -> vector<392x64xf32>
    %c0_3 = arith.constant 0 : index
    %c0_4 = arith.constant 0 : index
    %3 = vector.load %arg3[%c0_3, %c0_4] : memref<1x64xf32, #tpu.memory_space<vmem>>, vector<1x64xf32>
    %4 = vector.broadcast %3 : vector<1x64xf32> to vector<392x64xf32>
    %5 = arith.addf %2, %4 : vector<392x64xf32>
    %cst_5 = arith.constant 0.000000e+00 : f32
    %6 = vector.broadcast %cst_5 : f32 to vector<392x64xf32>
    %7 = arith.maximumf %5, %6 : vector<392x64xf32>
    %8 = arith.truncf %7 : vector<392x64xf32> to vector<392x64xbf16>
    %c0_6 = arith.constant 0 : index
    %c0_7 = arith.constant 0 : index
    %9 = vector.load %arg4[%c0_6, %c0_7] : memref<392x64xbf16, #tpu.memory_space<vmem>>, vector<392x64xbf16>
    tpu.vector_store %arg4[%c0_6, %c0_7], %8 {strides = array<i32>} : memref<392x64xbf16, #tpu.memory_space<vmem>>, vector<392x64xbf16>,
    return
  }
  func.func @transform_0(%arg0: i32) -> (i32, i32) {
    %c0_i32 = arith.constant 0 : i32
    %c0_i32_0 = arith.constant 0 : i32
    return %arg0, %c0_i32 : i32, i32
  }
  func.func @transform_1(%arg0: i32) -> (i32, i32) {
    %c0_i32 = arith.constant 0 : i32
    %c0_i32_0 = arith.constant 0 : i32
    %c0_i32_1 = arith.constant 0 : i32
    return %c0_i32, %c0_i32_0 : i32, i32
  }
  func.func @transform_2(%arg0: i32) -> (i32, i32) {
    %c0_i32 = arith.constant 0 : i32
    %c0_i32_0 = arith.constant 0 : i32
    %c0_i32_1 = arith.constant 0 : i32
    return %c0_i32, %c0_i32_0 : i32, i32
  }
  func.func @transform_3(%arg0: i32) -> (i32, i32) {
    %c0_i32 = arith.constant 0 : i32
    %c0_i32_0 = arith.constant 0 : i32
    return %arg0, %c0_i32 : i32, i32
  }
}

module attributes {stable_mosaic.version = 11 : i64} {
  func.func @_matmul_bias_act_kernel(%arg0: i32, %arg1: memref<72x1024xbf16, #tpu.memory_space<vmem>>, %arg2: memref<1024x128xbf16, #tpu.memory_space<vmem>>, %arg3: memref<1x128xf32, #tpu.memory_space<vmem>>, %arg4: memref<72x128xbf16, #tpu.memory_space<vmem>>) attributes {dimension_semantics = [#tpu.dimension_semantics<parallel>], iteration_bounds = array<i64: 1>, scalar_prefetch = 0 : i64, scratch_operands = 0 : i64, tpu.core_type = #tpu.core_type<tc>, window_params = [{transform_indices = @transform_0, window_bounds = array<i64: 72, 1024>}, {pipeline_mode = #tpu.pipeline_mode<synchronous>, transform_indices = @transform_1, window_bounds = array<i64: 1024, 128>}, {pipeline_mode = #tpu.pipeline_mode<synchronous>, transform_indices = @transform_2, window_bounds = array<i64: 1, 128>}, {transform_indices = @transform_3, window_bounds = array<i64: 72, 128>}]} {
    %c0 = arith.constant 0 : index
    %c0_0 = arith.constant 0 : index
    %0 = vector.load %arg1[%c0, %c0_0] : memref<72x1024xbf16, #tpu.memory_space<vmem>>, vector<72x1024xbf16>
    %c0_1 = arith.constant 0 : index
    %c0_2 = arith.constant 0 : index
    %1 = vector.load %arg2[%c0_1, %c0_2] : memref<1024x128xbf16, #tpu.memory_space<vmem>>, vector<1024x128xbf16>
    %cst = arith.constant dense<0.000000e+00> : vector<72x128xf32>
    %2 = tpu.matmul %0, %1, %cst {dimension_numbers = #tpu.dot_dimension_numbers<[1], [0], [0], [1], [0, 0, 1, 1], [], []>} : vector<72x1024xbf16>, vector<1024x128xbf16>, vector<72x128xf32> -> vector<72x128xf32>
    %c0_3 = arith.constant 0 : index
    %c0_4 = arith.constant 0 : index
    %3 = vector.load %arg3[%c0_3, %c0_4] : memref<1x128xf32, #tpu.memory_space<vmem>>, vector<1x128xf32>
    %4 = vector.broadcast %3 : vector<1x128xf32> to vector<72x128xf32>
    %5 = arith.addf %2, %4 : vector<72x128xf32>
    %cst_5 = arith.constant 0.000000e+00 : f32
    %6 = vector.broadcast %cst_5 : f32 to vector<72x128xf32>
    %7 = arith.maximumf %5, %6 : vector<72x128xf32>
    %8 = arith.truncf %7 : vector<72x128xf32> to vector<72x128xbf16>
    %c0_6 = arith.constant 0 : index
    %c0_7 = arith.constant 0 : index
    %9 = vector.load %arg4[%c0_6, %c0_7] : memref<72x128xbf16, #tpu.memory_space<vmem>>, vector<72x128xbf16>
    tpu.vector_store %arg4[%c0_6, %c0_7], %8 {strides = array<i32>} : memref<72x128xbf16, #tpu.memory_space<vmem>>, vector<72x128xbf16>,
    return
  }
  func.func @transform_0(%arg0: i32) -> (i32, i32) {
    %c0_i32 = arith.constant 0 : i32
    %c0_i32_0 = arith.constant 0 : i32
    return %arg0, %c0_i32 : i32, i32
  }
  func.func @transform_1(%arg0: i32) -> (i32, i32) {
    %c0_i32 = arith.constant 0 : i32
    %c0_i32_0 = arith.constant 0 : i32
    %c0_i32_1 = arith.constant 0 : i32
    return %c0_i32, %c0_i32_0 : i32, i32
  }
  func.func @transform_2(%arg0: i32) -> (i32, i32) {
    %c0_i32 = arith.constant 0 : i32
    %c0_i32_0 = arith.constant 0 : i32
    %c0_i32_1 = arith.constant 0 : i32
    return %c0_i32, %c0_i32_0 : i32, i32
  }
  func.func @transform_3(%arg0: i32) -> (i32, i32) {
    %c0_i32 = arith.constant 0 : i32
    %c0_i32_0 = arith.constant 0 : i32
    return %arg0, %c0_i32 : i32, i32
  }
}

module attributes {stable_mosaic.version = 11 : i64} {
  func.func @_matmul_bias_act_kernel(%arg0: i32, %arg1: memref<8x2048xbf16, #tpu.memory_space<vmem>>, %arg2: memref<2048x256xbf16, #tpu.memory_space<vmem>>, %arg3: memref<1x256xf32, #tpu.memory_space<vmem>>, %arg4: memref<8x256xbf16, #tpu.memory_space<vmem>>) attributes {dimension_semantics = [#tpu.dimension_semantics<parallel>], iteration_bounds = array<i64: 1>, scalar_prefetch = 0 : i64, scratch_operands = 0 : i64, tpu.core_type = #tpu.core_type<tc>, window_params = [{transform_indices = @transform_0, window_bounds = array<i64: 8, 2048>}, {pipeline_mode = #tpu.pipeline_mode<synchronous>, transform_indices = @transform_1, window_bounds = array<i64: 2048, 256>}, {pipeline_mode = #tpu.pipeline_mode<synchronous>, transform_indices = @transform_2, window_bounds = array<i64: 1, 256>}, {transform_indices = @transform_3, window_bounds = array<i64: 8, 256>}]} {
    %c0 = arith.constant 0 : index
    %c0_0 = arith.constant 0 : index
    %0 = vector.load %arg1[%c0, %c0_0] : memref<8x2048xbf16, #tpu.memory_space<vmem>>, vector<8x2048xbf16>
    %c0_1 = arith.constant 0 : index
    %c0_2 = arith.constant 0 : index
    %1 = vector.load %arg2[%c0_1, %c0_2] : memref<2048x256xbf16, #tpu.memory_space<vmem>>, vector<2048x256xbf16>
    %cst = arith.constant dense<0.000000e+00> : vector<8x256xf32>
    %2 = tpu.matmul %0, %1, %cst {dimension_numbers = #tpu.dot_dimension_numbers<[1], [0], [0], [1], [0, 0, 1, 1], [], []>} : vector<8x2048xbf16>, vector<2048x256xbf16>, vector<8x256xf32> -> vector<8x256xf32>
    %c0_3 = arith.constant 0 : index
    %c0_4 = arith.constant 0 : index
    %3 = vector.load %arg3[%c0_3, %c0_4] : memref<1x256xf32, #tpu.memory_space<vmem>>, vector<1x256xf32>
    %4 = vector.broadcast %3 : vector<1x256xf32> to vector<8x256xf32>
    %5 = arith.addf %2, %4 : vector<8x256xf32>
    %cst_5 = arith.constant 0.000000e+00 : f32
    %6 = vector.broadcast %cst_5 : f32 to vector<8x256xf32>
    %7 = arith.maximumf %5, %6 : vector<8x256xf32>
    %8 = arith.truncf %7 : vector<8x256xf32> to vector<8x256xbf16>
    %c0_6 = arith.constant 0 : index
    %c0_7 = arith.constant 0 : index
    %9 = vector.load %arg4[%c0_6, %c0_7] : memref<8x256xbf16, #tpu.memory_space<vmem>>, vector<8x256xbf16>
    tpu.vector_store %arg4[%c0_6, %c0_7], %8 {strides = array<i32>} : memref<8x256xbf16, #tpu.memory_space<vmem>>, vector<8x256xbf16>,
    return
  }
  func.func @transform_0(%arg0: i32) -> (i32, i32) {
    %c0_i32 = arith.constant 0 : i32
    %c0_i32_0 = arith.constant 0 : i32
    return %arg0, %c0_i32 : i32, i32
  }
  func.func @transform_1(%arg0: i32) -> (i32, i32) {
    %c0_i32 = arith.constant 0 : i32
    %c0_i32_0 = arith.constant 0 : i32
    %c0_i32_1 = arith.constant 0 : i32
    return %c0_i32, %c0_i32_0 : i32, i32
  }
  func.func @transform_2(%arg0: i32) -> (i32, i32) {
    %c0_i32 = arith.constant 0 : i32
    %c0_i32_0 = arith.constant 0 : i32
    %c0_i32_1 = arith.constant 0 : i32
    return %c0_i32, %c0_i32_0 : i32, i32
  }
  func.func @transform_3(%arg0: i32) -> (i32, i32) {
    %c0_i32 = arith.constant 0 : i32
    %c0_i32_0 = arith.constant 0 : i32
    return %arg0, %c0_i32 : i32, i32
  }
}

module attributes {stable_mosaic.version = 11 : i64} {
  func.func @_matmul_bias_act_kernel(%arg0: i32, %arg1: memref<2x1024xbf16, #tpu.memory_space<vmem>>, %arg2: memref<1024x32xbf16, #tpu.memory_space<vmem>>, %arg3: memref<1x32xf32, #tpu.memory_space<vmem>>, %arg4: memref<2x32xf32, #tpu.memory_space<vmem>>) attributes {dimension_semantics = [#tpu.dimension_semantics<parallel>], iteration_bounds = array<i64: 1>, scalar_prefetch = 0 : i64, scratch_operands = 0 : i64, tpu.core_type = #tpu.core_type<tc>, window_params = [{transform_indices = @transform_0, window_bounds = array<i64: 2, 1024>}, {pipeline_mode = #tpu.pipeline_mode<synchronous>, transform_indices = @transform_1, window_bounds = array<i64: 1024, 32>}, {pipeline_mode = #tpu.pipeline_mode<synchronous>, transform_indices = @transform_2, window_bounds = array<i64: 1, 32>}, {transform_indices = @transform_3, window_bounds = array<i64: 2, 32>}]} {
    %c0 = arith.constant 0 : index
    %c0_0 = arith.constant 0 : index
    %0 = vector.load %arg1[%c0, %c0_0] : memref<2x1024xbf16, #tpu.memory_space<vmem>>, vector<2x1024xbf16>
    %c0_1 = arith.constant 0 : index
    %c0_2 = arith.constant 0 : index
    %1 = vector.load %arg2[%c0_1, %c0_2] : memref<1024x32xbf16, #tpu.memory_space<vmem>>, vector<1024x32xbf16>
    %cst = arith.constant dense<0.000000e+00> : vector<2x32xf32>
    %2 = tpu.matmul %0, %1, %cst {dimension_numbers = #tpu.dot_dimension_numbers<[1], [0], [0], [1], [0, 0, 1, 1], [], []>} : vector<2x1024xbf16>, vector<1024x32xbf16>, vector<2x32xf32> -> vector<2x32xf32>
    %c0_3 = arith.constant 0 : index
    %c0_4 = arith.constant 0 : index
    %3 = vector.load %arg3[%c0_3, %c0_4] : memref<1x32xf32, #tpu.memory_space<vmem>>, vector<1x32xf32>
    %4 = vector.broadcast %3 : vector<1x32xf32> to vector<2x32xf32>
    %5 = arith.addf %2, %4 : vector<2x32xf32>
    %c0_5 = arith.constant 0 : index
    %c0_6 = arith.constant 0 : index
    %6 = vector.load %arg4[%c0_5, %c0_6] : memref<2x32xf32, #tpu.memory_space<vmem>>, vector<2x32xf32>
    tpu.vector_store %arg4[%c0_5, %c0_6], %5 {strides = array<i32>} : memref<2x32xf32, #tpu.memory_space<vmem>>, vector<2x32xf32>,
    return
  }
  func.func @transform_0(%arg0: i32) -> (i32, i32) {
    %c0_i32 = arith.constant 0 : i32
    %c0_i32_0 = arith.constant 0 : i32
    return %arg0, %c0_i32 : i32, i32
  }
  func.func @transform_1(%arg0: i32) -> (i32, i32) {
    %c0_i32 = arith.constant 0 : i32
    %c0_i32_0 = arith.constant 0 : i32
    %c0_i32_1 = arith.constant 0 : i32
    return %c0_i32, %c0_i32_0 : i32, i32
  }
  func.func @transform_2(%arg0: i32) -> (i32, i32) {
    %c0_i32 = arith.constant 0 : i32
    %c0_i32_0 = arith.constant 0 : i32
    %c0_i32_1 = arith.constant 0 : i32
    return %c0_i32, %c0_i32_0 : i32, i32
  }
  func.func @transform_3(%arg0: i32) -> (i32, i32) {
    %c0_i32 = arith.constant 0 : i32
    %c0_i32_0 = arith.constant 0 : i32
    return %arg0, %c0_i32 : i32, i32
  }
}

</mosaic_0001>

<llo_original>
// kernel: conv_encoder_forward.5
$region0: #{conv_encoder_forward.5}
  #allocation0 [shape = 'u32[]', space=smem, size = 0x4, offset = 0x4, fixed_abs, tag = 'smem constant byte address 0x4 - core index']
  #allocation1 [shape = 'u32[144,128]{1,0:T(1,128)}', space=vmem, size = 0x12000, scoped, tag = 'internal scratch']
  %s0 = inlined_call_operand.vmem [shape: bf16[1922,48], index: 0, kind: input, shape index: {}]
  %s1 = inlined_call_operand.vmem [shape: bf16[48,32], index: 1, kind: input, shape index: {}]
  %s2 = inlined_call_operand.vmem [shape: f32[1,32], index: 2, kind: input, shape index: {}]
  %s3 = inlined_call_operand.vmem [shape: bf16[1922,32], index: 3, kind: output, shape index: {}]
  %s4 = sld [smem:[#allocation0]]
  $region89: #{conv_encoder_forward.5} parent=0
    _
  %s6 = ssub.s32 1, %s4
  %s7 = scalar_select 0, %s6, %s4
  $region1: #{conv_encoder_forward.5} parent=0
    #allocation2 [shape = 'u8[262144]{0}', space=vmem, size = 0x40000, scoped, tag = 'output window, operand 0']
    loop: start=0, step=1, limit=6
    $region2: #{conv_encoder_forward.5} parent=1 // loop_pre_header
      _
    $region3: #{conv_encoder_forward.5} parent=1 // loop_header
      %s9 = sphi 0, %s13
      %p10 = scmp.ge.s32.totalorder %s9, 6
      %s19 = sphi 0, %s21
      %s22 = sphi 0, %s19
      %s23 = sphi 0, %s22
      %s39 = sphi 0, %s23
      %s43 = sphi 0, %s43
      %s45 = sphi 0, %s43
      %s46 = sphi 0, %s45
      %s60 = sphi 0, %s46
      %s64 = sphi 0, %s64
      %s66 = sphi 0, %s64
      %s67 = sphi 0, %s66
      %s81 = sphi 0, %s67
      %s87 = sphi 0, %s89
      %s90 = sphi 0, %s87
      %s91 = sphi 0, %s90
      %s107 = sphi 0, %s91
    $region4: #{conv_encoder_forward.5} parent=1 // loop_header_branch
      %12 = sbr.rel (%p10) target = $region8
    $region5: #{conv_encoder_forward.5} parent=1 // loop_body
      %s14 = ssub.s32 %s9, 1
      %s15 = ssub.s32 %s9, 2
      %s16 = sadd.s32 %s9, 1
      %s17 = ssub.s32 %s9, %s16
      %p18 = scmp.eq.s32.totalorder %s17, 0
      %s20 = sadd.s32 %s19, 1
      %s21 = scalar_select %p18, %s19, %s20
      %p24 = pneg %p18
      %p25 = scmp.eq.s32.totalorder %s9, 3
      %p26 = por %p24, %p25
      %p27 = scmp.ne.s32.totalorder %s19, %s22
      %p28 = scmp.eq.s32.totalorder %s9, 0
      %p29 = por %p27, %p28
      %p30 = scmp.ne.s32.totalorder %s19, %s22
      %p31 = scmp.eq.s32.totalorder %s14, 3
      %p32 = por %p30, %p31
      %p33 = scmp.ne.s32.totalorder %s22, %s23
      %p34 = scmp.eq.s32.totalorder %s14, 0
      %p35 = por %p33, %p34
      %p36 = scmp.ne.s32.totalorder %s22, %s23
      %p37 = scmp.eq.s32.totalorder %s15, 3
      %p38 = por %p36, %p37
      %p40 = scmp.ne.s32.totalorder %s23, %s39
      %p41 = scmp.eq.s32.totalorder %s15, 0
      %p42 = por %p40, %p41
      %s44 = sadd.s32 %s43, 1
      %p47 = scmp.eq.s32.totalorder %s9, 3
      %p48 = scmp.ne.s32.totalorder %s43, %s45
      %p49 = scmp.eq.s32.totalorder %s9, 0
      %p50 = por %p48, %p49
      %p51 = scmp.ne.s32.totalorder %s43, %s45
      %p52 = scmp.eq.s32.totalorder %s14, 3
      %p53 = por %p51, %p52
      %p54 = scmp.ne.s32.totalorder %s45, %s46
      %p55 = scmp.eq.s32.totalorder %s14, 0
      %p56 = por %p54, %p55
      %p57 = scmp.ne.s32.totalorder %s45, %s46
      %p58 = scmp.eq.s32.totalorder %s15, 3
      %p59 = por %p57, %p58
      %p61 = scmp.ne.s32.totalorder %s46, %s60
      %p62 = scmp.eq.s32.totalorder %s15, 0
      %p63 = por %p61, %p62
      %s65 = sadd.s32 %s64, 1
      %p68 = scmp.eq.s32.totalorder %s9, 3
      %p69 = scmp.ne.s32.totalorder %s64, %s66
      %p70 = scmp.eq.s32.totalorder %s9, 0
      %p71 = por %p69, %p70
      %p72 = scmp.ne.s32.totalorder %s64, %s66
      %p73 = scmp.eq.s32.totalorder %s14, 3
      %p74 = por %p72, %p73
      %p75 = scmp.ne.s32.totalorder %s66, %s67
      %p76 = scmp.eq.s32.totalorder %s14, 0
      %p77 = por %p75, %p76
      %p78 = scmp.ne.s32.totalorder %s66, %s67
      %p79 = scmp.eq.s32.totalorder %s15, 3
      %p80 = por %p78, %p79
      %p82 = scmp.ne.s32.totalorder %s67, %s81
      %p83 = scmp.eq.s32.totalorder %s15, 0
      %p84 = por %p82, %p83
      %s85 = ssub.s32 %s9, %s16
      %p86 = scmp.eq.s32.totalorder %s85, 0
      %s88 = sadd.s32 %s87, 1
      %s89 = scalar_select %p86, %s87, %s88
      %p92 = pneg %p86
      %p93 = scmp.eq.s32.totalorder %s9, 3
      %p94 = por %p92, %p93
      %p95 = scmp.ne.s32.totalorder %s87, %s90
      %p96 = scmp.eq.s32.totalorder %s9, 0
      %p97 = por %p95, %p96
      %p98 = scmp.ne.s32.totalorder %s87, %s90
      %p99 = scmp.eq.s32.totalorder %s14, 3
      %p100 = por %p98, %p99
      %p101 = scmp.ne.s32.totalorder %s90, %s91
      %p102 = scmp.eq.s32.totalorder %s14, 0
      %p103 = por %p101, %p102
      %p104 = scmp.ne.s32.totalorder %s90, %s91
      %p105 = scmp.eq.s32.totalorder %s15, 3
      %p106 = por %p104, %p105
      %p108 = scmp.ne.s32.totalorder %s91, %s107
      %p109 = scmp.eq.s32.totalorder %s15, 0
      %p110 = por %p108, %p109
      %p111 = scmp.le.s32.totalorder 1, %s9
      %p112 = scmp.lt.s32.totalorder %s9, 5
      %p113 = pnand %p111, %p112
      %p114 = pneg %p113
      // Predicated region
      $region9: #{conv_encoder_forward.5} parent=5 // pred_check
        _
      $region10: #{conv_encoder_forward.5} parent=5 // pred_check_branch
        %116 = sbr.rel (%p113) target = $region12
      $region11: #{conv_encoder_forward.5} parent=5 // pred_region
        %s117 = ssub.s32 %s9, 1
        // Predicated region
        $region13: #{conv_encoder_forward.5} parent=11 // pred_check
          %p118 = pneg %p56
        $region14: #{conv_encoder_forward.5} parent=11 // pred_check_branch
          %120 = sbr.rel (%p118) target = $region16
        $region15: #{conv_encoder_forward.5} parent=11 // pred_region
          _
        $region16: #{conv_encoder_forward.5} parent=11 // pred_fallthru
          _
        // Predicated region
        $region17: #{conv_encoder_forward.5} parent=11 // pred_check
          %p121 = pneg %p77
        $region18: #{conv_encoder_forward.5} parent=11 // pred_check_branch
          %123 = sbr.rel (%p121) target = $region20
        $region19: #{conv_encoder_forward.5} parent=11 // pred_region
          _
        $region20: #{conv_encoder_forward.5} parent=11 // pred_fallthru
          _
      $region12: #{conv_encoder_forward.5} parent=5 // pred_fallthru
        _
      %p124 = scmp.lt.s32.totalorder %s9, 4
      // Predicated region
      $region21: #{conv_encoder_forward.5} parent=5 // pred_check
        %p125 = pneg %p124
      $region22: #{conv_encoder_forward.5} parent=5 // pred_check_branch
        %127 = sbr.rel (%p125) target = $region24
      $region23: #{conv_encoder_forward.5} parent=5 // pred_region
        // Predicated region
        $region25: #{conv_encoder_forward.5} parent=23 // pred_check
          %p128 = pneg %p29
        $region26: #{conv_encoder_forward.5} parent=23 // pred_check_branch
          %130 = sbr.rel (%p128) target = $region28
        $region27: #{conv_encoder_forward.5} parent=23 // pred_region
          %s131 = smul.u32 64, %s9
          %s132 = ssub.s32 241, %s131
          %p133 = scmp.lt.s32.totalorder %s132, 64
          %s134 = scalar_select %p133, %s132, 64
          %s135 = smul.u32 64, %s134
          %p136 = scmp.lt.s32.totalorder %s131, 240
          %s137 = scalar_select %p136, %s131, 240
          %s138 = smul.addr %s137, 4
          %s139 = scalar_lea.vmem %s0, %s138
          %s140 = smul.u32 64, %s9
          %s141 = ssub.s32 241, %s140
          %p142 = scmp.lt.s32.totalorder %s141, 64
          %s143 = scalar_select %p142, %s141, 64
          %s144 = smul.u32 64, %s143
        $region28: #{conv_encoder_forward.5} parent=23 // pred_fallthru
          _
      $region24: #{conv_encoder_forward.5} parent=5 // pred_fallthru
        _
      %p145 = scmp.le.s32.totalorder 1, %s9
      %p146 = scmp.lt.s32.totalorder %s9, 5
      %p147 = pnand %p145, %p146
      %p148 = pneg %p147
      // Predicated region
      $region29: #{conv_encoder_forward.5} parent=5 // pred_check
        _
      $region30: #{conv_encoder_forward.5} parent=5 // pred_check_branch
        %150 = sbr.rel (%p147) target = $region32
      $region31: #{conv_encoder_forward.5} parent=5 // pred_region
        %s151 = ssub.s32 %s9, 1
        %s152 = smul.u32 64, %s14
        %s153 = ssub.s32 241, %s152
        %p154 = scmp.lt.s32.totalorder %s153, 64
        %s155 = scalar_select %p154, %s153, 64
        %s156 = smul.u32 64, %s155
        %p157 = scmp.lt.s32.totalorder %s152, 240
        %s158 = scalar_select %p157, %s152, 240
        %s159 = smul.addr %s158, 4
        %s160 = scalar_lea.vmem %s0, %s159
        %p161 = pneg %p35
        %p162 = pneg %p32
        %p163 = pneg %p56
        %p164 = pneg %p53
        %p165 = pneg %p77
        %p166 = pneg %p74
        %p167 = pneg %p103
        %p168 = pneg %p100
        %s169 = sand.u32 %s90, 1
        %s170 = sand.u32 %s90, 1
        %s171 = smul.addr %s170, 256
        %s172 = scalar_lea.vmem [#allocation2], %s171
        %s173 = smul.u32 64, %s14
        %s174 = ssub.s32 241, %s173
        %p175 = scmp.lt.s32.totalorder %s174, 64
        %s176 = scalar_select %p175, %s174, 64
        %s177 = smul.u32 64, %s176
        %p178 = scmp.lt.s32.totalorder %s173, 240
        %s179 = scalar_select %p178, %s173, 240
        %s180 = smul.addr %s179, 4
        %s181 = scalar_lea.vmem %s0, %s180
        %s182 = smul.u32 64, %s14
        %s183 = ssub.s32 241, %s182
        %p184 = scmp.lt.s32.totalorder %s183, 64
        %s185 = scalar_select %p184, %s183, 64
        %s186 = smul.u32 64, %s185
        %s187 = smul.u32 64, %s14
        %s188 = ssub.s32 241, %s187
        %p189 = scmp.lt.s32.totalorder %s188, 64
        %s190 = scalar_select %p189, %s188, 64
        %s191 = smul.u32 64, %s190
        %v193 = vld [vmem:[%s181] sm:$0xf]
        %v194 = vld [vmem:[%s181 + $0x4] sm:$0xf]
        %v195 = vld [vmem:[%s181 + $0x8] sm:$0xf]
        %v196 = vld [vmem:[%s181 + $0xc] sm:$0xf]
        %v197 = vld [vmem:[%s181 + $0x10] sm:$0xf]
        %v198 = vld [vmem:[%s181 + $0x14] sm:$0xf]
        %v199 = vld [vmem:[%s181 + $0x18] sm:$0xf]
        %v200 = vld [vmem:[%s181 + $0x1c] sm:$0xf]
        %v201 = vld [vmem:[%s181 + $0x20] sm:$0xf]
        %v202 = vld [vmem:[%s181 + $0x24] sm:$0xf]
        %v203 = vld [vmem:[%s181 + $0x28] sm:$0xf]
        %v204 = vld [vmem:[%s181 + $0x2c] sm:$0xf]
        %v205 = vld [vmem:[%s181 + $0x30] sm:$0xf]
        %v206 = vld [vmem:[%s181 + $0x34] sm:$0xf]
        %v207 = vld [vmem:[%s181 + $0x38] sm:$0xf]
        %v208 = vld [vmem:[%s181 + $0x3c] sm:$0xf]
        %v209 = vld [vmem:[%s181 + $0x40] sm:$0xf]
        %v210 = vld [vmem:[%s181 + $0x44] sm:$0xf]
        %v211 = vld [vmem:[%s181 + $0x48] sm:$0xf]
        %v212 = vld [vmem:[%s181 + $0x4c] sm:$0xf]
        %v213 = vld [vmem:[%s181 + $0x50] sm:$0xf]
        %v214 = vld [vmem:[%s181 + $0x54] sm:$0xf]
        %v215 = vld [vmem:[%s181 + $0x58] sm:$0xf]
        %v216 = vld [vmem:[%s181 + $0x5c] sm:$0xf]
        %v217 = vld [vmem:[%s181 + $0x60] sm:$0xf]
        %v218 = vld [vmem:[%s181 + $0x64] sm:$0xf]
        %v219 = vld [vmem:[%s181 + $0x68] sm:$0xf]
        %v220 = vld [vmem:[%s181 + $0x6c] sm:$0xf]
        %v221 = vld [vmem:[%s181 + $0x70] sm:$0xf]
        %v222 = vld [vmem:[%s181 + $0x74] sm:$0xf]
        %v223 = vld [vmem:[%s181 + $0x78] sm:$0xf]
        %v224 = vld [vmem:[%s181 + $0x7c] sm:$0xf]
        %v225 = vld [vmem:[%s181 + $0x80] sm:$0xf]
        %v226 = vld [vmem:[%s181 + $0x84] sm:$0xf]
        %v227 = vld [vmem:[%s181 + $0x88] sm:$0xf]
        %v228 = vld [vmem:[%s181 + $0x8c] sm:$0xf]
        %v229 = vld [vmem:[%s181 + $0x90] sm:$0xf]
        %v230 = vld [vmem:[%s181 + $0x94] sm:$0xf]
        %v231 = vld [vmem:[%s181 + $0x98] sm:$0xf]
        %v232 = vld [vmem:[%s181 + $0x9c] sm:$0xf]
        %v233 = vld [vmem:[%s181 + $0xa0] sm:$0xf]
        %v234 = vld [vmem:[%s181 + $0xa4] sm:$0xf]
        %v235 = vld [vmem:[%s181 + $0xa8] sm:$0xf]
        %v236 = vld [vmem:[%s181 + $0xac] sm:$0xf]
        %v237 = vld [vmem:[%s181 + $0xb0] sm:$0xf]
        %v238 = vld [vmem:[%s181 + $0xb4] sm:$0xf]
        %v239 = vld [vmem:[%s181 + $0xb8] sm:$0xf]
        %v240 = vld [vmem:[%s181 + $0xbc] sm:$0xf]
        %v241 = vld [vmem:[%s181 + $0xc0] sm:$0xf]
        %v242 = vld [vmem:[%s181 + $0xc4] sm:$0xf]
        %v243 = vld [vmem:[%s181 + $0xc8] sm:$0xf]
        %v244 = vld [vmem:[%s181 + $0xcc] sm:$0xf]
        %v245 = vld [vmem:[%s181 + $0xd0] sm:$0xf]
        %v246 = vld [vmem:[%s181 + $0xd4] sm:$0xf]
        %v247 = vld [vmem:[%s181 + $0xd8] sm:$0xf]
        %v248 = vld [vmem:[%s181 + $0xdc] sm:$0xf]
        %v249 = vld [vmem:[%s181 + $0xe0] sm:$0xf]
        %v250 = vld [vmem:[%s181 + $0xe4] sm:$0xf]
        %v251 = vld [vmem:[%s181 + $0xe8] sm:$0xf]
        %v252 = vld [vmem:[%s181 + $0xec] sm:$0xf]
        %v253 = vld [vmem:[%s181 + $0xf0] sm:$0xf]
        %v254 = vld [vmem:[%s181 + $0xf4] sm:$0xf]
        %v255 = vld [vmem:[%s181 + $0xf8] sm:$0xf]
        %v256 = vld [vmem:[%s181 + $0xfc] sm:$0xf]
        %v257 = vld [vmem:[%s1] sm:$0xf]
        %v258 = vld [vmem:[%s1 + $0x4] sm:$0xf]
        %v259 = vld [vmem:[%s1 + $0x8] sm:$0xf]
        %v260 = vld [vmem:[%s1 + $0xc] sm:$0xf]
        %v261 = vld [vmem:[%s1 + $0x10] sm:$0xf]
        %v262 = vld [vmem:[%s1 + $0x14] sm:$0xf]
        %v263 = vld [vmem:[%s2] sm:$0x1]
        %v265 = vlaneseq
        %v266 = vshrl.u32 %v265, 7
        %v267 = vsub.s32 0, %v266
        %v268 = vrot.slane %v263, %v267
        %v334 = vunpack.c.l.b16 %v193
        %v335 = vunpack.c.l.b16 %v194
        %v336 = vunpack.c.l.b16 %v195
        %v337 = vunpack.c.l.b16 %v196
        %v338 = vunpack.c.l.b16 %v197
        %v339 = vunpack.c.l.b16 %v198
        %v340 = vunpack.c.l.b16 %v199
        %v341 = vunpack.c.l.b16 %v200
        %v342 = vunpack.c.l.b16 %v201
        %v343 = vunpack.c.l.b16 %v202
        %v344 = vunpack.c.l.b16 %v203
        %v345 = vunpack.c.l.b16 %v204
        %v346 = vunpack.c.l.b16 %v205
        %v347 = vunpack.c.l.b16 %v206
        %v348 = vunpack.c.l.b16 %v207
        %v349 = vunpack.c.l.b16 %v208
        %v350 = vunpack.c.l.b16 %v209
        %v351 = vunpack.c.l.b16 %v210
        %v352 = vunpack.c.l.b16 %v211
        %v353 = vunpack.c.l.b16 %v212
        %v354 = vunpack.c.l.b16 %v213
        %v355 = vunpack.c.l.b16 %v214
        %v356 = vunpack.c.l.b16 %v215
        %v357 = vunpack.c.l.b16 %v216
        %v358 = vunpack.c.l.b16 %v217
        %v359 = vunpack.c.l.b16 %v218
        %v360 = vunpack.c.l.b16 %v219
        %v361 = vunpack.c.l.b16 %v220
        %v362 = vunpack.c.l.b16 %v221
        %v363 = vunpack.c.l.b16 %v222
        %v364 = vunpack.c.l.b16 %v223
        %v365 = vunpack.c.l.b16 %v224
        %v366 = vunpack.c.l.b16 %v225
        %v367 = vunpack.c.l.b16 %v226
        %v368 = vunpack.c.l.b16 %v227
        %v369 = vunpack.c.l.b16 %v228
        %v370 = vunpack.c.l.b16 %v229
        %v371 = vunpack.c.l.b16 %v230
        %v372 = vunpack.c.l.b16 %v231
        %v373 = vunpack.c.l.b16 %v232
        %v374 = vunpack.c.l.b16 %v233
        %v375 = vunpack.c.l.b16 %v234
        %v376 = vunpack.c.l.b16 %v235
        %v377 = vunpack.c.l.b16 %v236
        %v378 = vunpack.c.l.b16 %v237
        %v379 = vunpack.c.l.b16 %v238
        %v380 = vunpack.c.l.b16 %v239
        %v381 = vunpack.c.l.b16 %v240
        %v382 = vunpack.c.l.b16 %v241
        %v383 = vunpack.c.l.b16 %v242
        %v384 = vunpack.c.l.b16 %v243
        %v385 = vunpack.c.l.b16 %v244
        %v386 = vunpack.c.l.b16 %v245
        %v387 = vunpack.c.l.b16 %v246
        %v388 = vunpack.c.l.b16 %v247
        %v389 = vunpack.c.l.b16 %v248
        %v390 = vunpack.c.l.b16 %v249
        %v391 = vunpack.c.l.b16 %v250
        %v392 = vunpack.c.l.b16 %v251
        %v393 = vunpack.c.l.b16 %v252
        %v394 = vunpack.c.l.b16 %v253
        %v395 = vunpack.c.l.b16 %v254
        %v396 = vunpack.c.l.b16 %v255
        %v397 = vunpack.c.l.b16 %v256
        %v398 = vpack.c.b16 %v335, %v334
        %v399 = vpack.c.b16 %v337, %v336
        %v400 = vpack.c.b16 %v339, %v338
        %v401 = vpack.c.b16 %v341, %v340
        %v402 = vpack.c.b16 %v343, %v342
        %v403 = vpack.c.b16 %v345, %v344
        %v404 = vpack.c.b16 %v347, %v346
        %v405 = vpack.c.b16 %v349, %v348
        %v406 = vpack.c.b16 %v351, %v350
        %v407 = vpack.c.b16 %v353, %v352
        %v408 = vpack.c.b16 %v355, %v354
        %v409 = vpack.c.b16 %v357, %v356
        %v410 = vpack.c.b16 %v359, %v358
        %v411 = vpack.c.b16 %v361, %v360
        %v412 = vpack.c.b16 %v363, %v362
        %v413 = vpack.c.b16 %v365, %v364
        %v414 = vpack.c.b16 %v367, %v366
        %v415 = vpack.c.b16 %v369, %v368
        %v416 = vpack.c.b16 %v371, %v370
        %v417 = vpack.c.b16 %v373, %v372
        %v418 = vpack.c.b16 %v375, %v374
        %v419 = vpack.c.b16 %v377, %v376
        %v420 = vpack.c.b16 %v379, %v378
        %v421 = vpack.c.b16 %v381, %v380
        %v422 = vpack.c.b16 %v383, %v382
        %v423 = vpack.c.b16 %v385, %v384
        %v424 = vpack.c.b16 %v387, %v386
        %v425 = vpack.c.b16 %v389, %v388
        %v426 = vpack.c.b16 %v391, %v390
        %v427 = vpack.c.b16 %v393, %v392
        %v428 = vpack.c.b16 %v395, %v394
        %v429 = vpack.c.b16 %v397, %v396
        %v436 = vunpack.c.l.b16 %v257
        %v437 = vunpack.c.l.b16 %v258
        %v438 = vunpack.c.l.b16 %v259
        %v439 = vunpack.c.l.b16 %v260
        %v440 = vunpack.c.l.b16 %v261
        %v441 = vunpack.c.l.b16 %v262
        %v442 = vpack.c.b16 %v437, %v436
        %v443 = vpack.c.b16 %v439, %v438
        %v444 = vpack.c.b16 %v441, %v440
        %vm448 = vcmask 392192
        %v450 = vsel %vm448, %v398, 0
        %v453 = vsel %vm448, %v399, 0
        %v456 = vsel %vm448, %v400, 0
        %v459 = vsel %vm448, %v401, 0
        %v462 = vsel %vm448, %v402, 0
        %v465 = vsel %vm448, %v403, 0
        %v468 = vsel %vm448, %v404, 0
        %v471 = vsel %vm448, %v405, 0
        %v474 = vsel %vm448, %v406, 0
        %v477 = vsel %vm448, %v407, 0
        %v480 = vsel %vm448, %v408, 0
        %v483 = vsel %vm448, %v409, 0
        %v486 = vsel %vm448, %v410, 0
        %v489 = vsel %vm448, %v411, 0
        %v492 = vsel %vm448, %v412, 0
        %v495 = vsel %vm448, %v413, 0
        %v498 = vsel %vm448, %v414, 0
        %v501 = vsel %vm448, %v415, 0
        %v504 = vsel %vm448, %v416, 0
        %v507 = vsel %vm448, %v417, 0
        %v510 = vsel %vm448, %v418, 0
        %v513 = vsel %vm448, %v419, 0
        %v516 = vsel %vm448, %v420, 0
        %v519 = vsel %vm448, %v421, 0
        %v522 = vsel %vm448, %v422, 0
        %v525 = vsel %vm448, %v423, 0
        %v528 = vsel %vm448, %v424, 0
        %v531 = vsel %vm448, %v425, 0
        %v534 = vsel %vm448, %v426, 0
        %v537 = vsel %vm448, %v427, 0
        %v540 = vsel %vm448, %v428, 0
        %v543 = vsel %vm448, %v429, 0
        %545 = vmatprep.subr.bf16.mxu0 0
        %546 = vmatpush1.bf16.msra.mxu0 0
        %547 = vmatprep.subr.bf16.mxu0 0
        %548 = vmatpush1.bf16.msra.mxu0 0
        %549 = vmatprep.subr.bf16.mxu0 0
        %550 = vmatpush1.bf16.msra.mxu0 0
        %551 = vmatprep.subr.bf16.mxu0 0
        %552 = vmatpush1.bf16.msra.mxu0 0
        %553 = vmatprep.subr.bf16.mxu0 0
        %554 = vmatpush1.bf16.msra.mxu0 0
        %555 = vmatprep.subr.bf16.mxu0 0
        %556 = vmatpush1.bf16.msra.mxu0 %v444
        %557 = vmatprep.subr.bf16.mxu0 0
        %558 = vmatpush1.bf16.msra.mxu0 %v443
        %559 = vmatprep.subr.bf16.mxu0 0
        %560 = vmatpush1.bf16.msra.mxu0 %v442
        %561 = vmatprep.subr.bf16.mxu0 0
        %562 = vmatpush2.bf16.msra.mxu0 0
        %563 = vmatprep.subr.bf16.mxu0 0
        %564 = vmatpush2.bf16.msra.mxu0 0
        %565 = vmatprep.subr.bf16.mxu0 0
        %566 = vmatpush2.bf16.msra.mxu0 0
        %567 = vmatprep.subr.bf16.mxu0 0
        %568 = vmatpush2.bf16.msra.mxu0 0
        %569 = vmatprep.subr.bf16.mxu0 0
        %570 = vmatpush2.bf16.msra.mxu0 0
        %571 = vmatprep.subr.bf16.mxu0 0
        %572 = vmatpush2.bf16.msra.mxu0 0
        %573 = vmatprep.subr.bf16.mxu0 0
        %574 = vmatpush2.bf16.msra.mxu0 0
        %575 = vmatprep.subr.bf16.mxu0 0
        %576 = vmatpush2.bf16.msra.mxu0 0
        %577 = vmatprep.mubr.bf16.mxu0 0
        %578 = vmatmul.mubr.bf16.gmra.mxu0 %v450
        %v579 = vpop.f32.mrf.mxu0
        %v580 = vadd.f32 %v268, %v579
        %v581 = vpop.f32.mrf.mxu0
        %v582 = vpop.f32.mrf.mxu0
        %v583 = vadd.f32 %v268, %v582
        %v584 = vpop.f32.mrf.mxu0
        %585 = vmatprep.mubr.bf16.mxu0 0
        %586 = vmatmul.mubr.bf16.gmra.mxu0 %v453
        %v587 = vpop.f32.mrf.mxu0
        %v588 = vadd.f32 %v268, %v587
        %v589 = vpop.f32.mrf.mxu0
        %v590 = vpop.f32.mrf.mxu0
        %v591 = vadd.f32 %v268, %v590
        %v592 = vpop.f32.mrf.mxu0
        %593 = vmatprep.mubr.bf16.mxu0 0
        %594 = vmatmul.mubr.bf16.gmra.mxu0 %v456
        %v595 = vpop.f32.mrf.mxu0
        %v596 = vadd.f32 %v268, %v595
        %v597 = vpop.f32.mrf.mxu0
        %v598 = vpop.f32.mrf.mxu0
        %v599 = vadd.f32 %v268, %v598
        %v600 = vpop.f32.mrf.mxu0
        %601 = vmatprep.mubr.bf16.mxu0 0
        %602 = vmatmul.mubr.bf16.gmra.mxu0 %v459
        %v603 = vpop.f32.mrf.mxu0
        %v604 = vadd.f32 %v268, %v603
        %v605 = vpop.f32.mrf.mxu0
        %v606 = vpop.f32.mrf.mxu0
        %v607 = vadd.f32 %v268, %v606
        %v608 = vpop.f32.mrf.mxu0
        %609 = vmatprep.mubr.bf16.mxu0 0
        %610 = vmatmul.mubr.bf16.gmra.mxu0 %v462
        %v611 = vpop.f32.mrf.mxu0
        %v612 = vadd.f32 %v268, %v611
        %v613 = vpop.f32.mrf.mxu0
        %v614 = vpop.f32.mrf.mxu0
        %v615 = vadd.f32 %v268, %v614
        %v616 = vpop.f32.mrf.mxu0
        %617 = vmatprep.mubr.bf16.mxu0 0
        %618 = vmatmul.mubr.bf16.gmra.mxu0 %v465
        %v619 = vpop.f32.mrf.mxu0
        %v620 = vadd.f32 %v268, %v619
        %v621 = vpop.f32.mrf.mxu0
        %v622 = vpop.f32.mrf.mxu0
        %v623 = vadd.f32 %v268, %v622
        %v624 = vpop.f32.mrf.mxu0
        %625 = vmatprep.mubr.bf16.mxu0 0
        %626 = vmatmul.mubr.bf16.gmra.mxu0 %v468
        %v627 = vpop.f32.mrf.mxu0
        %v628 = vadd.f32 %v268, %v627
        %v629 = vpop.f32.mrf.mxu0
        %v630 = vpop.f32.mrf.mxu0
        %v631 = vadd.f32 %v268, %v630
        %v632 = vpop.f32.mrf.mxu0
        %633 = vmatprep.mubr.bf16.mxu0 0
        %634 = vmatmul.mubr.bf16.gmra.mxu0 %v471
        %v635 = vpop.f32.mrf.mxu0
        %v636 = vadd.f32 %v268, %v635
        %v637 = vpop.f32.mrf.mxu0
        %v638 = vpop.f32.mrf.mxu0
        %v639 = vadd.f32 %v268, %v638
        %v640 = vpop.f32.mrf.mxu0
        %641 = vmatprep.mubr.bf16.mxu0 0
        %642 = vmatmul.mubr.bf16.gmra.mxu0 %v474
        %v643 = vpop.f32.mrf.mxu0
        %v644 = vadd.f32 %v268, %v643
        %v645 = vpop.f32.mrf.mxu0
        %v646 = vpop.f32.mrf.mxu0
        %v647 = vadd.f32 %v268, %v646
        %v648 = vpop.f32.mrf.mxu0
        %649 = vmatprep.mubr.bf16.mxu0 0
        %650 = vmatmul.mubr.bf16.gmra.mxu0 %v477
        %v651 = vpop.f32.mrf.mxu0
        %v652 = vadd.f32 %v268, %v651
        %v653 = vpop.f32.mrf.mxu0
        %v654 = vpop.f32.mrf.mxu0
        %v655 = vadd.f32 %v268, %v654
        %v656 = vpop.f32.mrf.mxu0
        %657 = vmatprep.mubr.bf16.mxu0 0
        %658 = vmatmul.mubr.bf16.gmra.mxu0 %v480
        %v659 = vpop.f32.mrf.mxu0
        %v660 = vadd.f32 %v268, %v659
        %v661 = vpop.f32.mrf.mxu0
        %v662 = vpop.f32.mrf.mxu0
        %v663 = vadd.f32 %v268, %v662
        %v664 = vpop.f32.mrf.mxu0
        %665 = vmatprep.mubr.bf16.mxu0 0
        %666 = vmatmul.mubr.bf16.gmra.mxu0 %v483
        %v667 = vpop.f32.mrf.mxu0
        %v668 = vadd.f32 %v268, %v667
        %v669 = vpop.f32.mrf.mxu0
        %v670 = vpop.f32.mrf.mxu0
        %v671 = vadd.f32 %v268, %v670
        %v672 = vpop.f32.mrf.mxu0
        %673 = vmatprep.mubr.bf16.mxu0 0
        %674 = vmatmul.mubr.bf16.gmra.mxu0 %v486
        %v675 = vpop.f32.mrf.mxu0
        %v676 = vadd.f32 %v268, %v675
        %v677 = vpop.f32.mrf.mxu0
        %v678 = vpop.f32.mrf.mxu0
        %v679 = vadd.f32 %v268, %v678
        %v680 = vpop.f32.mrf.mxu0
        %681 = vmatprep.mubr.bf16.mxu0 0
        %682 = vmatmul.mubr.bf16.gmra.mxu0 %v489
        %v683 = vpop.f32.mrf.mxu0
        %v684 = vadd.f32 %v268, %v683
        %v685 = vpop.f32.mrf.mxu0
        %v686 = vpop.f32.mrf.mxu0
        %v687 = vadd.f32 %v268, %v686
        %v688 = vpop.f32.mrf.mxu0
        %689 = vmatprep.mubr.bf16.mxu0 0
        %690 = vmatmul.mubr.bf16.gmra.mxu0 %v492
        %v691 = vpop.f32.mrf.mxu0
        %v692 = vadd.f32 %v268, %v691
        %v693 = vpop.f32.mrf.mxu0
        %v694 = vpop.f32.mrf.mxu0
        %v695 = vadd.f32 %v268, %v694
        %v696 = vpop.f32.mrf.mxu0
        %697 = vmatprep.mubr.bf16.mxu0 0
        %698 = vmatmul.mubr.bf16.gmra.mxu0 %v495
        %v699 = vpop.f32.mrf.mxu0
        %v700 = vadd.f32 %v268, %v699
        %v701 = vpop.f32.mrf.mxu0
        %v702 = vpop.f32.mrf.mxu0
        %v703 = vadd.f32 %v268, %v702
        %v704 = vpop.f32.mrf.mxu0
        %705 = vmatprep.mubr.bf16.mxu0 0
        %706 = vmatmul.mubr.bf16.gmra.mxu0 %v498
        %v707 = vpop.f32.mrf.mxu0
        %v708 = vadd.f32 %v268, %v707
        %v709 = vpop.f32.mrf.mxu0
        %v710 = vpop.f32.mrf.mxu0
        %v711 = vadd.f32 %v268, %v710
        %v712 = vpop.f32.mrf.mxu0
        %713 = vmatprep.mubr.bf16.mxu0 0
        %714 = vmatmul.mubr.bf16.gmra.mxu0 %v501
        %v715 = vpop.f32.mrf.mxu0
        %v716 = vadd.f32 %v268, %v715
        %v717 = vpop.f32.mrf.mxu0
        %v718 = vpop.f32.mrf.mxu0
        %v719 = vadd.f32 %v268, %v718
        %v720 = vpop.f32.mrf.mxu0
        %721 = vmatprep.mubr.bf16.mxu0 0
        %722 = vmatmul.mubr.bf16.gmra.mxu0 %v504
        %v723 = vpop.f32.mrf.mxu0
        %v724 = vadd.f32 %v268, %v723
        %v725 = vpop.f32.mrf.mxu0
        %v726 = vpop.f32.mrf.mxu0
        %v727 = vadd.f32 %v268, %v726
        %v728 = vpop.f32.mrf.mxu0
        %729 = vmatprep.mubr.bf16.mxu0 0
        %730 = vmatmul.mubr.bf16.gmra.mxu0 %v507
        %v731 = vpop.f32.mrf.mxu0
        %v732 = vadd.f32 %v268, %v731
        %v733 = vpop.f32.mrf.mxu0
        %v734 = vpop.f32.mrf.mxu0
        %v735 = vadd.f32 %v268, %v734
        %v736 = vpop.f32.mrf.mxu0
        %737 = vmatprep.mubr.bf16.mxu0 0
        %738 = vmatmul.mubr.bf16.gmra.mxu0 %v510
        %v739 = vpop.f32.mrf.mxu0
        %v740 = vadd.f32 %v268, %v739
        %v741 = vpop.f32.mrf.mxu0
        %v742 = vpop.f32.mrf.mxu0
        %v743 = vadd.f32 %v268, %v742
        %v744 = vpop.f32.mrf.mxu0
        %745 = vmatprep.mubr.bf16.mxu0 0
        %746 = vmatmul.mubr.bf16.gmra.mxu0 %v513
        %v747 = vpop.f32.mrf.mxu0
        %v748 = vadd.f32 %v268, %v747
        %v749 = vpop.f32.mrf.mxu0
        %v750 = vpop.f32.mrf.mxu0
        %v751 = vadd.f32 %v268, %v750
        %v752 = vpop.f32.mrf.mxu0
        %753 = vmatprep.mubr.bf16.mxu0 0
        %754 = vmatmul.mubr.bf16.gmra.mxu0 %v516
        %v755 = vpop.f32.mrf.mxu0
        %v756 = vadd.f32 %v268, %v755
        %v757 = vpop.f32.mrf.mxu0
        %v758 = vpop.f32.mrf.mxu0
        %v759 = vadd.f32 %v268, %v758
        %v760 = vpop.f32.mrf.mxu0
        %761 = vmatprep.mubr.bf16.mxu0 0
        %762 = vmatmul.mubr.bf16.gmra.mxu0 %v519
        %v763 = vpop.f32.mrf.mxu0
        %v764 = vadd.f32 %v268, %v763
        %v765 = vpop.f32.mrf.mxu0
        %v766 = vpop.f32.mrf.mxu0
        %v767 = vadd.f32 %v268, %v766
        %v768 = vpop.f32.mrf.mxu0
        %769 = vmatprep.mubr.bf16.mxu0 0
        %770 = vmatmul.mubr.bf16.gmra.mxu0 %v522
        %v771 = vpop.f32.mrf.mxu0
        %v772 = vadd.f32 %v268, %v771
        %v773 = vpop.f32.mrf.mxu0
        %v774 = vpop.f32.mrf.mxu0
        %v775 = vadd.f32 %v268, %v774
        %v776 = vpop.f32.mrf.mxu0
        %777 = vmatprep.mubr.bf16.mxu0 0
        %778 = vmatmul.mubr.bf16.gmra.mxu0 %v525
        %v779 = vpop.f32.mrf.mxu0
        %v780 = vadd.f32 %v268, %v779
        %v781 = vpop.f32.mrf.mxu0
        %v782 = vpop.f32.mrf.mxu0
        %v783 = vadd.f32 %v268, %v782
        %v784 = vpop.f32.mrf.mxu0
        %785 = vmatprep.mubr.bf16.mxu0 0
        %786 = vmatmul.mubr.bf16.gmra.mxu0 %v528
        %v787 = vpop.f32.mrf.mxu0
        %v788 = vadd.f32 %v268, %v787
        %v789 = vpop.f32.mrf.mxu0
        %v790 = vpop.f32.mrf.mxu0
        %v791 = vadd.f32 %v268, %v790
        %v792 = vpop.f32.mrf.mxu0
        %793 = vmatprep.mubr.bf16.mxu0 0
        %794 = vmatmul.mubr.bf16.gmra.mxu0 %v531
        %v795 = vpop.f32.mrf.mxu0
        %v796 = vadd.f32 %v268, %v795
        %v797 = vpop.f32.mrf.mxu0
        %v798 = vpop.f32.mrf.mxu0
        %v799 = vadd.f32 %v268, %v798
        %v800 = vpop.f32.mrf.mxu0
        %801 = vmatprep.mubr.bf16.mxu0 0
        %802 = vmatmul.mubr.bf16.gmra.mxu0 %v534
        %v803 = vpop.f32.mrf.mxu0
        %v804 = vadd.f32 %v268, %v803
        %v805 = vpop.f32.mrf.mxu0
        %v806 = vpop.f32.mrf.mxu0
        %v807 = vadd.f32 %v268, %v806
        %v808 = vpop.f32.mrf.mxu0
        %809 = vmatprep.mubr.bf16.mxu0 0
        %810 = vmatmul.mubr.bf16.gmra.mxu0 %v537
        %v811 = vpop.f32.mrf.mxu0
        %v812 = vadd.f32 %v268, %v811
        %v813 = vpop.f32.mrf.mxu0
        %v814 = vpop.f32.mrf.mxu0
        %v815 = vadd.f32 %v268, %v814
        %v816 = vpop.f32.mrf.mxu0
        %817 = vmatprep.mubr.bf16.mxu0 0
        %818 = vmatmul.mubr.bf16.gmra.mxu0 %v540
        %v819 = vpop.f32.mrf.mxu0
        %v820 = vadd.f32 %v268, %v819
        %v821 = vpop.f32.mrf.mxu0
        %v822 = vpop.f32.mrf.mxu0
        %v823 = vadd.f32 %v268, %v822
        %v824 = vpop.f32.mrf.mxu0
        %825 = vmatprep.mubr.bf16.mxu0 0
        %826 = vmatmul.mubr.bf16.gmra.mxu0 %v543
        %v827 = vpop.f32.mrf.mxu0
        %v828 = vadd.f32 %v268, %v827
        %v829 = vpop.f32.mrf.mxu0
        %v830 = vpop.f32.mrf.mxu0
        %v831 = vadd.f32 %v268, %v830
        %v832 = vpop.f32.mrf.mxu0
        %833 = vdwg.mxu0
        %v834 = vmax.f32 %v580, 0.0
        %v835 = vmax.f32 %v583, 0.0
        %v836 = vmax.f32 %v588, 0.0
        %v837 = vmax.f32 %v591, 0.0
        %v838 = vmax.f32 %v596, 0.0
        %v839 = vmax.f32 %v599, 0.0
        %v840 = vmax.f32 %v604, 0.0
        %v841 = vmax.f32 %v607, 0.0
        %v842 = vmax.f32 %v612, 0.0
        %v843 = vmax.f32 %v615, 0.0
        %v844 = vmax.f32 %v620, 0.0
        %v845 = vmax.f32 %v623, 0.0
        %v846 = vmax.f32 %v628, 0.0
        %v847 = vmax.f32 %v631, 0.0
        %v848 = vmax.f32 %v636, 0.0
        %v849 = vmax.f32 %v639, 0.0
        %v850 = vmax.f32 %v644, 0.0
        %v851 = vmax.f32 %v647, 0.0
        %v852 = vmax.f32 %v652, 0.0
        %v853 = vmax.f32 %v655, 0.0
        %v854 = vmax.f32 %v660, 0.0
        %v855 = vmax.f32 %v663, 0.0
        %v856 = vmax.f32 %v668, 0.0
        %v857 = vmax.f32 %v671, 0.0
        %v858 = vmax.f32 %v676, 0.0
        %v859 = vmax.f32 %v679, 0.0
        %v860 = vmax.f32 %v684, 0.0
        %v861 = vmax.f32 %v687, 0.0
        %v862 = vmax.f32 %v692, 0.0
        %v863 = vmax.f32 %v695, 0.0
        %v864 = vmax.f32 %v700, 0.0
        %v865 = vmax.f32 %v703, 0.0
        %v866 = vmax.f32 %v708, 0.0
        %v867 = vmax.f32 %v711, 0.0
        %v868 = vmax.f32 %v716, 0.0
        %v869 = vmax.f32 %v719, 0.0
        %v870 = vmax.f32 %v724, 0.0
        %v871 = vmax.f32 %v727, 0.0
        %v872 = vmax.f32 %v732, 0.0
        %v873 = vmax.f32 %v735, 0.0
        %v874 = vmax.f32 %v740, 0.0
        %v875 = vmax.f32 %v743, 0.0
        %v876 = vmax.f32 %v748, 0.0
        %v877 = vmax.f32 %v751, 0.0
        %v878 = vmax.f32 %v756, 0.0
        %v879 = vmax.f32 %v759, 0.0
        %v880 = vmax.f32 %v764, 0.0
        %v881 = vmax.f32 %v767, 0.0
        %v882 = vmax.f32 %v772, 0.0
        %v883 = vmax.f32 %v775, 0.0
        %v884 = vmax.f32 %v780, 0.0
        %v885 = vmax.f32 %v783, 0.0
        %v886 = vmax.f32 %v788, 0.0
        %v887 = vmax.f32 %v791, 0.0
        %v888 = vmax.f32 %v796, 0.0
        %v889 = vmax.f32 %v799, 0.0
        %v890 = vmax.f32 %v804, 0.0
        %v891 = vmax.f32 %v807, 0.0
        %v892 = vmax.f32 %v812, 0.0
        %v893 = vmax.f32 %v815, 0.0
        %v894 = vmax.f32 %v820, 0.0
        %v895 = vmax.f32 %v823, 0.0
        %v896 = vmax.f32 %v828, 0.0
        %v897 = vmax.f32 %v831, 0.0
        %v898 = vpack.c.bf16 %v835, %v834
        %v899 = vpack.c.bf16 %v837, %v836
        %v900 = vpack.c.bf16 %v839, %v838
        %v901 = vpack.c.bf16 %v841, %v840
        %v902 = vpack.c.bf16 %v843, %v842
        %v903 = vpack.c.bf16 %v845, %v844
        %v904 = vpack.c.bf16 %v847, %v846
        %v905 = vpack.c.bf16 %v849, %v848
        %v906 = vpack.c.bf16 %v851, %v850
        %v907 = vpack.c.bf16 %v853, %v852
        %v908 = vpack.c.bf16 %v855, %v854
        %v909 = vpack.c.bf16 %v857, %v856
        %v910 = vpack.c.bf16 %v859, %v858
        %v911 = vpack.c.bf16 %v861, %v860
        %v912 = vpack.c.bf16 %v863, %v862
        %v913 = vpack.c.bf16 %v865, %v864
        %v914 = vpack.c.bf16 %v867, %v866
        %v915 = vpack.c.bf16 %v869, %v868
        %v916 = vpack.c.bf16 %v871, %v870
        %v917 = vpack.c.bf16 %v873, %v872
        %v918 = vpack.c.bf16 %v875, %v874
        %v919 = vpack.c.bf16 %v877, %v876
        %v920 = vpack.c.bf16 %v879, %v878
        %v921 = vpack.c.bf16 %v881, %v880
        %v922 = vpack.c.bf16 %v883, %v882
        %v923 = vpack.c.bf16 %v885, %v884
        %v924 = vpack.c.bf16 %v887, %v886
        %v925 = vpack.c.bf16 %v889, %v888
        %v926 = vpack.c.bf16 %v891, %v890
        %v927 = vpack.c.bf16 %v893, %v892
        %v928 = vpack.c.bf16 %v895, %v894
        %v929 = vpack.c.bf16 %v897, %v896
        %v962 = vunpack.c.l.b16 %v898
        %v963 = vunpack.c.h.b16 %v898
        %v964 = vunpack.c.l.b16 %v899
        %v965 = vunpack.c.h.b16 %v899
        %v966 = vunpack.c.l.b16 %v900
        %v967 = vunpack.c.h.b16 %v900
        %v968 = vunpack.c.l.b16 %v901
        %v969 = vunpack.c.h.b16 %v901
        %v970 = vunpack.c.l.b16 %v902
        %v971 = vunpack.c.h.b16 %v902
        %v972 = vunpack.c.l.b16 %v903
        %v973 = vunpack.c.h.b16 %v903
        %v974 = vunpack.c.l.b16 %v904
        %v975 = vunpack.c.h.b16 %v904
        %v976 = vunpack.c.l.b16 %v905
        %v977 = vunpack.c.h.b16 %v905
        %v978 = vunpack.c.l.b16 %v906
        %v979 = vunpack.c.h.b16 %v906
        %v980 = vunpack.c.l.b16 %v907
        %v981 = vunpack.c.h.b16 %v907
        %v982 = vunpack.c.l.b16 %v908
        %v983 = vunpack.c.h.b16 %v908
        %v984 = vunpack.c.l.b16 %v909
        %v985 = vunpack.c.h.b16 %v909
        %v986 = vunpack.c.l.b16 %v910
        %v987 = vunpack.c.h.b16 %v910
        %v988 = vunpack.c.l.b16 %v911
        %v989 = vunpack.c.h.b16 %v911
        %v990 = vunpack.c.l.b16 %v912
        %v991 = vunpack.c.h.b16 %v912
        %v992 = vunpack.c.l.b16 %v913
        %v993 = vunpack.c.h.b16 %v913
        %v994 = vunpack.c.l.b16 %v914
        %v995 = vunpack.c.h.b16 %v914
        %v996 = vunpack.c.l.b16 %v915
        %v997 = vunpack.c.h.b16 %v915
        %v998 = vunpack.c.l.b16 %v916
        %v999 = vunpack.c.h.b16 %v916
        %v1000 = vunpack.c.l.b16 %v917
        %v1001 = vunpack.c.h.b16 %v917
        %v1002 = vunpack.c.l.b16 %v918
        %v1003 = vunpack.c.h.b16 %v918
        %v1004 = vunpack.c.l.b16 %v919
        %v1005 = vunpack.c.h.b16 %v919
        %v1006 = vunpack.c.l.b16 %v920
        %v1007 = vunpack.c.h.b16 %v920
        %v1008 = vunpack.c.l.b16 %v921
        %v1009 = vunpack.c.h.b16 %v921
        %v1010 = vunpack.c.l.b16 %v922
        %v1011 = vunpack.c.h.b16 %v922
        %v1012 = vunpack.c.l.b16 %v923
        %v1013 = vunpack.c.h.b16 %v923
        %v1014 = vunpack.c.l.b16 %v924
        %v1015 = vunpack.c.h.b16 %v924
        %v1016 = vunpack.c.l.b16 %v925
        %v1017 = vunpack.c.h.b16 %v925
        %v1018 = vunpack.c.l.b16 %v926
        %v1019 = vunpack.c.h.b16 %v926
        %v1020 = vunpack.c.l.b16 %v927
        %v1021 = vunpack.c.h.b16 %v927
        %v1022 = vunpack.c.l.b16 %v928
        %v1023 = vunpack.c.h.b16 %v928
        %v1024 = vunpack.c.l.b16 %v929
        %v1025 = vunpack.c.h.b16 %v929
        %v1026 = vpack.c.b16 %v962, %v962
        %v1027 = vpack.c.b16 %v963, %v963
        %v1028 = vpack.c.b16 %v964, %v964
        %v1029 = vpack.c.b16 %v965, %v965
        %v1030 = vpack.c.b16 %v966, %v966
        %v1031 = vpack.c.b16 %v967, %v967
        %v1032 = vpack.c.b16 %v968, %v968
        %v1033 = vpack.c.b16 %v969, %v969
        %v1034 = vpack.c.b16 %v970, %v970
        %v1035 = vpack.c.b16 %v971, %v971
        %v1036 = vpack.c.b16 %v972, %v972
        %v1037 = vpack.c.b16 %v973, %v973
        %v1038 = vpack.c.b16 %v974, %v974
        %v1039 = vpack.c.b16 %v975, %v975
        %v1040 = vpack.c.b16 %v976, %v976
        %v1041 = vpack.c.b16 %v977, %v977
        %v1042 = vpack.c.b16 %v978, %v978
        %v1043 = vpack.c.b16 %v979, %v979
        %v1044 = vpack.c.b16 %v980, %v980
        %v1045 = vpack.c.b16 %v981, %v981
        %v1046 = vpack.c.b16 %v982, %v982
        %v1047 = vpack.c.b16 %v983, %v983
        %v1048 = vpack.c.b16 %v984, %v984
        %v1049 = vpack.c.b16 %v985, %v985
        %v1050 = vpack.c.b16 %v986, %v986
        %v1051 = vpack.c.b16 %v987, %v987
        %v1052 = vpack.c.b16 %v988, %v988
        %v1053 = vpack.c.b16 %v989, %v989
        %v1054 = vpack.c.b16 %v990, %v990
        %v1055 = vpack.c.b16 %v991, %v991
        %v1056 = vpack.c.b16 %v992, %v992
        %v1057 = vpack.c.b16 %v993, %v993
        %v1058 = vpack.c.b16 %v994, %v994
        %v1059 = vpack.c.b16 %v995, %v995
        %v1060 = vpack.c.b16 %v996, %v996
        %v1061 = vpack.c.b16 %v997, %v997
        %v1062 = vpack.c.b16 %v998, %v998
        %v1063 = vpack.c.b16 %v999, %v999
        %v1064 = vpack.c.b16 %v1000, %v1000
        %v1065 = vpack.c.b16 %v1001, %v1001
        %v1066 = vpack.c.b16 %v1002, %v1002
        %v1067 = vpack.c.b16 %v1003, %v1003
        %v1068 = vpack.c.b16 %v1004, %v1004
        %v1069 = vpack.c.b16 %v1005, %v1005
        %v1070 = vpack.c.b16 %v1006, %v1006
        %v1071 = vpack.c.b16 %v1007, %v1007
        %v1072 = vpack.c.b16 %v1008, %v1008
        %v1073 = vpack.c.b16 %v1009, %v1009
        %v1074 = vpack.c.b16 %v1010, %v1010
        %v1075 = vpack.c.b16 %v1011, %v1011
        %v1076 = vpack.c.b16 %v1012, %v1012
        %v1077 = vpack.c.b16 %v1013, %v1013
        %v1078 = vpack.c.b16 %v1014, %v1014
        %v1079 = vpack.c.b16 %v1015, %v1015
        %v1080 = vpack.c.b16 %v1016, %v1016
        %v1081 = vpack.c.b16 %v1017, %v1017
        %v1082 = vpack.c.b16 %v1018, %v1018
        %v1083 = vpack.c.b16 %v1019, %v1019
        %v1084 = vpack.c.b16 %v1020, %v1020
        %v1085 = vpack.c.b16 %v1021, %v1021
        %v1086 = vpack.c.b16 %v1022, %v1022
        %v1087 = vpack.c.b16 %v1023, %v1023
        %v1088 = vpack.c.b16 %v1024, %v1024
        %v1089 = vpack.c.b16 %v1025, %v1025
        %vm1154 = vcmask 257024
        %1155 = vst.msk [vmem:[%s172] sm:$0xf] %vm1154, %v1026
        %1156 = vst.msk [vmem:[%s172 + $0x4] sm:$0xf] %vm1154, %v1027
        %1157 = vst.msk [vmem:[%s172 + $0x8] sm:$0xf] %vm1154, %v1028
        %1158 = vst.msk [vmem:[%s172 + $0xc] sm:$0xf] %vm1154, %v1029
        %1159 = vst.msk [vmem:[%s172 + $0x10] sm:$0xf] %vm1154, %v1030
        %1160 = vst.msk [vmem:[%s172 + $0x14] sm:$0xf] %vm1154, %v1031
        %1161 = vst.msk [vmem:[%s172 + $0x18] sm:$0xf] %vm1154, %v1032
        %1162 = vst.msk [vmem:[%s172 + $0x1c] sm:$0xf] %vm1154, %v1033
        %1163 = vst.msk [vmem:[%s172 + $0x20] sm:$0xf] %vm1154, %v1034
        %1164 = vst.msk [vmem:[%s172 + $0x24] sm:$0xf] %vm1154, %v1035
        %1165 = vst.msk [vmem:[%s172 + $0x28] sm:$0xf] %vm1154, %v1036
        %1166 = vst.msk [vmem:[%s172 + $0x2c] sm:$0xf] %vm1154, %v1037
        %1167 = vst.msk [vmem:[%s172 + $0x30] sm:$0xf] %vm1154, %v1038
        %1168 = vst.msk [vmem:[%s172 + $0x34] sm:$0xf] %vm1154, %v1039
        %1169 = vst.msk [vmem:[%s172 + $0x38] sm:$0xf] %vm1154, %v1040
        %1170 = vst.msk [vmem:[%s172 + $0x3c] sm:$0xf] %vm1154, %v1041
        %1171 = vst.msk [vmem:[%s172 + $0x40] sm:$0xf] %vm1154, %v1042
        %1172 = vst.msk [vmem:[%s172 + $0x44] sm:$0xf] %vm1154, %v1043
        %1173 = vst.msk [vmem:[%s172 + $0x48] sm:$0xf] %vm1154, %v1044
        %1174 = vst.msk [vmem:[%s172 + $0x4c] sm:$0xf] %vm1154, %v1045
        %1175 = vst.msk [vmem:[%s172 + $0x50] sm:$0xf] %vm1154, %v1046
        %1176 = vst.msk [vmem:[%s172 + $0x54] sm:$0xf] %vm1154, %v1047
        %1177 = vst.msk [vmem:[%s172 + $0x58] sm:$0xf] %vm1154, %v1048
        %1178 = vst.msk [vmem:[%s172 + $0x5c] sm:$0xf] %vm1154, %v1049
        %1179 = vst.msk [vmem:[%s172 + $0x60] sm:$0xf] %vm1154, %v1050
        %1180 = vst.msk [vmem:[%s172 + $0x64] sm:$0xf] %vm1154, %v1051
        %1181 = vst.msk [vmem:[%s172 + $0x68] sm:$0xf] %vm1154, %v1052
        %1182 = vst.msk [vmem:[%s172 + $0x6c] sm:$0xf] %vm1154, %v1053
        %1183 = vst.msk [vmem:[%s172 + $0x70] sm:$0xf] %vm1154, %v1054
        %1184 = vst.msk [vmem:[%s172 + $0x74] sm:$0xf] %vm1154, %v1055
        %1185 = vst.msk [vmem:[%s172 + $0x78] sm:$0xf] %vm1154, %v1056
        %1186 = vst.msk [vmem:[%s172 + $0x7c] sm:$0xf] %vm1154, %v1057
        %1187 = vst.msk [vmem:[%s172 + $0x80] sm:$0xf] %vm1154, %v1058
        %1188 = vst.msk [vmem:[%s172 + $0x84] sm:$0xf] %vm1154, %v1059
        %1189 = vst.msk [vmem:[%s172 + $0x88] sm:$0xf] %vm1154, %v1060
        %1190 = vst.msk [vmem:[%s172 + $0x8c] sm:$0xf] %vm1154, %v1061
        %1191 = vst.msk [vmem:[%s172 + $0x90] sm:$0xf] %vm1154, %v1062
        %1192 = vst.msk [vmem:[%s172 + $0x94] sm:$0xf] %vm1154, %v1063
        %1193 = vst.msk [vmem:[%s172 + $0x98] sm:$0xf] %vm1154, %v1064
        %1194 = vst.msk [vmem:[%s172 + $0x9c] sm:$0xf] %vm1154, %v1065
        %1195 = vst.msk [vmem:[%s172 + $0xa0] sm:$0xf] %vm1154, %v1066
        %1196 = vst.msk [vmem:[%s172 + $0xa4] sm:$0xf] %vm1154, %v1067
        %1197 = vst.msk [vmem:[%s172 + $0xa8] sm:$0xf] %vm1154, %v1068
        %1198 = vst.msk [vmem:[%s172 + $0xac] sm:$0xf] %vm1154, %v1069
        %1199 = vst.msk [vmem:[%s172 + $0xb0] sm:$0xf] %vm1154, %v1070
        %1200 = vst.msk [vmem:[%s172 + $0xb4] sm:$0xf] %vm1154, %v1071
        %1201 = vst.msk [vmem:[%s172 + $0xb8] sm:$0xf] %vm1154, %v1072
        %1202 = vst.msk [vmem:[%s172 + $0xbc] sm:$0xf] %vm1154, %v1073
        %1203 = vst.msk [vmem:[%s172 + $0xc0] sm:$0xf] %vm1154, %v1074
        %1204 = vst.msk [vmem:[%s172 + $0xc4] sm:$0xf] %vm1154, %v1075
        %1205 = vst.msk [vmem:[%s172 + $0xc8] sm:$0xf] %vm1154, %v1076
        %1206 = vst.msk [vmem:[%s172 + $0xcc] sm:$0xf] %vm1154, %v1077
        %1207 = vst.msk [vmem:[%s172 + $0xd0] sm:$0xf] %vm1154, %v1078
        %1208 = vst.msk [vmem:[%s172 + $0xd4] sm:$0xf] %vm1154, %v1079
        %1209 = vst.msk [vmem:[%s172 + $0xd8] sm:$0xf] %vm1154, %v1080
        %1210 = vst.msk [vmem:[%s172 + $0xdc] sm:$0xf] %vm1154, %v1081
        %1211 = vst.msk [vmem:[%s172 + $0xe0] sm:$0xf] %vm1154, %v1082
        %1212 = vst.msk [vmem:[%s172 + $0xe4] sm:$0xf] %vm1154, %v1083
        %1213 = vst.msk [vmem:[%s172 + $0xe8] sm:$0xf] %vm1154, %v1084
        %1214 = vst.msk [vmem:[%s172 + $0xec] sm:$0xf] %vm1154, %v1085
        %1215 = vst.msk [vmem:[%s172 + $0xf0] sm:$0xf] %vm1154, %v1086
        %1216 = vst.msk [vmem:[%s172 + $0xf4] sm:$0xf] %vm1154, %v1087
        %1217 = vst.msk [vmem:[%s172 + $0xf8] sm:$0xf] %vm1154, %v1088
        %1218 = vst.msk [vmem:[%s172 + $0xfc] sm:$0xf] %vm1154, %v1089
        %s1219 = sand.u32 %s90, 1
        %s1220 = sand.u32 %s90, 1
        %s1221 = smul.addr %s1220, 256
        %s1222 = scalar_lea.vmem [#allocation2], %s1221
        // Predicated region
        $region33: #{conv_encoder_forward.5} parent=31 // pred_check
          %p1223 = pneg %p100
        $region34: #{conv_encoder_forward.5} parent=31 // pred_check_branch
          %1225 = sbr.rel (%p1223) target = $region36
        $region35: #{conv_encoder_forward.5} parent=31 // pred_region
          %s1226 = smul.u32 64, %s14
          %s1227 = ssub.s32 241, %s1226
          %p1228 = scmp.lt.s32.totalorder %s1227, 64
          %s1229 = scalar_select %p1228, %s1227, 64
          %s1230 = smul.u32 64, %s1229
          %p1231 = scmp.ne.s32.totalorder 0, %s1230
          %s1232 = smul.addr %s1226, 4
          %s1233 = scalar_lea.vmem %s3, %s1232
          // Predicated region
          $region37: #{conv_encoder_forward.5} parent=35 // pred_check
            %p1234 = pneg %p1231
          $region38: #{conv_encoder_forward.5} parent=35 // pred_check_branch
            %1236 = sbr.rel (%p1234) target = $region40
          $region39: #{conv_encoder_forward.5} parent=35 // pred_region
            // Predicated region
            $region41: #{conv_encoder_forward.5} parent=39 // pred_check
              _
            $region42: #{conv_encoder_forward.5} parent=39 // pred_check_branch
              %1238 = sbr.rel target = $region44
            $region43: #{conv_encoder_forward.5} parent=39 // pred_region
              // Predicated region
              $region63: #{conv_encoder_forward.5} parent=43 // pred_check
                _
              $region64: #{conv_encoder_forward.5} parent=43 // pred_check_branch
                %1414 = sbr.rel (0) target = $region66
              $region65: #{conv_encoder_forward.5} parent=43 // pred_region
                %s1416 = ssub.s32 16, 1
                %s1417 = sshrl.u32 %s1229, 6
                // While loop
                $region67: #{conv_encoder_forward.5} parent=65 // loop_pre_header
                  _
                $region68: #{conv_encoder_forward.5} parent=65 // loop_header
                  %s1419 = sphi 0, %s1421
                  %p1420 = scmp.ge.s32.totalorder %s1419, %s1417
                  %s1424 = sphi 0, %s1557
                  %s1425 = sphi %s1222, %s1560
                  %s1426 = sphi %s1233, %s1561
                $region69: #{conv_encoder_forward.5} parent=65 // loop_header_branch
                  %1423 = sbr.rel (%p1420) target = $region73
                $region70: #{conv_encoder_forward.5} parent=65 // loop_body
                  %v1427 = vld [vmem:[%s1425] sm:%s1416]
                  %1428 = vst [vmem:[%s1426] sm:%s1416] %v1427
                  %v1429 = vld [vmem:[%s1425 + $0x4] sm:%s1416]
                  %1430 = vst [vmem:[%s1426 + $0x4] sm:%s1416] %v1429
                  %v1431 = vld [vmem:[%s1425 + $0x8] sm:%s1416]
                  %1432 = vst [vmem:[%s1426 + $0x8] sm:%s1416] %v1431
                  %v1433 = vld [vmem:[%s1425 + $0xc] sm:%s1416]
                  %1434 = vst [vmem:[%s1426 + $0xc] sm:%s1416] %v1433
                  %v1435 = vld [vmem:[%s1425 + $0x10] sm:%s1416]
                  %1436 = vst [vmem:[%s1426 + $0x10] sm:%s1416] %v1435
                  %v1437 = vld [vmem:[%s1425 + $0x14] sm:%s1416]
                  %1438 = vst [vmem:[%s1426 + $0x14] sm:%s1416] %v1437
                  %v1439 = vld [vmem:[%s1425 + $0x18] sm:%s1416]
                  %1440 = vst [vmem:[%s1426 + $0x18] sm:%s1416] %v1439
                  %v1441 = vld [vmem:[%s1425 + $0x1c] sm:%s1416]
                  %1442 = vst [vmem:[%s1426 + $0x1c] sm:%s1416] %v1441
                  %v1443 = vld [vmem:[%s1425 + $0x20] sm:%s1416]
                  %1444 = vst [vmem:[%s1426 + $0x20] sm:%s1416] %v1443
                  %v1445 = vld [vmem:[%s1425 + $0x24] sm:%s1416]
                  %1446 = vst [vmem:[%s1426 + $0x24] sm:%s1416] %v1445
                  %v1447 = vld [vmem:[%s1425 + $0x28] sm:%s1416]
                  %1448 = vst [vmem:[%s1426 + $0x28] sm:%s1416] %v1447
                  %v1449 = vld [vmem:[%s1425 + $0x2c] sm:%s1416]
                  %1450 = vst [vmem:[%s1426 + $0x2c] sm:%s1416] %v1449
                  %v1451 = vld [vmem:[%s1425 + $0x30] sm:%s1416]
                  %1452 = vst [vmem:[%s1426 + $0x30] sm:%s1416] %v1451
                  %v1453 = vld [vmem:[%s1425 + $0x34] sm:%s1416]
                  %1454 = vst [vmem:[%s1426 + $0x34] sm:%s1416] %v1453
                  %v1455 = vld [vmem:[%s1425 + $0x38] sm:%s1416]
                  %1456 = vst [vmem:[%s1426 + $0x38] sm:%s1416] %v1455
                  %v1457 = vld [vmem:[%s1425 + $0x3c] sm:%s1416]
                  %1458 = vst [vmem:[%s1426 + $0x3c] sm:%s1416] %v1457
                  %v1459 = vld [vmem:[%s1425 + $0x40] sm:%s1416]
                  %1460 = vst [vmem:[%s1426 + $0x40] sm:%s1416] %v1459
                  %v1461 = vld [vmem:[%s1425 + $0x44] sm:%s1416]
                  %1462 = vst [vmem:[%s1426 + $0x44] sm:%s1416] %v1461
                  %v1463 = vld [vmem:[%s1425 + $0x48] sm:%s1416]
                  %1464 = vst [vmem:[%s1426 + $0x48] sm:%s1416] %v1463
                  %v1465 = vld [vmem:[%s1425 + $0x4c] sm:%s1416]
                  %1466 = vst [vmem:[%s1426 + $0x4c] sm:%s1416] %v1465
                  %v1467 = vld [vmem:[%s1425 + $0x50] sm:%s1416]
                  %1468 = vst [vmem:[%s1426 + $0x50] sm:%s1416] %v1467
                  %v1469 = vld [vmem:[%s1425 + $0x54] sm:%s1416]
                  %1470 = vst [vmem:[%s1426 + $0x54] sm:%s1416] %v1469
                  %v1471 = vld [vmem:[%s1425 + $0x58] sm:%s1416]
                  %1472 = vst [vmem:[%s1426 + $0x58] sm:%s1416] %v1471
                  %v1473 = vld [vmem:[%s1425 + $0x5c] sm:%s1416]
                  %1474 = vst [vmem:[%s1426 + $0x5c] sm:%s1416] %v1473
                  %v1475 = vld [vmem:[%s1425 + $0x60] sm:%s1416]
                  %1476 = vst [vmem:[%s1426 + $0x60] sm:%s1416] %v1475
                  %v1477 = vld [vmem:[%s1425 + $0x64] sm:%s1416]
                  %1478 = vst [vmem:[%s1426 + $0x64] sm:%s1416] %v1477
                  %v1479 = vld [vmem:[%s1425 + $0x68] sm:%s1416]
                  %1480 = vst [vmem:[%s1426 + $0x68] sm:%s1416] %v1479
                  %v1481 = vld [vmem:[%s1425 + $0x6c] sm:%s1416]
                  %1482 = vst [vmem:[%s1426 + $0x6c] sm:%s1416] %v1481
                  %v1483 = vld [vmem:[%s1425 + $0x70] sm:%s1416]
                  %1484 = vst [vmem:[%s1426 + $0x70] sm:%s1416] %v1483
                  %v1485 = vld [vmem:[%s1425 + $0x74] sm:%s1416]
                  %1486 = vst [vmem:[%s1426 + $0x74] sm:%s1416] %v1485
                  %v1487 = vld [vmem:[%s1425 + $0x78] sm:%s1416]
                  %1488 = vst [vmem:[%s1426 + $0x78] sm:%s1416] %v1487
                  %v1489 = vld [vmem:[%s1425 + $0x7c] sm:%s1416]
                  %1490 = vst [vmem:[%s1426 + $0x7c] sm:%s1416] %v1489
                  %v1491 = vld [vmem:[%s1425 + $0x80] sm:%s1416]
                  %1492 = vst [vmem:[%s1426 + $0x80] sm:%s1416] %v1491
                  %v1493 = vld [vmem:[%s1425 + $0x84] sm:%s1416]
                  %1494 = vst [vmem:[%s1426 + $0x84] sm:%s1416] %v1493
                  %v1495 = vld [vmem:[%s1425 + $0x88] sm:%s1416]
                  %1496 = vst [vmem:[%s1426 + $0x88] sm:%s1416] %v1495
                  %v1497 = vld [vmem:[%s1425 + $0x8c] sm:%s1416]
                  %1498 = vst [vmem:[%s1426 + $0x8c] sm:%s1416] %v1497
                  %v1499 = vld [vmem:[%s1425 + $0x90] sm:%s1416]
                  %1500 = vst [vmem:[%s1426 + $0x90] sm:%s1416] %v1499
                  %v1501 = vld [vmem:[%s1425 + $0x94] sm:%s1416]
                  %1502 = vst [vmem:[%s1426 + $0x94] sm:%s1416] %v1501
                  %v1503 = vld [vmem:[%s1425 + $0x98] sm:%s1416]
                  %1504 = vst [vmem:[%s1426 + $0x98] sm:%s1416] %v1503
                  %v1505 = vld [vmem:[%s1425 + $0x9c] sm:%s1416]
                  %1506 = vst [vmem:[%s1426 + $0x9c] sm:%s1416] %v1505
                  %v1507 = vld [vmem:[%s1425 + $0xa0] sm:%s1416]
                  %1508 = vst [vmem:[%s1426 + $0xa0] sm:%s1416] %v1507
                  %v1509 = vld [vmem:[%s1425 + $0xa4] sm:%s1416]
                  %1510 = vst [vmem:[%s1426 + $0xa4] sm:%s1416] %v1509
                  %v1511 = vld [vmem:[%s1425 + $0xa8] sm:%s1416]
                  %1512 = vst [vmem:[%s1426 + $0xa8] sm:%s1416] %v1511
                  %v1513 = vld [vmem:[%s1425 + $0xac] sm:%s1416]
                  %1514 = vst [vmem:[%s1426 + $0xac] sm:%s1416] %v1513
                  %v1515 = vld [vmem:[%s1425 + $0xb0] sm:%s1416]
                  %1516 = vst [vmem:[%s1426 + $0xb0] sm:%s1416] %v1515
                  %v1517 = vld [vmem:[%s1425 + $0xb4] sm:%s1416]
                  %1518 = vst [vmem:[%s1426 + $0xb4] sm:%s1416] %v1517
                  %v1519 = vld [vmem:[%s1425 + $0xb8] sm:%s1416]
                  %1520 = vst [vmem:[%s1426 + $0xb8] sm:%s1416] %v1519
                  %v1521 = vld [vmem:[%s1425 + $0xbc] sm:%s1416]
                  %1522 = vst [vmem:[%s1426 + $0xbc] sm:%s1416] %v1521
                  %v1523 = vld [vmem:[%s1425 + $0xc0] sm:%s1416]
                  %1524 = vst [vmem:[%s1426 + $0xc0] sm:%s1416] %v1523
                  %v1525 = vld [vmem:[%s1425 + $0xc4] sm:%s1416]
                  %1526 = vst [vmem:[%s1426 + $0xc4] sm:%s1416] %v1525
                  %v1527 = vld [vmem:[%s1425 + $0xc8] sm:%s1416]
                  %1528 = vst [vmem:[%s1426 + $0xc8] sm:%s1416] %v1527
                  %v1529 = vld [vmem:[%s1425 + $0xcc] sm:%s1416]
                  %1530 = vst [vmem:[%s1426 + $0xcc] sm:%s1416] %v1529
                  %v1531 = vld [vmem:[%s1425 + $0xd0] sm:%s1416]
                  %1532 = vst [vmem:[%s1426 + $0xd0] sm:%s1416] %v1531
                  %v1533 = vld [vmem:[%s1425 + $0xd4] sm:%s1416]
                  %1534 = vst [vmem:[%s1426 + $0xd4] sm:%s1416] %v1533
                  %v1535 = vld [vmem:[%s1425 + $0xd8] sm:%s1416]
                  %1536 = vst [vmem:[%s1426 + $0xd8] sm:%s1416] %v1535
                  %v1537 = vld [vmem:[%s1425 + $0xdc] sm:%s1416]
                  %1538 = vst [vmem:[%s1426 + $0xdc] sm:%s1416] %v1537
                  %v1539 = vld [vmem:[%s1425 + $0xe0] sm:%s1416]
                  %1540 = vst [vmem:[%s1426 + $0xe0] sm:%s1416] %v1539
                  %v1541 = vld [vmem:[%s1425 + $0xe4] sm:%s1416]
                  %1542 = vst [vmem:[%s1426 + $0xe4] sm:%s1416] %v1541
                  %v1543 = vld [vmem:[%s1425 + $0xe8] sm:%s1416]
                  %1544 = vst [vmem:[%s1426 + $0xe8] sm:%s1416] %v1543
                  %v1545 = vld [vmem:[%s1425 + $0xec] sm:%s1416]
                  %1546 = vst [vmem:[%s1426 + $0xec] sm:%s1416] %v1545
                  %v1547 = vld [vmem:[%s1425 + $0xf0] sm:%s1416]
                  %1548 = vst [vmem:[%s1426 + $0xf0] sm:%s1416] %v1547
                  %v1549 = vld [vmem:[%s1425 + $0xf4] sm:%s1416]
                  %1550 = vst [vmem:[%s1426 + $0xf4] sm:%s1416] %v1549
                  %v1551 = vld [vmem:[%s1425 + $0xf8] sm:%s1416]
                  %1552 = vst [vmem:[%s1426 + $0xf8] sm:%s1416] %v1551
                  %v1553 = vld [vmem:[%s1425 + $0xfc] sm:%s1416]
                  %1554 = vst [vmem:[%s1426 + $0xfc] sm:%s1416] %v1553
                  %s1555 = sadd.s32 1, %s1424
                  %p1556 = scmp.ge.s32.totalorder %s1555, %s1417
                  %s1557 = scalar_select %p1556, 0, %s1555
                  %s1558 = smul.u32 %s1557, 256
                  %s1559 = smul.u32 %s1557, 256
                  %s1560 = scalar_lea.vmem %s1222, %s1558 [#allocation2]
                  %s1561 = scalar_lea.vmem %s1233, %s1559
                $region71: #{conv_encoder_forward.5} parent=65 // loop_footer
                  %s1421 = sadd.s32 %s1419, 1
                $region72: #{conv_encoder_forward.5} parent=65 // loop_footer_branch
                  %1418 = sbr.rel target = $region68
                $region73: #{conv_encoder_forward.5} parent=65 // loop_exit
                  _
                %s1562 = sshrl.u32 %s1229, 6
                %s1563 = sand.u32 %s1229, 63
                %s1564 = smul.u32 %s1562, 64
                %s1565 = smul.u32 4, %s1564
                %s1566 = scalar_lea.vmem %s1222, %s1565 [#allocation2]
                %s1567 = smul.u32 4, %s1564
                %s1568 = scalar_lea.vmem %s1233, %s1567
                // While loop
                $region74: #{conv_encoder_forward.5} parent=65 // loop_pre_header
                  _
                $region75: #{conv_encoder_forward.5} parent=65 // loop_header
                  %s1570 = sphi 0, %s1572
                  %p1571 = scmp.ge.s32.totalorder %s1570, %s1563
                  %s1575 = sphi 0, %s1582
                  %s1576 = sphi %s1566, %s1585
                  %s1577 = sphi %s1568, %s1586
                $region76: #{conv_encoder_forward.5} parent=65 // loop_header_branch
                  %1574 = sbr.rel (%p1571) target = $region80
                $region77: #{conv_encoder_forward.5} parent=65 // loop_body
                  %v1578 = vld [vmem:[%s1576] sm:%s1416]
                  %1579 = vst [vmem:[%s1577] sm:%s1416] %v1578
                  %s1580 = sadd.s32 1, %s1575
                  %p1581 = scmp.ge.s32.totalorder %s1580, %s1563
                  %s1582 = scalar_select %p1581, 0, %s1580
                  %s1583 = smul.u32 %s1582, 4
                  %s1584 = smul.u32 %s1582, 4
                  %s1585 = scalar_lea.vmem %s1566, %s1583 [#allocation2]
                  %s1586 = scalar_lea.vmem %s1568, %s1584
                $region78: #{conv_encoder_forward.5} parent=65 // loop_footer
                  %s1572 = sadd.s32 %s1570, 1
                $region79: #{conv_encoder_forward.5} parent=65 // loop_footer_branch
                  %1569 = sbr.rel target = $region75
                $region80: #{conv_encoder_forward.5} parent=65 // loop_exit
                  _
              $region66: #{conv_encoder_forward.5} parent=43 // pred_fallthru
                _
            $region44: #{conv_encoder_forward.5} parent=39 // pred_fallthru
              _
            // Predicated region
            $region45: #{conv_encoder_forward.5} parent=39 // pred_check
              _
            $region46: #{conv_encoder_forward.5} parent=39 // pred_check_branch
              %1240 = sbr.rel (0) target = $region48
            $region47: #{conv_encoder_forward.5} parent=39 // pred_region
              %s1242 = ssub.s32 16, 1
              %s1243 = sshrl.u32 %s1229, 6
              // While loop
              $region49: #{conv_encoder_forward.5} parent=47 // loop_pre_header
                _
              $region50: #{conv_encoder_forward.5} parent=47 // loop_header
                %s1245 = sphi 0, %s1247
                %p1246 = scmp.ge.s32.totalorder %s1245, %s1243
                %s1250 = sphi 0, %s1383
                %s1251 = sphi %s1222, %s1386
                %s1252 = sphi %s1233, %s1387
              $region51: #{conv_encoder_forward.5} parent=47 // loop_header_branch
                %1249 = sbr.rel (%p1246) target = $region55
              $region52: #{conv_encoder_forward.5} parent=47 // loop_body
                %v1253 = vld [vmem:[%s1251] sm:%s1242]
                %1254 = vst [vmem:[%s1252] sm:%s1242] %v1253
                %v1255 = vld [vmem:[%s1251 + $0x4] sm:%s1242]
                %1256 = vst [vmem:[%s1252 + $0x4] sm:%s1242] %v1255
                %v1257 = vld [vmem:[%s1251 + $0x8] sm:%s1242]
                %1258 = vst [vmem:[%s1252 + $0x8] sm:%s1242] %v1257
                %v1259 = vld [vmem:[%s1251 + $0xc] sm:%s1242]
                %1260 = vst [vmem:[%s1252 + $0xc] sm:%s1242] %v1259
                %v1261 = vld [vmem:[%s1251 + $0x10] sm:%s1242]
                %1262 = vst [vmem:[%s1252 + $0x10] sm:%s1242] %v1261
                %v1263 = vld [vmem:[%s1251 + $0x14] sm:%s1242]
                %1264 = vst [vmem:[%s1252 + $0x14] sm:%s1242] %v1263
                %v1265 = vld [vmem:[%s1251 + $0x18] sm:%s1242]
                %1266 = vst [vmem:[%s1252 + $0x18] sm:%s1242] %v1265
                %v1267 = vld [vmem:[%s1251 + $0x1c] sm:%s1242]
                %1268 = vst [vmem:[%s1252 + $0x1c] sm:%s1242] %v1267
                %v1269 = vld [vmem:[%s1251 + $0x20] sm:%s1242]
                %1270 = vst [vmem:[%s1252 + $0x20] sm:%s1242] %v1269
                %v1271 = vld [vmem:[%s1251 + $0x24] sm:%s1242]
                %1272 = vst [vmem:[%s1252 + $0x24] sm:%s1242] %v1271
                %v1273 = vld [vmem:[%s1251 + $0x28] sm:%s1242]
                %1274 = vst [vmem:[%s1252 + $0x28] sm:%s1242] %v1273
                %v1275 = vld [vmem:[%s1251 + $0x2c] sm:%s1242]
                %1276 = vst [vmem:[%s1252 + $0x2c] sm:%s1242] %v1275
                %v1277 = vld [vmem:[%s1251 + $0x30] sm:%s1242]
                %1278 = vst [vmem:[%s1252 + $0x30] sm:%s1242] %v1277
                %v1279 = vld [vmem:[%s1251 + $0x34] sm:%s1242]
                %1280 = vst [vmem:[%s1252 + $0x34] sm:%s1242] %v1279
                %v1281 = vld [vmem:[%s1251 + $0x38] sm:%s1242]
                %1282 = vst [vmem:[%s1252 + $0x38] sm:%s1242] %v1281
                %v1283 = vld [vmem:[%s1251 + $0x3c] sm:%s1242]
                %1284 = vst [vmem:[%s1252 + $0x3c] sm:%s1242] %v1283
                %v1285 = vld [vmem:[%s1251 + $0x40] sm:%s1242]
                %1286 = vst [vmem:[%s1252 + $0x40] sm:%s1242] %v1285
                %v1287 = vld [vmem:[%s1251 + $0x44] sm:%s1242]
                %1288 = vst [vmem:[%s1252 + $0x44] sm:%s1242] %v1287
                %v1289 = vld [vmem:[%s1251 + $0x48] sm:%s1242]
                %1290 = vst [vmem:[%s1252 + $0x48] sm:%s1242] %v1289
                %v1291 = vld [vmem:[%s1251 + $0x4c] sm:%s1242]
                %1292 = vst [vmem:[%s1252 + $0x4c] sm:%s1242] %v1291
                %v1293 = vld [vmem:[%s1251 + $0x50] sm:%s1242]
                %1294 = vst [vmem:[%s1252 + $0x50] sm:%s1242] %v1293
                %v1295 = vld [vmem:[%s1251 + $0x54] sm:%s1242]
                %1296 = vst [vmem:[%s1252 + $0x54] sm:%s1242] %v1295
                %v1297 = vld [vmem:[%s1251 + $0x58] sm:%s1242]
                %1298 = vst [vmem:[%s1252 + $0x58] sm:%s1242] %v1297
                %v1299 = vld [vmem:[%s1251 + $0x5c] sm:%s1242]
                %1300 = vst [vmem:[%s1252 + $0x5c] sm:%s1242] %v1299
                %v1301 = vld [vmem:[%s1251 + $0x60] sm:%s1242]
                %1302 = vst [vmem:[%s1252 + $0x60] sm:%s1242] %v1301
                %v1303 = vld [vmem:[%s1251 + $0x64] sm:%s1242]
                %1304 = vst [vmem:[%s1252 + $0x64] sm:%s1242] %v1303
                %v1305 = vld [vmem:[%s1251 + $0x68] sm:%s1242]
                %1306 = vst [vmem:[%s1252 + $0x68] sm:%s1242] %v1305
                %v1307 = vld [vmem:[%s1251 + $0x6c] sm:%s1242]
                %1308 = vst [vmem:[%s1252 + $0x6c] sm:%s1242] %v1307
                %v1309 = vld [vmem:[%s1251 + $0x70] sm:%s1242]
                %1310 = vst [vmem:[%s1252 + $0x70] sm:%s1242] %v1309
                %v1311 = vld [vmem:[%s1251 + $0x74] sm:%s1242]
                %1312 = vst [vmem:[%s1252 + $0x74] sm:%s1242] %v1311
                %v1313 = vld [vmem:[%s1251 + $0x78] sm:%s1242]
                %1314 = vst [vmem:[%s1252 + $0x78] sm:%s1242] %v1313
                %v1315 = vld [vmem:[%s1251 + $0x7c] sm:%s1242]
                %1316 = vst [vmem:[%s1252 + $0x7c] sm:%s1242] %v1315
                %v1317 = vld [vmem:[%s1251 + $0x80] sm:%s1242]
                %1318 = vst [vmem:[%s1252 + $0x80] sm:%s1242] %v1317
                %v1319 = vld [vmem:[%s1251 + $0x84] sm:%s1242]
                %1320 = vst [vmem:[%s1252 + $0x84] sm:%s1242] %v1319
                %v1321 = vld [vmem:[%s1251 + $0x88] sm:%s1242]
                %1322 = vst [vmem:[%s1252 + $0x88] sm:%s1242] %v1321
                %v1323 = vld [vmem:[%s1251 + $0x8c] sm:%s1242]
                %1324 = vst [vmem:[%s1252 + $0x8c] sm:%s1242] %v1323
                %v1325 = vld [vmem:[%s1251 + $0x90] sm:%s1242]
                %1326 = vst [vmem:[%s1252 + $0x90] sm:%s1242] %v1325
                %v1327 = vld [vmem:[%s1251 + $0x94] sm:%s1242]
                %1328 = vst [vmem:[%s1252 + $0x94] sm:%s1242] %v1327
                %v1329 = vld [vmem:[%s1251 + $0x98] sm:%s1242]
                %1330 = vst [vmem:[%s1252 + $0x98] sm:%s1242] %v1329
                %v1331 = vld [vmem:[%s1251 + $0x9c] sm:%s1242]
                %1332 = vst [vmem:[%s1252 + $0x9c] sm:%s1242] %v1331
                %v1333 = vld [vmem:[%s1251 + $0xa0] sm:%s1242]
                %1334 = vst [vmem:[%s1252 + $0xa0] sm:%s1242] %v1333
                %v1335 = vld [vmem:[%s1251 + $0xa4] sm:%s1242]
                %1336 = vst [vmem:[%s1252 + $0xa4] sm:%s1242] %v1335
                %v1337 = vld [vmem:[%s1251 + $0xa8] sm:%s1242]
                %1338 = vst [vmem:[%s1252 + $0xa8] sm:%s1242] %v1337
                %v1339 = vld [vmem:[%s1251 + $0xac] sm:%s1242]
                %1340 = vst [vmem:[%s1252 + $0xac] sm:%s1242] %v1339
                %v1341 = vld [vmem:[%s1251 + $0xb0] sm:%s1242]
                %1342 = vst [vmem:[%s1252 + $0xb0] sm:%s1242] %v1341
                %v1343 = vld [vmem:[%s1251 + $0xb4] sm:%s1242]
                %1344 = vst [vmem:[%s1252 + $0xb4] sm:%s1242] %v1343
                %v1345 = vld [vmem:[%s1251 + $0xb8] sm:%s1242]
                %1346 = vst [vmem:[%s1252 + $0xb8] sm:%s1242] %v1345
                %v1347 = vld [vmem:[%s1251 + $0xbc] sm:%s1242]
                %1348 = vst [vmem:[%s1252 + $0xbc] sm:%s1242] %v1347
                %v1349 = vld [vmem:[%s1251 + $0xc0] sm:%s1242]
                %1350 = vst [vmem:[%s1252 + $0xc0] sm:%s1242] %v1349
                %v1351 = vld [vmem:[%s1251 + $0xc4] sm:%s1242]
                %1352 = vst [vmem:[%s1252 + $0xc4] sm:%s1242] %v1351
                %v1353 = vld [vmem:[%s1251 + $0xc8] sm:%s1242]
                %1354 = vst [vmem:[%s1252 + $0xc8] sm:%s1242] %v1353
                %v1355 = vld [vmem:[%s1251 + $0xcc] sm:%s1242]
                %1356 = vst [vmem:[%s1252 + $0xcc] sm:%s1242] %v1355
                %v1357 = vld [vmem:[%s1251 + $0xd0] sm:%s1242]
                %1358 = vst [vmem:[%s1252 + $0xd0] sm:%s1242] %v1357
                %v1359 = vld [vmem:[%s1251 + $0xd4] sm:%s1242]
                %1360 = vst [vmem:[%s1252 + $0xd4] sm:%s1242] %v1359
                %v1361 = vld [vmem:[%s1251 + $0xd8] sm:%s1242]
                %1362 = vst [vmem:[%s1252 + $0xd8] sm:%s1242] %v1361
                %v1363 = vld [vmem:[%s1251 + $0xdc] sm:%s1242]
                %1364 = vst [vmem:[%s1252 + $0xdc] sm:%s1242] %v1363
                %v1365 = vld [vmem:[%s1251 + $0xe0] sm:%s1242]
                %1366 = vst [vmem:[%s1252 + $0xe0] sm:%s1242] %v1365
                %v1367 = vld [vmem:[%s1251 + $0xe4] sm:%s1242]
                %1368 = vst [vmem:[%s1252 + $0xe4] sm:%s1242] %v1367
                %v1369 = vld [vmem:[%s1251 + $0xe8] sm:%s1242]
                %1370 = vst [vmem:[%s1252 + $0xe8] sm:%s1242] %v1369
                %v1371 = vld [vmem:[%s1251 + $0xec] sm:%s1242]
                %1372 = vst [vmem:[%s1252 + $0xec] sm:%s1242] %v1371
                %v1373 = vld [vmem:[%s1251 + $0xf0] sm:%s1242]
                %1374 = vst [vmem:[%s1252 + $0xf0] sm:%s1242] %v1373
                %v1375 = vld [vmem:[%s1251 + $0xf4] sm:%s1242]
                %1376 = vst [vmem:[%s1252 + $0xf4] sm:%s1242] %v1375
                %v1377 = vld [vmem:[%s1251 + $0xf8] sm:%s1242]
                %1378 = vst [vmem:[%s1252 + $0xf8] sm:%s1242] %v1377
                %v1379 = vld [vmem:[%s1251 + $0xfc] sm:%s1242]
                %1380 = vst [vmem:[%s1252 + $0xfc] sm:%s1242] %v1379
                %s1381 = sadd.s32 1, %s1250
                %p1382 = scmp.ge.s32.totalorder %s1381, %s1243
                %s1383 = scalar_select %p1382, 0, %s1381
                %s1384 = smul.u32 %s1383, 256
                %s1385 = smul.u32 %s1383, 256
                %s1386 = scalar_lea.vmem %s1222, %s1384 [#allocation2]
                %s1387 = scalar_lea.vmem %s1233, %s1385
              $region53: #{conv_encoder_forward.5} parent=47 // loop_footer
                %s1247 = sadd.s32 %s1245, 1
              $region54: #{conv_encoder_forward.5} parent=47 // loop_footer_branch
                %1244 = sbr.rel target = $region50
              $region55: #{conv_encoder_forward.5} parent=47 // loop_exit
                _
              %s1388 = sshrl.u32 %s1229, 6
              %s1389 = sand.u32 %s1229, 63
              %s1390 = smul.u32 %s1388, 64
              %s1391 = smul.u32 4, %s1390
              %s1392 = scalar_lea.vmem %s1222, %s1391 [#allocation2]
              %s1393 = smul.u32 4, %s1390
              %s1394 = scalar_lea.vmem %s1233, %s1393
              // While loop
              $region56: #{conv_encoder_forward.5} parent=47 // loop_pre_header
                _
              $region57: #{conv_encoder_forward.5} parent=47 // loop_header
                %s1396 = sphi 0, %s1398
                %p1397 = scmp.ge.s32.totalorder %s1396, %s1389
                %s1401 = sphi 0, %s1408
                %s1402 = sphi %s1392, %s1411
                %s1403 = sphi %s1394, %s1412
              $region58: #{conv_encoder_forward.5} parent=47 // loop_header_branch
                %1400 = sbr.rel (%p1397) target = $region62
              $region59: #{conv_encoder_forward.5} parent=47 // loop_body
                %v1404 = vld [vmem:[%s1402] sm:%s1242]
                %1405 = vst [vmem:[%s1403] sm:%s1242] %v1404
                %s1406 = sadd.s32 1, %s1401
                %p1407 = scmp.ge.s32.totalorder %s1406, %s1389
                %s1408 = scalar_select %p1407, 0, %s1406
                %s1409 = smul.u32 %s1408, 4
                %s1410 = smul.u32 %s1408, 4
                %s1411 = scalar_lea.vmem %s1392, %s1409 [#allocation2]
                %s1412 = scalar_lea.vmem %s1394, %s1410
              $region60: #{conv_encoder_forward.5} parent=47 // loop_footer
                %s1398 = sadd.s32 %s1396, 1
              $region61: #{conv_encoder_forward.5} parent=47 // loop_footer_branch
                %1395 = sbr.rel target = $region57
              $region62: #{conv_encoder_forward.5} parent=47 // loop_exit
                _
            $region48: #{conv_encoder_forward.5} parent=39 // pred_fallthru
              _
          $region40: #{conv_encoder_forward.5} parent=35 // pred_fallthru
            _
          %1587 = vnop
        $region36: #{conv_encoder_forward.5} parent=31 // pred_fallthru
          _
      $region32: #{conv_encoder_forward.5} parent=5 // pred_fallthru
        _
      %p1588 = scmp.le.s32.totalorder 2, %s9
      // Predicated region
      $region81: #{conv_encoder_forward.5} parent=5 // pred_check
        %p1589 = pneg %p1588
      $region82: #{conv_encoder_forward.5} parent=5 // pred_check_branch
        %1591 = sbr.rel (%p1589) target = $region84
      $region83: #{conv_encoder_forward.5} parent=5 // pred_region
        %s1592 = ssub.s32 %s9, 2
        // Predicated region
        $region85: #{conv_encoder_forward.5} parent=83 // pred_check
          %p1593 = pneg %p106
        $region86: #{conv_encoder_forward.5} parent=83 // pred_check_branch
          %1595 = sbr.rel (%p1593) target = $region88
        $region87: #{conv_encoder_forward.5} parent=83 // pred_region
          %s1596 = sand.u32 %s91, 1
          %s1597 = sand.u32 %s91, 1
          %s1598 = smul.addr %s1597, 256
          %s1599 = scalar_lea.vmem [#allocation2], %s1598
        $region88: #{conv_encoder_forward.5} parent=83 // pred_fallthru
          _
      $region84: #{conv_encoder_forward.5} parent=5 // pred_fallthru
        _
    $region6: #{conv_encoder_forward.5} parent=1 // loop_footer
      %s13 = sadd.s32 1, %s9
    $region7: #{conv_encoder_forward.5} parent=1 // loop_footer_branch
      %8 = sbr.rel target = $region3
    $region8: #{conv_encoder_forward.5} parent=1 // loop_exit
      _

// kernel: conv_encoder_forward.6
$region0: #{conv_encoder_forward.6}
  #allocation0 [shape = 'u32[]', space=smem, size = 0x4, offset = 0x4, fixed_abs, tag = 'smem constant byte address 0x4 - core index']
  #allocation1 [shape = 'u32[144,128]{1,0:T(1,128)}', space=vmem, size = 0x12000, scoped, tag = 'internal scratch']
  %s0 = inlined_call_operand.vmem [shape: bf16[392,512], index: 0, kind: input, shape index: {}]
  %s1 = inlined_call_operand.vmem [shape: bf16[512,64], index: 1, kind: input, shape index: {}]
  %s2 = inlined_call_operand.vmem [shape: f32[1,64], index: 2, kind: input, shape index: {}]
  %s3 = inlined_call_operand.vmem [shape: bf16[392,64], index: 3, kind: output, shape index: {}]
  %s4 = sld [smem:[#allocation0]]
  $region22: #{conv_encoder_forward.6} parent=0
    _
  %s6 = ssub.s32 1, %s4
  %s7 = scalar_select 0, %s6, %s4
  // Predicated region
  $region2: #{conv_encoder_forward.6} parent=0 // pred_check
    _
  $region3: #{conv_encoder_forward.6} parent=0 // pred_check_branch
    %9 = sbr.rel (0) target = $region5
  $region4: #{conv_encoder_forward.6} parent=0 // pred_region
    _
  $region5: #{conv_encoder_forward.6} parent=0 // pred_fallthru
    _
  // Predicated region
  $region6: #{conv_encoder_forward.6} parent=0 // pred_check
    _
  $region7: #{conv_encoder_forward.6} parent=0 // pred_check_branch
    %11 = sbr.rel (0) target = $region9
  $region8: #{conv_encoder_forward.6} parent=0 // pred_region
    _
  $region9: #{conv_encoder_forward.6} parent=0 // pred_fallthru
    _
  // Predicated region
  $region10: #{conv_encoder_forward.6} parent=0 // pred_check
    _
  $region11: #{conv_encoder_forward.6} parent=0 // pred_check_branch
    %13 = sbr.rel (0) target = $region13
  $region12: #{conv_encoder_forward.6} parent=0 // pred_region
    _
  $region13: #{conv_encoder_forward.6} parent=0 // pred_fallthru
    _
  %v15 = vld [vmem:[%s0] sm:$0xff]
  %v16 = vld [vmem:[%s0 + $0x8] sm:$0xff]
  %v17 = vld [vmem:[%s0 + $0x10] sm:$0xff]
  %v18 = vld [vmem:[%s0 + $0x18] sm:$0xff]
  %v19 = vld [vmem:[%s0 + $0x20] sm:$0xff]
  %v20 = vld [vmem:[%s0 + $0x28] sm:$0xff]
  %v21 = vld [vmem:[%s0 + $0x30] sm:$0xff]
  %v22 = vld [vmem:[%s0 + $0x38] sm:$0xff]
  %v23 = vld [vmem:[%s0 + $0x40] sm:$0xff]
  %v24 = vld [vmem:[%s0 + $0x48] sm:$0xff]
  %v25 = vld [vmem:[%s0 + $0x50] sm:$0xff]
  %v26 = vld [vmem:[%s0 + $0x58] sm:$0xff]
  %v27 = vld [vmem:[%s0 + $0x60] sm:$0xff]
  %v28 = vld [vmem:[%s0 + $0x68] sm:$0xff]
  %v29 = vld [vmem:[%s0 + $0x70] sm:$0xff]
  %v30 = vld [vmem:[%s0 + $0x78] sm:$0xff]
  %v31 = vld [vmem:[%s0 + $0x80] sm:$0xff]
  %v32 = vld [vmem:[%s0 + $0x88] sm:$0xff]
  %v33 = vld [vmem:[%s0 + $0x90] sm:$0xff]
  %v34 = vld [vmem:[%s0 + $0x98] sm:$0xff]
  %v35 = vld [vmem:[%s0 + $0xa0] sm:$0xff]
  %v36 = vld [vmem:[%s0 + $0xa8] sm:$0xff]
  %v37 = vld [vmem:[%s0 + $0xb0] sm:$0xff]
  %v38 = vld [vmem:[%s0 + $0xb8] sm:$0xff]
  %v39 = vld [vmem:[%s0 + $0xc0] sm:$0xff]
  %v40 = vld [vmem:[%s0 + $0xc8] sm:$0xff]
  %v41 = vld [vmem:[%s0 + $0xd0] sm:$0xff]
  %v42 = vld [vmem:[%s0 + $0xd8] sm:$0xff]
  %v43 = vld [vmem:[%s0 + $0xe0] sm:$0xff]
  %v44 = vld [vmem:[%s0 + $0xe8] sm:$0xff]
  %v45 = vld [vmem:[%s0 + $0xf0] sm:$0xff]
  %v46 = vld [vmem:[%s0 + $0xf8] sm:$0xff]
  %v47 = vld [vmem:[%s0 + $0x100] sm:$0xff]
  %v48 = vld [vmem:[%s0 + $0x108] sm:$0xff]
  %v49 = vld [vmem:[%s0 + $0x110] sm:$0xff]
  %v50 = vld [vmem:[%s0 + $0x118] sm:$0xff]
  %v51 = vld [vmem:[%s0 + $0x120] sm:$0xff]
  %v52 = vld [vmem:[%s0 + $0x128] sm:$0xff]
  %v53 = vld [vmem:[%s0 + $0x130] sm:$0xff]
  %v54 = vld [vmem:[%s0 + $0x138] sm:$0xff]
  %v55 = vld [vmem:[%s0 + $0x140] sm:$0xff]
  %v56 = vld [vmem:[%s0 + $0x148] sm:$0xff]
  %v57 = vld [vmem:[%s0 + $0x150] sm:$0xff]
  %v58 = vld [vmem:[%s0 + $0x158] sm:$0xff]
  %v59 = vld [vmem:[%s0 + $0x160] sm:$0xff]
  %v60 = vld [vmem:[%s0 + $0x168] sm:$0xff]
  %v61 = vld [vmem:[%s0 + $0x170] sm:$0xff]
  %v62 = vld [vmem:[%s0 + $0x178] sm:$0xff]
  %v63 = vld [vmem:[%s0 + $0x180] sm:$0xff]
  %v64 = vld [vmem:[%s0 + $0x188] sm:$0xff]
  %v65 = vld [vmem:[%s0 + $0x190] sm:$0xff]
  %v66 = vld [vmem:[%s0 + $0x198] sm:$0xff]
  %v67 = vld [vmem:[%s0 + $0x1a0] sm:$0xff]
  %v68 = vld [vmem:[%s0 + $0x1a8] sm:$0xff]
  %v69 = vld [vmem:[%s0 + $0x1b0] sm:$0xff]
  %v70 = vld [vmem:[%s0 + $0x1b8] sm:$0xff]
  %v71 = vld [vmem:[%s0 + $0x1c0] sm:$0xff]
  %v72 = vld [vmem:[%s0 + $0x1c8] sm:$0xff]
  %v73 = vld [vmem:[%s0 + $0x1d0] sm:$0xff]
  %v74 = vld [vmem:[%s0 + $0x1d8] sm:$0xff]
  %v75 = vld [vmem:[%s0 + $0x1e0] sm:$0xff]
  %v76 = vld [vmem:[%s0 + $0x1e8] sm:$0xff]
  %v77 = vld [vmem:[%s0 + $0x1f0] sm:$0xff]
  %v78 = vld [vmem:[%s0 + $0x1f8] sm:$0xff]
  %v79 = vld [vmem:[%s0 + $0x200] sm:$0xff]
  %v80 = vld [vmem:[%s0 + $0x208] sm:$0xff]
  %v81 = vld [vmem:[%s0 + $0x210] sm:$0xff]
  %v82 = vld [vmem:[%s0 + $0x218] sm:$0xff]
  %v83 = vld [vmem:[%s0 + $0x220] sm:$0xff]
  %v84 = vld [vmem:[%s0 + $0x228] sm:$0xff]
  %v85 = vld [vmem:[%s0 + $0x230] sm:$0xff]
  %v86 = vld [vmem:[%s0 + $0x238] sm:$0xff]
  %v87 = vld [vmem:[%s0 + $0x240] sm:$0xff]
  %v88 = vld [vmem:[%s0 + $0x248] sm:$0xff]
  %v89 = vld [vmem:[%s0 + $0x250] sm:$0xff]
  %v90 = vld [vmem:[%s0 + $0x258] sm:$0xff]
  %v91 = vld [vmem:[%s0 + $0x260] sm:$0xff]
  %v92 = vld [vmem:[%s0 + $0x268] sm:$0xff]
  %v93 = vld [vmem:[%s0 + $0x270] sm:$0xff]
  %v94 = vld [vmem:[%s0 + $0x278] sm:$0xff]
  %v95 = vld [vmem:[%s0 + $0x280] sm:$0xff]
  %v96 = vld [vmem:[%s0 + $0x288] sm:$0xff]
  %v97 = vld [vmem:[%s0 + $0x290] sm:$0xff]
  %v98 = vld [vmem:[%s0 + $0x298] sm:$0xff]
  %v99 = vld [vmem:[%s0 + $0x2a0] sm:$0xff]
  %v100 = vld [vmem:[%s0 + $0x2a8] sm:$0xff]
  %v101 = vld [vmem:[%s0 + $0x2b0] sm:$0xff]
  %v102 = vld [vmem:[%s0 + $0x2b8] sm:$0xff]
  %v103 = vld [vmem:[%s0 + $0x2c0] sm:$0xff]
  %v104 = vld [vmem:[%s0 + $0x2c8] sm:$0xff]
  %v105 = vld [vmem:[%s0 + $0x2d0] sm:$0xff]
  %v106 = vld [vmem:[%s0 + $0x2d8] sm:$0xff]
  %v107 = vld [vmem:[%s0 + $0x2e0] sm:$0xff]
  %v108 = vld [vmem:[%s0 + $0x2e8] sm:$0xff]
  %v109 = vld [vmem:[%s0 + $0x2f0] sm:$0xff]
  %v110 = vld [vmem:[%s0 + $0x2f8] sm:$0xff]
  %v111 = vld [vmem:[%s0 + $0x300] sm:$0xff]
  %v112 = vld [vmem:[%s0 + $0x308] sm:$0xff]
  %v113 = vld [vmem:[%s1] sm:$0xf]
  %v114 = vld [vmem:[%s1 + $0x4] sm:$0xf]
  %v115 = vld [vmem:[%s1 + $0x8] sm:$0xf]
  %v116 = vld [vmem:[%s1 + $0xc] sm:$0xf]
  %v117 = vld [vmem:[%s1 + $0x10] sm:$0xf]
  %v118 = vld [vmem:[%s1 + $0x14] sm:$0xf]
  %v119 = vld [vmem:[%s1 + $0x18] sm:$0xf]
  %v120 = vld [vmem:[%s1 + $0x1c] sm:$0xf]
  %v121 = vld [vmem:[%s1 + $0x20] sm:$0xf]
  %v122 = vld [vmem:[%s1 + $0x24] sm:$0xf]
  %v123 = vld [vmem:[%s1 + $0x28] sm:$0xf]
  %v124 = vld [vmem:[%s1 + $0x2c] sm:$0xf]
  %v125 = vld [vmem:[%s1 + $0x30] sm:$0xf]
  %v126 = vld [vmem:[%s1 + $0x34] sm:$0xf]
  %v127 = vld [vmem:[%s1 + $0x38] sm:$0xf]
  %v128 = vld [vmem:[%s1 + $0x3c] sm:$0xf]
  %v129 = vld [vmem:[%s1 + $0x40] sm:$0xf]
  %v130 = vld [vmem:[%s1 + $0x44] sm:$0xf]
  %v131 = vld [vmem:[%s1 + $0x48] sm:$0xf]
  %v132 = vld [vmem:[%s1 + $0x4c] sm:$0xf]
  %v133 = vld [vmem:[%s1 + $0x50] sm:$0xf]
  %v134 = vld [vmem:[%s1 + $0x54] sm:$0xf]
  %v135 = vld [vmem:[%s1 + $0x58] sm:$0xf]
  %v136 = vld [vmem:[%s1 + $0x5c] sm:$0xf]
  %v137 = vld [vmem:[%s1 + $0x60] sm:$0xf]
  %v138 = vld [vmem:[%s1 + $0x64] sm:$0xf]
  %v139 = vld [vmem:[%s1 + $0x68] sm:$0xf]
  %v140 = vld [vmem:[%s1 + $0x6c] sm:$0xf]
  %v141 = vld [vmem:[%s1 + $0x70] sm:$0xf]
  %v142 = vld [vmem:[%s1 + $0x74] sm:$0xf]
  %v143 = vld [vmem:[%s1 + $0x78] sm:$0xf]
  %v144 = vld [vmem:[%s1 + $0x7c] sm:$0xf]
  %v145 = vld [vmem:[%s1 + $0x80] sm:$0xf]
  %v146 = vld [vmem:[%s1 + $0x84] sm:$0xf]
  %v147 = vld [vmem:[%s1 + $0x88] sm:$0xf]
  %v148 = vld [vmem:[%s1 + $0x8c] sm:$0xf]
  %v149 = vld [vmem:[%s1 + $0x90] sm:$0xf]
  %v150 = vld [vmem:[%s1 + $0x94] sm:$0xf]
  %v151 = vld [vmem:[%s1 + $0x98] sm:$0xf]
  %v152 = vld [vmem:[%s1 + $0x9c] sm:$0xf]
  %v153 = vld [vmem:[%s1 + $0xa0] sm:$0xf]
  %v154 = vld [vmem:[%s1 + $0xa4] sm:$0xf]
  %v155 = vld [vmem:[%s1 + $0xa8] sm:$0xf]
  %v156 = vld [vmem:[%s1 + $0xac] sm:$0xf]
  %v157 = vld [vmem:[%s1 + $0xb0] sm:$0xf]
  %v158 = vld [vmem:[%s1 + $0xb4] sm:$0xf]
  %v159 = vld [vmem:[%s1 + $0xb8] sm:$0xf]
  %v160 = vld [vmem:[%s1 + $0xbc] sm:$0xf]
  %v161 = vld [vmem:[%s1 + $0xc0] sm:$0xf]
  %v162 = vld [vmem:[%s1 + $0xc4] sm:$0xf]
  %v163 = vld [vmem:[%s1 + $0xc8] sm:$0xf]
  %v164 = vld [vmem:[%s1 + $0xcc] sm:$0xf]
  %v165 = vld [vmem:[%s1 + $0xd0] sm:$0xf]
  %v166 = vld [vmem:[%s1 + $0xd4] sm:$0xf]
  %v167 = vld [vmem:[%s1 + $0xd8] sm:$0xf]
  %v168 = vld [vmem:[%s1 + $0xdc] sm:$0xf]
  %v169 = vld [vmem:[%s1 + $0xe0] sm:$0xf]
  %v170 = vld [vmem:[%s1 + $0xe4] sm:$0xf]
  %v171 = vld [vmem:[%s1 + $0xe8] sm:$0xf]
  %v172 = vld [vmem:[%s1 + $0xec] sm:$0xf]
  %v173 = vld [vmem:[%s1 + $0xf0] sm:$0xf]
  %v174 = vld [vmem:[%s1 + $0xf4] sm:$0xf]
  %v175 = vld [vmem:[%s1 + $0xf8] sm:$0xf]
  %v176 = vld [vmem:[%s1 + $0xfc] sm:$0xf]
  %v177 = vld [vmem:[%s2] sm:$0x1]
  %v179 = vlaneseq
  %v180 = vshrl.u32 %v179, 7
  %v181 = vsub.s32 0, %v180
  %v182 = vrot.slane %v177, %v181
  %v282 = vunpack.c.l.b16 %v15
  %v283 = vunpack.c.h.b16 %v15
  %v284 = vunpack.c.l.b16 %v16
  %v285 = vunpack.c.h.b16 %v16
  %v286 = vunpack.c.l.b16 %v17
  %v287 = vunpack.c.h.b16 %v17
  %v288 = vunpack.c.l.b16 %v18
  %v289 = vunpack.c.h.b16 %v18
  %v290 = vunpack.c.l.b16 %v19
  %v291 = vunpack.c.h.b16 %v19
  %v292 = vunpack.c.l.b16 %v20
  %v293 = vunpack.c.h.b16 %v20
  %v294 = vunpack.c.l.b16 %v21
  %v295 = vunpack.c.h.b16 %v21
  %v296 = vunpack.c.l.b16 %v22
  %v297 = vunpack.c.h.b16 %v22
  %v298 = vunpack.c.l.b16 %v23
  %v299 = vunpack.c.h.b16 %v23
  %v300 = vunpack.c.l.b16 %v24
  %v301 = vunpack.c.h.b16 %v24
  %v302 = vunpack.c.l.b16 %v25
  %v303 = vunpack.c.h.b16 %v25
  %v304 = vunpack.c.l.b16 %v26
  %v305 = vunpack.c.h.b16 %v26
  %v306 = vunpack.c.l.b16 %v27
  %v307 = vunpack.c.h.b16 %v27
  %v308 = vunpack.c.l.b16 %v28
  %v309 = vunpack.c.h.b16 %v28
  %v310 = vunpack.c.l.b16 %v29
  %v311 = vunpack.c.h.b16 %v29
  %v312 = vunpack.c.l.b16 %v30
  %v313 = vunpack.c.h.b16 %v30
  %v314 = vunpack.c.l.b16 %v31
  %v315 = vunpack.c.h.b16 %v31
  %v316 = vunpack.c.l.b16 %v32
  %v317 = vunpack.c.h.b16 %v32
  %v318 = vunpack.c.l.b16 %v33
  %v319 = vunpack.c.h.b16 %v33
  %v320 = vunpack.c.l.b16 %v34
  %v321 = vunpack.c.h.b16 %v34
  %v322 = vunpack.c.l.b16 %v35
  %v323 = vunpack.c.h.b16 %v35
  %v324 = vunpack.c.l.b16 %v36
  %v325 = vunpack.c.h.b16 %v36
  %v326 = vunpack.c.l.b16 %v37
  %v327 = vunpack.c.h.b16 %v37
  %v328 = vunpack.c.l.b16 %v38
  %v329 = vunpack.c.h.b16 %v38
  %v330 = vunpack.c.l.b16 %v39
  %v331 = vunpack.c.h.b16 %v39
  %v332 = vunpack.c.l.b16 %v40
  %v333 = vunpack.c.h.b16 %v40
  %v334 = vunpack.c.l.b16 %v41
  %v335 = vunpack.c.h.b16 %v41
  %v336 = vunpack.c.l.b16 %v42
  %v337 = vunpack.c.h.b16 %v42
  %v338 = vunpack.c.l.b16 %v43
  %v339 = vunpack.c.h.b16 %v43
  %v340 = vunpack.c.l.b16 %v44
  %v341 = vunpack.c.h.b16 %v44
  %v342 = vunpack.c.l.b16 %v45
  %v343 = vunpack.c.h.b16 %v45
  %v344 = vunpack.c.l.b16 %v46
  %v345 = vunpack.c.h.b16 %v46
  %v346 = vunpack.c.l.b16 %v47
  %v347 = vunpack.c.h.b16 %v47
  %v348 = vunpack.c.l.b16 %v48
  %v349 = vunpack.c.h.b16 %v48
  %v350 = vunpack.c.l.b16 %v49
  %v351 = vunpack.c.h.b16 %v49
  %v352 = vunpack.c.l.b16 %v50
  %v353 = vunpack.c.h.b16 %v50
  %v354 = vunpack.c.l.b16 %v51
  %v355 = vunpack.c.h.b16 %v51
  %v356 = vunpack.c.l.b16 %v52
  %v357 = vunpack.c.h.b16 %v52
  %v358 = vunpack.c.l.b16 %v53
  %v359 = vunpack.c.h.b16 %v53
  %v360 = vunpack.c.l.b16 %v54
  %v361 = vunpack.c.h.b16 %v54
  %v362 = vunpack.c.l.b16 %v55
  %v363 = vunpack.c.h.b16 %v55
  %v364 = vunpack.c.l.b16 %v56
  %v365 = vunpack.c.h.b16 %v56
  %v366 = vunpack.c.l.b16 %v57
  %v367 = vunpack.c.h.b16 %v57
  %v368 = vunpack.c.l.b16 %v58
  %v369 = vunpack.c.h.b16 %v58
  %v370 = vunpack.c.l.b16 %v59
  %v371 = vunpack.c.h.b16 %v59
  %v372 = vunpack.c.l.b16 %v60
  %v373 = vunpack.c.h.b16 %v60
  %v374 = vunpack.c.l.b16 %v61
  %v375 = vunpack.c.h.b16 %v61
  %v376 = vunpack.c.l.b16 %v62
  %v377 = vunpack.c.h.b16 %v62
  %v378 = vunpack.c.l.b16 %v63
  %v379 = vunpack.c.h.b16 %v63
  %v380 = vunpack.c.l.b16 %v64
  %v381 = vunpack.c.h.b16 %v64
  %v382 = vunpack.c.l.b16 %v65
  %v383 = vunpack.c.h.b16 %v65
  %v384 = vunpack.c.l.b16 %v66
  %v385 = vunpack.c.h.b16 %v66
  %v386 = vunpack.c.l.b16 %v67
  %v387 = vunpack.c.h.b16 %v67
  %v388 = vunpack.c.l.b16 %v68
  %v389 = vunpack.c.h.b16 %v68
  %v390 = vunpack.c.l.b16 %v69
  %v391 = vunpack.c.h.b16 %v69
  %v392 = vunpack.c.l.b16 %v70
  %v393 = vunpack.c.h.b16 %v70
  %v394 = vunpack.c.l.b16 %v71
  %v395 = vunpack.c.h.b16 %v71
  %v396 = vunpack.c.l.b16 %v72
  %v397 = vunpack.c.h.b16 %v72
  %v398 = vunpack.c.l.b16 %v73
  %v399 = vunpack.c.h.b16 %v73
  %v400 = vunpack.c.l.b16 %v74
  %v401 = vunpack.c.h.b16 %v74
  %v402 = vunpack.c.l.b16 %v75
  %v403 = vunpack.c.h.b16 %v75
  %v404 = vunpack.c.l.b16 %v76
  %v405 = vunpack.c.h.b16 %v76
  %v406 = vunpack.c.l.b16 %v77
  %v407 = vunpack.c.h.b16 %v77
  %v408 = vunpack.c.l.b16 %v78
  %v409 = vunpack.c.h.b16 %v78
  %v410 = vunpack.c.l.b16 %v79
  %v411 = vunpack.c.h.b16 %v79
  %v412 = vunpack.c.l.b16 %v80
  %v413 = vunpack.c.h.b16 %v80
  %v414 = vunpack.c.l.b16 %v81
  %v415 = vunpack.c.h.b16 %v81
  %v416 = vunpack.c.l.b16 %v82
  %v417 = vunpack.c.h.b16 %v82
  %v418 = vunpack.c.l.b16 %v83
  %v419 = vunpack.c.h.b16 %v83
  %v420 = vunpack.c.l.b16 %v84
  %v421 = vunpack.c.h.b16 %v84
  %v422 = vunpack.c.l.b16 %v85
  %v423 = vunpack.c.h.b16 %v85
  %v424 = vunpack.c.l.b16 %v86
  %v425 = vunpack.c.h.b16 %v86
  %v426 = vunpack.c.l.b16 %v87
  %v427 = vunpack.c.h.b16 %v87
  %v428 = vunpack.c.l.b16 %v88
  %v429 = vunpack.c.h.b16 %v88
  %v430 = vunpack.c.l.b16 %v89
  %v431 = vunpack.c.h.b16 %v89
  %v432 = vunpack.c.l.b16 %v90
  %v433 = vunpack.c.h.b16 %v90
  %v434 = vunpack.c.l.b16 %v91
  %v435 = vunpack.c.h.b16 %v91
  %v436 = vunpack.c.l.b16 %v92
  %v437 = vunpack.c.h.b16 %v92
  %v438 = vunpack.c.l.b16 %v93
  %v439 = vunpack.c.h.b16 %v93
  %v440 = vunpack.c.l.b16 %v94
  %v441 = vunpack.c.h.b16 %v94
  %v442 = vunpack.c.l.b16 %v95
  %v443 = vunpack.c.h.b16 %v95
  %v444 = vunpack.c.l.b16 %v96
  %v445 = vunpack.c.h.b16 %v96
  %v446 = vunpack.c.l.b16 %v97
  %v447 = vunpack.c.h.b16 %v97
  %v448 = vunpack.c.l.b16 %v98
  %v449 = vunpack.c.h.b16 %v98
  %v450 = vunpack.c.l.b16 %v99
  %v451 = vunpack.c.h.b16 %v99
  %v452 = vunpack.c.l.b16 %v100
  %v453 = vunpack.c.h.b16 %v100
  %v454 = vunpack.c.l.b16 %v101
  %v455 = vunpack.c.h.b16 %v101
  %v456 = vunpack.c.l.b16 %v102
  %v457 = vunpack.c.h.b16 %v102
  %v458 = vunpack.c.l.b16 %v103
  %v459 = vunpack.c.h.b16 %v103
  %v460 = vunpack.c.l.b16 %v104
  %v461 = vunpack.c.h.b16 %v104
  %v462 = vunpack.c.l.b16 %v105
  %v463 = vunpack.c.h.b16 %v105
  %v464 = vunpack.c.l.b16 %v106
  %v465 = vunpack.c.h.b16 %v106
  %v466 = vunpack.c.l.b16 %v107
  %v467 = vunpack.c.h.b16 %v107
  %v468 = vunpack.c.l.b16 %v108
  %v469 = vunpack.c.h.b16 %v108
  %v470 = vunpack.c.l.b16 %v109
  %v471 = vunpack.c.h.b16 %v109
  %v472 = vunpack.c.l.b16 %v110
  %v473 = vunpack.c.h.b16 %v110
  %v474 = vunpack.c.l.b16 %v111
  %v475 = vunpack.c.h.b16 %v111
  %v476 = vunpack.c.l.b16 %v112
  %v477 = vunpack.c.h.b16 %v112
  %v478 = vpack.c.b16 %v286, %v282
  %v479 = vpack.c.b16 %v287, %v283
  %v480 = vpack.c.b16 %v288, %v284
  %v481 = vpack.c.b16 %v289, %v285
  %v482 = vpack.c.b16 %v294, %v290
  %v483 = vpack.c.b16 %v295, %v291
  %v484 = vpack.c.b16 %v296, %v292
  %v485 = vpack.c.b16 %v297, %v293
  %v486 = vpack.c.b16 %v302, %v298
  %v487 = vpack.c.b16 %v303, %v299
  %v488 = vpack.c.b16 %v304, %v300
  %v489 = vpack.c.b16 %v305, %v301
  %v490 = vpack.c.b16 %v310, %v306
  %v491 = vpack.c.b16 %v311, %v307
  %v492 = vpack.c.b16 %v312, %v308
  %v493 = vpack.c.b16 %v313, %v309
  %v494 = vpack.c.b16 %v318, %v314
  %v495 = vpack.c.b16 %v319, %v315
  %v496 = vpack.c.b16 %v320, %v316
  %v497 = vpack.c.b16 %v321, %v317
  %v498 = vpack.c.b16 %v326, %v322
  %v499 = vpack.c.b16 %v327, %v323
  %v500 = vpack.c.b16 %v328, %v324
  %v501 = vpack.c.b16 %v329, %v325
  %v502 = vpack.c.b16 %v334, %v330
  %v503 = vpack.c.b16 %v335, %v331
  %v504 = vpack.c.b16 %v336, %v332
  %v505 = vpack.c.b16 %v337, %v333
  %v506 = vpack.c.b16 %v342, %v338
  %v507 = vpack.c.b16 %v343, %v339
  %v508 = vpack.c.b16 %v344, %v340
  %v509 = vpack.c.b16 %v345, %v341
  %v510 = vpack.c.b16 %v350, %v346
  %v511 = vpack.c.b16 %v351, %v347
  %v512 = vpack.c.b16 %v352, %v348
  %v513 = vpack.c.b16 %v353, %v349
  %v514 = vpack.c.b16 %v358, %v354
  %v515 = vpack.c.b16 %v359, %v355
  %v516 = vpack.c.b16 %v360, %v356
  %v517 = vpack.c.b16 %v361, %v357
  %v518 = vpack.c.b16 %v366, %v362
  %v519 = vpack.c.b16 %v367, %v363
  %v520 = vpack.c.b16 %v368, %v364
  %v521 = vpack.c.b16 %v369, %v365
  %v522 = vpack.c.b16 %v374, %v370
  %v523 = vpack.c.b16 %v375, %v371
  %v524 = vpack.c.b16 %v376, %v372
  %v525 = vpack.c.b16 %v377, %v373
  %v526 = vpack.c.b16 %v382, %v378
  %v527 = vpack.c.b16 %v383, %v379
  %v528 = vpack.c.b16 %v384, %v380
  %v529 = vpack.c.b16 %v385, %v381
  %v530 = vpack.c.b16 %v390, %v386
  %v531 = vpack.c.b16 %v391, %v387
  %v532 = vpack.c.b16 %v392, %v388
  %v533 = vpack.c.b16 %v393, %v389
  %v534 = vpack.c.b16 %v398, %v394
  %v535 = vpack.c.b16 %v399, %v395
  %v536 = vpack.c.b16 %v400, %v396
  %v537 = vpack.c.b16 %v401, %v397
  %v538 = vpack.c.b16 %v406, %v402
  %v539 = vpack.c.b16 %v407, %v403
  %v540 = vpack.c.b16 %v408, %v404
  %v541 = vpack.c.b16 %v409, %v405
  %v542 = vpack.c.b16 %v414, %v410
  %v543 = vpack.c.b16 %v415, %v411
  %v544 = vpack.c.b16 %v416, %v412
  %v545 = vpack.c.b16 %v417, %v413
  %v546 = vpack.c.b16 %v422, %v418
  %v547 = vpack.c.b16 %v423, %v419
  %v548 = vpack.c.b16 %v424, %v420
  %v549 = vpack.c.b16 %v425, %v421
  %v550 = vpack.c.b16 %v430, %v426
  %v551 = vpack.c.b16 %v431, %v427
  %v552 = vpack.c.b16 %v432, %v428
  %v553 = vpack.c.b16 %v433, %v429
  %v554 = vpack.c.b16 %v438, %v434
  %v555 = vpack.c.b16 %v439, %v435
  %v556 = vpack.c.b16 %v440, %v436
  %v557 = vpack.c.b16 %v441, %v437
  %v558 = vpack.c.b16 %v446, %v442
  %v559 = vpack.c.b16 %v447, %v443
  %v560 = vpack.c.b16 %v448, %v444
  %v561 = vpack.c.b16 %v449, %v445
  %v562 = vpack.c.b16 %v454, %v450
  %v563 = vpack.c.b16 %v455, %v451
  %v564 = vpack.c.b16 %v456, %v452
  %v565 = vpack.c.b16 %v457, %v453
  %v566 = vpack.c.b16 %v462, %v458
  %v567 = vpack.c.b16 %v463, %v459
  %v568 = vpack.c.b16 %v464, %v460
  %v569 = vpack.c.b16 %v465, %v461
  %v570 = vpack.c.b16 %v470, %v466
  %v571 = vpack.c.b16 %v471, %v467
  %v572 = vpack.c.b16 %v472, %v468
  %v573 = vpack.c.b16 %v473, %v469
  %v574 = vpack.c.b16 %v474, %v474
  %v575 = vpack.c.b16 %v475, %v475
  %v576 = vpack.c.b16 %v476, %v476
  %v577 = vpack.c.b16 %v477, %v477
  %v742 = vunpack.c.l.b16 %v113
  %v743 = vunpack.c.l.b16 %v114
  %v744 = vunpack.c.l.b16 %v115
  %v745 = vunpack.c.l.b16 %v116
  %v746 = vunpack.c.l.b16 %v117
  %v747 = vunpack.c.l.b16 %v118
  %v748 = vunpack.c.l.b16 %v119
  %v749 = vunpack.c.l.b16 %v120
  %v750 = vunpack.c.l.b16 %v121
  %v751 = vunpack.c.l.b16 %v122
  %v752 = vunpack.c.l.b16 %v123
  %v753 = vunpack.c.l.b16 %v124
  %v754 = vunpack.c.l.b16 %v125
  %v755 = vunpack.c.l.b16 %v126
  %v756 = vunpack.c.l.b16 %v127
  %v757 = vunpack.c.l.b16 %v128
  %v758 = vunpack.c.l.b16 %v129
  %v759 = vunpack.c.l.b16 %v130
  %v760 = vunpack.c.l.b16 %v131
  %v761 = vunpack.c.l.b16 %v132
  %v762 = vunpack.c.l.b16 %v133
  %v763 = vunpack.c.l.b16 %v134
  %v764 = vunpack.c.l.b16 %v135
  %v765 = vunpack.c.l.b16 %v136
  %v766 = vunpack.c.l.b16 %v137
  %v767 = vunpack.c.l.b16 %v138
  %v768 = vunpack.c.l.b16 %v139
  %v769 = vunpack.c.l.b16 %v140
  %v770 = vunpack.c.l.b16 %v141
  %v771 = vunpack.c.l.b16 %v142
  %v772 = vunpack.c.l.b16 %v143
  %v773 = vunpack.c.l.b16 %v144
  %v774 = vunpack.c.l.b16 %v145
  %v775 = vunpack.c.l.b16 %v146
  %v776 = vunpack.c.l.b16 %v147
  %v777 = vunpack.c.l.b16 %v148
  %v778 = vunpack.c.l.b16 %v149
  %v779 = vunpack.c.l.b16 %v150
  %v780 = vunpack.c.l.b16 %v151
  %v781 = vunpack.c.l.b16 %v152
  %v782 = vunpack.c.l.b16 %v153
  %v783 = vunpack.c.l.b16 %v154
  %v784 = vunpack.c.l.b16 %v155
  %v785 = vunpack.c.l.b16 %v156
  %v786 = vunpack.c.l.b16 %v157
  %v787 = vunpack.c.l.b16 %v158
  %v788 = vunpack.c.l.b16 %v159
  %v789 = vunpack.c.l.b16 %v160
  %v790 = vunpack.c.l.b16 %v161
  %v791 = vunpack.c.l.b16 %v162
  %v792 = vunpack.c.l.b16 %v163
  %v793 = vunpack.c.l.b16 %v164
  %v794 = vunpack.c.l.b16 %v165
  %v795 = vunpack.c.l.b16 %v166
  %v796 = vunpack.c.l.b16 %v167
  %v797 = vunpack.c.l.b16 %v168
  %v798 = vunpack.c.l.b16 %v169
  %v799 = vunpack.c.l.b16 %v170
  %v800 = vunpack.c.l.b16 %v171
  %v801 = vunpack.c.l.b16 %v172
  %v802 = vunpack.c.l.b16 %v173
  %v803 = vunpack.c.l.b16 %v174
  %v804 = vunpack.c.l.b16 %v175
  %v805 = vunpack.c.l.b16 %v176
  %v806 = vpack.c.b16 %v743, %v742
  %v807 = vpack.c.b16 %v745, %v744
  %v808 = vpack.c.b16 %v747, %v746
  %v809 = vpack.c.b16 %v749, %v748
  %v810 = vpack.c.b16 %v751, %v750
  %v811 = vpack.c.b16 %v753, %v752
  %v812 = vpack.c.b16 %v755, %v754
  %v813 = vpack.c.b16 %v757, %v756
  %v814 = vpack.c.b16 %v759, %v758
  %v815 = vpack.c.b16 %v761, %v760
  %v816 = vpack.c.b16 %v763, %v762
  %v817 = vpack.c.b16 %v765, %v764
  %v818 = vpack.c.b16 %v767, %v766
  %v819 = vpack.c.b16 %v769, %v768
  %v820 = vpack.c.b16 %v771, %v770
  %v821 = vpack.c.b16 %v773, %v772
  %v822 = vpack.c.b16 %v775, %v774
  %v823 = vpack.c.b16 %v777, %v776
  %v824 = vpack.c.b16 %v779, %v778
  %v825 = vpack.c.b16 %v781, %v780
  %v826 = vpack.c.b16 %v783, %v782
  %v827 = vpack.c.b16 %v785, %v784
  %v828 = vpack.c.b16 %v787, %v786
  %v829 = vpack.c.b16 %v789, %v788
  %v830 = vpack.c.b16 %v791, %v790
  %v831 = vpack.c.b16 %v793, %v792
  %v832 = vpack.c.b16 %v795, %v794
  %v833 = vpack.c.b16 %v797, %v796
  %v834 = vpack.c.b16 %v799, %v798
  %v835 = vpack.c.b16 %v801, %v800
  %v836 = vpack.c.b16 %v803, %v802
  %v837 = vpack.c.b16 %v805, %v804
  %870 = vmatprep.subr.bf16.mxu0 0
  %871 = vmatpush1.bf16.msra.mxu0 %v813
  %872 = vmatprep.subr.bf16.mxu0 0
  %873 = vmatpush1.bf16.msra.mxu0 %v812
  %874 = vmatprep.subr.bf16.mxu0 0
  %875 = vmatpush1.bf16.msra.mxu0 %v811
  %876 = vmatprep.subr.bf16.mxu0 0
  %877 = vmatpush1.bf16.msra.mxu0 %v810
  %878 = vmatprep.subr.bf16.mxu0 0
  %879 = vmatpush1.bf16.msra.mxu0 %v809
  %880 = vmatprep.subr.bf16.mxu0 0
  %881 = vmatpush1.bf16.msra.mxu0 %v808
  %882 = vmatprep.subr.bf16.mxu0 0
  %883 = vmatpush1.bf16.msra.mxu0 %v807
  %884 = vmatprep.subr.bf16.mxu0 0
  %885 = vmatpush1.bf16.msra.mxu0 %v806
  %886 = vmatprep.subr.bf16.mxu0 0
  %887 = vmatpush2.bf16.msra.mxu0 %v821
  %888 = vmatprep.subr.bf16.mxu0 0
  %889 = vmatpush2.bf16.msra.mxu0 %v820
  %890 = vmatprep.subr.bf16.mxu0 0
  %891 = vmatpush2.bf16.msra.mxu0 %v819
  %892 = vmatprep.subr.bf16.mxu0 0
  %893 = vmatpush2.bf16.msra.mxu0 %v818
  %894 = vmatprep.subr.bf16.mxu0 0
  %895 = vmatpush2.bf16.msra.mxu0 %v817
  %896 = vmatprep.subr.bf16.mxu0 0
  %897 = vmatpush2.bf16.msra.mxu0 %v816
  %898 = vmatprep.subr.bf16.mxu0 0
  %899 = vmatpush2.bf16.msra.mxu0 %v815
  %900 = vmatprep.subr.bf16.mxu0 0
  %901 = vmatpush2.bf16.msra.mxu0 %v814
  %902 = vmatprep.mubr.bf16.mxu0 %v479
  %903 = vmatmul.mubr.bf16.gmra.mxu0 %v478
  %v904 = vpop.f32.mrf.mxu0
  %v905 = vadd.f32 %v182, %v904
  %v906 = vpop.f32.mrf.mxu0
  %v907 = vpop.f32.mrf.mxu0
  %v908 = vadd.f32 %v182, %v907
  %v909 = vpop.f32.mrf.mxu0
  %910 = vmatprep.mubr.bf16.mxu0 %v483
  %911 = vmatmul.mubr.bf16.gmra.mxu0 %v482
  %v912 = vpop.f32.mrf.mxu0
  %v913 = vadd.f32 %v182, %v912
  %v914 = vpop.f32.mrf.mxu0
  %v915 = vpop.f32.mrf.mxu0
  %v916 = vadd.f32 %v182, %v915
  %v917 = vpop.f32.mrf.mxu0
  %918 = vmatprep.mubr.bf16.mxu0 %v487
  %919 = vmatmul.mubr.bf16.gmra.mxu0 %v486
  %v920 = vpop.f32.mrf.mxu0
  %v921 = vadd.f32 %v182, %v920
  %v922 = vpop.f32.mrf.mxu0
  %v923 = vpop.f32.mrf.mxu0
  %v924 = vadd.f32 %v182, %v923
  %v925 = vpop.f32.mrf.mxu0
  %926 = vmatprep.mubr.bf16.mxu0 %v491
  %927 = vmatmul.mubr.bf16.gmra.mxu0 %v490
  %v928 = vpop.f32.mrf.mxu0
  %v929 = vadd.f32 %v182, %v928
  %v930 = vpop.f32.mrf.mxu0
  %v931 = vpop.f32.mrf.mxu0
  %v932 = vadd.f32 %v182, %v931
  %v933 = vpop.f32.mrf.mxu0
  %934 = vmatprep.mubr.bf16.mxu0 %v495
  %935 = vmatmul.mubr.bf16.gmra.mxu0 %v494
  %v936 = vpop.f32.mrf.mxu0
  %v937 = vadd.f32 %v182, %v936
  %v938 = vpop.f32.mrf.mxu0
  %v939 = vpop.f32.mrf.mxu0
  %v940 = vadd.f32 %v182, %v939
  %v941 = vpop.f32.mrf.mxu0
  %942 = vmatprep.mubr.bf16.mxu0 %v499
  %943 = vmatmul.mubr.bf16.gmra.mxu0 %v498
  %v944 = vpop.f32.mrf.mxu0
  %v945 = vadd.f32 %v182, %v944
  %v946 = vpop.f32.mrf.mxu0
  %v947 = vpop.f32.mrf.mxu0
  %v948 = vadd.f32 %v182, %v947
  %v949 = vpop.f32.mrf.mxu0
  %950 = vmatprep.mubr.bf16.mxu0 %v503
  %951 = vmatmul.mubr.bf16.gmra.mxu0 %v502
  %v952 = vpop.f32.mrf.mxu0
  %v953 = vadd.f32 %v182, %v952
  %v954 = vpop.f32.mrf.mxu0
  %v955 = vpop.f32.mrf.mxu0
  %v956 = vadd.f32 %v182, %v955
  %v957 = vpop.f32.mrf.mxu0
  %958 = vmatprep.mubr.bf16.mxu0 %v507
  %959 = vmatmul.mubr.bf16.gmra.mxu0 %v506
  %v960 = vpop.f32.mrf.mxu0
  %v961 = vadd.f32 %v182, %v960
  %v962 = vpop.f32.mrf.mxu0
  %v963 = vpop.f32.mrf.mxu0
  %v964 = vadd.f32 %v182, %v963
  %v965 = vpop.f32.mrf.mxu0
  %966 = vmatprep.mubr.bf16.mxu0 %v511
  %967 = vmatmul.mubr.bf16.gmra.mxu0 %v510
  %v968 = vpop.f32.mrf.mxu0
  %v969 = vadd.f32 %v182, %v968
  %v970 = vpop.f32.mrf.mxu0
  %v971 = vpop.f32.mrf.mxu0
  %v972 = vadd.f32 %v182, %v971
  %v973 = vpop.f32.mrf.mxu0
  %974 = vmatprep.mubr.bf16.mxu0 %v515
  %975 = vmatmul.mubr.bf16.gmra.mxu0 %v514
  %v976 = vpop.f32.mrf.mxu0
  %v977 = vadd.f32 %v182, %v976
  %v978 = vpop.f32.mrf.mxu0
  %v979 = vpop.f32.mrf.mxu0
  %v980 = vadd.f32 %v182, %v979
  %v981 = vpop.f32.mrf.mxu0
  %982 = vmatprep.mubr.bf16.mxu0 %v519
  %983 = vmatmul.mubr.bf16.gmra.mxu0 %v518
  %v984 = vpop.f32.mrf.mxu0
  %v985 = vadd.f32 %v182, %v984
  %v986 = vpop.f32.mrf.mxu0
  %v987 = vpop.f32.mrf.mxu0
  %v988 = vadd.f32 %v182, %v987
  %v989 = vpop.f32.mrf.mxu0
  %990 = vmatprep.mubr.bf16.mxu0 %v523
  %991 = vmatmul.mubr.bf16.gmra.mxu0 %v522
  %v992 = vpop.f32.mrf.mxu0
  %v993 = vadd.f32 %v182, %v992
  %v994 = vpop.f32.mrf.mxu0
  %v995 = vpop.f32.mrf.mxu0
  %v996 = vadd.f32 %v182, %v995
  %v997 = vpop.f32.mrf.mxu0
  %998 = vmatprep.mubr.bf16.mxu0 %v527
  %999 = vmatmul.mubr.bf16.gmra.mxu0 %v526
  %v1000 = vpop.f32.mrf.mxu0
  %v1001 = vadd.f32 %v182, %v1000
  %v1002 = vpop.f32.mrf.mxu0
  %v1003 = vpop.f32.mrf.mxu0
  %v1004 = vadd.f32 %v182, %v1003
  %v1005 = vpop.f32.mrf.mxu0
  %1006 = vmatprep.mubr.bf16.mxu0 %v531
  %1007 = vmatmul.mubr.bf16.gmra.mxu0 %v530
  %v1008 = vpop.f32.mrf.mxu0
  %v1009 = vadd.f32 %v182, %v1008
  %v1010 = vpop.f32.mrf.mxu0
  %v1011 = vpop.f32.mrf.mxu0
  %v1012 = vadd.f32 %v182, %v1011
  %v1013 = vpop.f32.mrf.mxu0
  %1014 = vmatprep.mubr.bf16.mxu0 %v535
  %1015 = vmatmul.mubr.bf16.gmra.mxu0 %v534
  %v1016 = vpop.f32.mrf.mxu0
  %v1017 = vadd.f32 %v182, %v1016
  %v1018 = vpop.f32.mrf.mxu0
  %v1019 = vpop.f32.mrf.mxu0
  %v1020 = vadd.f32 %v182, %v1019
  %v1021 = vpop.f32.mrf.mxu0
  %1022 = vmatprep.mubr.bf16.mxu0 %v539
  %1023 = vmatmul.mubr.bf16.gmra.mxu0 %v538
  %v1024 = vpop.f32.mrf.mxu0
  %v1025 = vadd.f32 %v182, %v1024
  %v1026 = vpop.f32.mrf.mxu0
  %v1027 = vpop.f32.mrf.mxu0
  %v1028 = vadd.f32 %v182, %v1027
  %v1029 = vpop.f32.mrf.mxu0
  %1030 = vmatprep.mubr.bf16.mxu0 %v543
  %1031 = vmatmul.mubr.bf16.gmra.mxu0 %v542
  %v1032 = vpop.f32.mrf.mxu0
  %v1033 = vadd.f32 %v182, %v1032
  %v1034 = vpop.f32.mrf.mxu0
  %v1035 = vpop.f32.mrf.mxu0
  %v1036 = vadd.f32 %v182, %v1035
  %v1037 = vpop.f32.mrf.mxu0
  %1038 = vmatprep.mubr.bf16.mxu0 %v547
  %1039 = vmatmul.mubr.bf16.gmra.mxu0 %v546
  %v1040 = vpop.f32.mrf.mxu0
  %v1041 = vadd.f32 %v182, %v1040
  %v1042 = vpop.f32.mrf.mxu0
  %v1043 = vpop.f32.mrf.mxu0
  %v1044 = vadd.f32 %v182, %v1043
  %v1045 = vpop.f32.mrf.mxu0
  %1046 = vmatprep.mubr.bf16.mxu0 %v551
  %1047 = vmatmul.mubr.bf16.gmra.mxu0 %v550
  %v1048 = vpop.f32.mrf.mxu0
  %v1049 = vadd.f32 %v182, %v1048
  %v1050 = vpop.f32.mrf.mxu0
  %v1051 = vpop.f32.mrf.mxu0
  %v1052 = vadd.f32 %v182, %v1051
  %v1053 = vpop.f32.mrf.mxu0
  %1054 = vmatprep.mubr.bf16.mxu0 %v555
  %1055 = vmatmul.mubr.bf16.gmra.mxu0 %v554
  %v1056 = vpop.f32.mrf.mxu0
  %v1057 = vadd.f32 %v182, %v1056
  %v1058 = vpop.f32.mrf.mxu0
  %v1059 = vpop.f32.mrf.mxu0
  %v1060 = vadd.f32 %v182, %v1059
  %v1061 = vpop.f32.mrf.mxu0
  %1062 = vmatprep.mubr.bf16.mxu0 %v559
  %1063 = vmatmul.mubr.bf16.gmra.mxu0 %v558
  %v1064 = vpop.f32.mrf.mxu0
  %v1065 = vadd.f32 %v182, %v1064
  %v1066 = vpop.f32.mrf.mxu0
  %v1067 = vpop.f32.mrf.mxu0
  %v1068 = vadd.f32 %v182, %v1067
  %v1069 = vpop.f32.mrf.mxu0
  %1070 = vmatprep.mubr.bf16.mxu0 %v563
  %1071 = vmatmul.mubr.bf16.gmra.mxu0 %v562
  %v1072 = vpop.f32.mrf.mxu0
  %v1073 = vadd.f32 %v182, %v1072
  %v1074 = vpop.f32.mrf.mxu0
  %v1075 = vpop.f32.mrf.mxu0
  %v1076 = vadd.f32 %v182, %v1075
  %v1077 = vpop.f32.mrf.mxu0
  %1078 = vmatprep.mubr.bf16.mxu0 %v567
  %1079 = vmatmul.mubr.bf16.gmra.mxu0 %v566
  %v1080 = vpop.f32.mrf.mxu0
  %v1081 = vadd.f32 %v182, %v1080
  %v1082 = vpop.f32.mrf.mxu0
  %v1083 = vpop.f32.mrf.mxu0
  %v1084 = vadd.f32 %v182, %v1083
  %v1085 = vpop.f32.mrf.mxu0
  %1086 = vmatprep.mubr.bf16.mxu0 %v571
  %1087 = vmatmul.mubr.bf16.gmra.mxu0 %v570
  %v1088 = vpop.f32.mrf.mxu0
  %v1089 = vadd.f32 %v182, %v1088
  %v1090 = vpop.f32.mrf.mxu0
  %v1091 = vpop.f32.mrf.mxu0
  %v1092 = vadd.f32 %v182, %v1091
  %v1093 = vpop.f32.mrf.mxu0
  %1094 = vmatprep.mubr.bf16.mxu0 %v575
  %1095 = vmatmul.mubr.bf16.gmra.mxu0 %v574
  %v1096 = vpop.f32.mrf.mxu0
  %v1097 = vadd.f32 %v182, %v1096
  %v1098 = vpop.f32.mrf.mxu0
  %v1099 = vpop.f32.mrf.mxu0
  %v1100 = vpop.f32.mrf.mxu0
  %1101 = vdwg.mxu0
  %1102 = vmatprep.subr.bf16.mxu0 0
  %1103 = vmatpush1.bf16.msra.mxu0 %v829
  %1104 = vmatprep.subr.bf16.mxu0 0
  %1105 = vmatpush1.bf16.msra.mxu0 %v828
  %1106 = vmatprep.subr.bf16.mxu0 0
  %1107 = vmatpush1.bf16.msra.mxu0 %v827
  %1108 = vmatprep.subr.bf16.mxu0 0
  %1109 = vmatpush1.bf16.msra.mxu0 %v826
  %1110 = vmatprep.subr.bf16.mxu0 0
  %1111 = vmatpush1.bf16.msra.mxu0 %v825
  %1112 = vmatprep.subr.bf16.mxu0 0
  %1113 = vmatpush1.bf16.msra.mxu0 %v824
  %1114 = vmatprep.subr.bf16.mxu0 0
  %1115 = vmatpush1.bf16.msra.mxu0 %v823
  %1116 = vmatprep.subr.bf16.mxu0 0
  %1117 = vmatpush1.bf16.msra.mxu0 %v822
  %1118 = vmatprep.subr.bf16.mxu0 0
  %1119 = vmatpush2.bf16.msra.mxu0 %v837
  %1120 = vmatprep.subr.bf16.mxu0 0
  %1121 = vmatpush2.bf16.msra.mxu0 %v836
  %1122 = vmatprep.subr.bf16.mxu0 0
  %1123 = vmatpush2.bf16.msra.mxu0 %v835
  %1124 = vmatprep.subr.bf16.mxu0 0
  %1125 = vmatpush2.bf16.msra.mxu0 %v834
  %1126 = vmatprep.subr.bf16.mxu0 0
  %1127 = vmatpush2.bf16.msra.mxu0 %v833
  %1128 = vmatprep.subr.bf16.mxu0 0
  %1129 = vmatpush2.bf16.msra.mxu0 %v832
  %1130 = vmatprep.subr.bf16.mxu0 0
  %1131 = vmatpush2.bf16.msra.mxu0 %v831
  %1132 = vmatprep.subr.bf16.mxu0 0
  %1133 = vmatpush2.bf16.msra.mxu0 %v830
  %1134 = vmatprep.mubr.bf16.mxu0 %v481
  %1135 = vmatmul.mubr.bf16.gmra.mxu0 %v480
  %v1136 = vpop.f32.mrf.mxu0
  %v1137 = vadd.f32 %v905, %v1136
  %v1138 = vpop.f32.mrf.mxu0
  %v1139 = vpop.f32.mrf.mxu0
  %v1140 = vadd.f32 %v908, %v1139
  %v1141 = vpop.f32.mrf.mxu0
  %1142 = vmatprep.mubr.bf16.mxu0 %v485
  %1143 = vmatmul.mubr.bf16.gmra.mxu0 %v484
  %v1144 = vpop.f32.mrf.mxu0
  %v1145 = vadd.f32 %v913, %v1144
  %v1146 = vpop.f32.mrf.mxu0
  %v1147 = vpop.f32.mrf.mxu0
  %v1148 = vadd.f32 %v916, %v1147
  %v1149 = vpop.f32.mrf.mxu0
  %1150 = vmatprep.mubr.bf16.mxu0 %v489
  %1151 = vmatmul.mubr.bf16.gmra.mxu0 %v488
  %v1152 = vpop.f32.mrf.mxu0
  %v1153 = vadd.f32 %v921, %v1152
  %v1154 = vpop.f32.mrf.mxu0
  %v1155 = vpop.f32.mrf.mxu0
  %v1156 = vadd.f32 %v924, %v1155
  %v1157 = vpop.f32.mrf.mxu0
  %1158 = vmatprep.mubr.bf16.mxu0 %v493
  %1159 = vmatmul.mubr.bf16.gmra.mxu0 %v492
  %v1160 = vpop.f32.mrf.mxu0
  %v1161 = vadd.f32 %v929, %v1160
  %v1162 = vpop.f32.mrf.mxu0
  %v1163 = vpop.f32.mrf.mxu0
  %v1164 = vadd.f32 %v932, %v1163
  %v1165 = vpop.f32.mrf.mxu0
  %1166 = vmatprep.mubr.bf16.mxu0 %v497
  %1167 = vmatmul.mubr.bf16.gmra.mxu0 %v496
  %v1168 = vpop.f32.mrf.mxu0
  %v1169 = vadd.f32 %v937, %v1168
  %v1170 = vpop.f32.mrf.mxu0
  %v1171 = vpop.f32.mrf.mxu0
  %v1172 = vadd.f32 %v940, %v1171
  %v1173 = vpop.f32.mrf.mxu0
  %1174 = vmatprep.mubr.bf16.mxu0 %v501
  %1175 = vmatmul.mubr.bf16.gmra.mxu0 %v500
  %v1176 = vpop.f32.mrf.mxu0
  %v1177 = vadd.f32 %v945, %v1176
  %v1178 = vpop.f32.mrf.mxu0
  %v1179 = vpop.f32.mrf.mxu0
  %v1180 = vadd.f32 %v948, %v1179
  %v1181 = vpop.f32.mrf.mxu0
  %1182 = vmatprep.mubr.bf16.mxu0 %v505
  %1183 = vmatmul.mubr.bf16.gmra.mxu0 %v504
  %v1184 = vpop.f32.mrf.mxu0
  %v1185 = vadd.f32 %v953, %v1184
  %v1186 = vpop.f32.mrf.mxu0
  %v1187 = vpop.f32.mrf.mxu0
  %v1188 = vadd.f32 %v956, %v1187
  %v1189 = vpop.f32.mrf.mxu0
  %1190 = vmatprep.mubr.bf16.mxu0 %v509
  %1191 = vmatmul.mubr.bf16.gmra.mxu0 %v508
  %v1192 = vpop.f32.mrf.mxu0
  %v1193 = vadd.f32 %v961, %v1192
  %v1194 = vpop.f32.mrf.mxu0
  %v1195 = vpop.f32.mrf.mxu0
  %v1196 = vadd.f32 %v964, %v1195
  %v1197 = vpop.f32.mrf.mxu0
  %1198 = vmatprep.mubr.bf16.mxu0 %v513
  %1199 = vmatmul.mubr.bf16.gmra.mxu0 %v512
  %v1200 = vpop.f32.mrf.mxu0
  %v1201 = vadd.f32 %v969, %v1200
  %v1202 = vpop.f32.mrf.mxu0
  %v1203 = vpop.f32.mrf.mxu0
  %v1204 = vadd.f32 %v972, %v1203
  %v1205 = vpop.f32.mrf.mxu0
  %1206 = vmatprep.mubr.bf16.mxu0 %v517
  %1207 = vmatmul.mubr.bf16.gmra.mxu0 %v516
  %v1208 = vpop.f32.mrf.mxu0
  %v1209 = vadd.f32 %v977, %v1208
  %v1210 = vpop.f32.mrf.mxu0
  %v1211 = vpop.f32.mrf.mxu0
  %v1212 = vadd.f32 %v980, %v1211
  %v1213 = vpop.f32.mrf.mxu0
  %1214 = vmatprep.mubr.bf16.mxu0 %v521
  %1215 = vmatmul.mubr.bf16.gmra.mxu0 %v520
  %v1216 = vpop.f32.mrf.mxu0
  %v1217 = vadd.f32 %v985, %v1216
  %v1218 = vpop.f32.mrf.mxu0
  %v1219 = vpop.f32.mrf.mxu0
  %v1220 = vadd.f32 %v988, %v1219
  %v1221 = vpop.f32.mrf.mxu0
  %1222 = vmatprep.mubr.bf16.mxu0 %v525
  %1223 = vmatmul.mubr.bf16.gmra.mxu0 %v524
  %v1224 = vpop.f32.mrf.mxu0
  %v1225 = vadd.f32 %v993, %v1224
  %v1226 = vpop.f32.mrf.mxu0
  %v1227 = vpop.f32.mrf.mxu0
  %v1228 = vadd.f32 %v996, %v1227
  %v1229 = vpop.f32.mrf.mxu0
  %1230 = vmatprep.mubr.bf16.mxu0 %v529
  %1231 = vmatmul.mubr.bf16.gmra.mxu0 %v528
  %v1232 = vpop.f32.mrf.mxu0
  %v1233 = vadd.f32 %v1001, %v1232
  %v1234 = vpop.f32.mrf.mxu0
  %v1235 = vpop.f32.mrf.mxu0
  %v1236 = vadd.f32 %v1004, %v1235
  %v1237 = vpop.f32.mrf.mxu0
  %1238 = vmatprep.mubr.bf16.mxu0 %v533
  %1239 = vmatmul.mubr.bf16.gmra.mxu0 %v532
  %v1240 = vpop.f32.mrf.mxu0
  %v1241 = vadd.f32 %v1009, %v1240
  %v1242 = vpop.f32.mrf.mxu0
  %v1243 = vpop.f32.mrf.mxu0
  %v1244 = vadd.f32 %v1012, %v1243
  %v1245 = vpop.f32.mrf.mxu0
  %1246 = vmatprep.mubr.bf16.mxu0 %v537
  %1247 = vmatmul.mubr.bf16.gmra.mxu0 %v536
  %v1248 = vpop.f32.mrf.mxu0
  %v1249 = vadd.f32 %v1017, %v1248
  %v1250 = vpop.f32.mrf.mxu0
  %v1251 = vpop.f32.mrf.mxu0
  %v1252 = vadd.f32 %v1020, %v1251
  %v1253 = vpop.f32.mrf.mxu0
  %1254 = vmatprep.mubr.bf16.mxu0 %v541
  %1255 = vmatmul.mubr.bf16.gmra.mxu0 %v540
  %v1256 = vpop.f32.mrf.mxu0
  %v1257 = vadd.f32 %v1025, %v1256
  %v1258 = vpop.f32.mrf.mxu0
  %v1259 = vpop.f32.mrf.mxu0
  %v1260 = vadd.f32 %v1028, %v1259
  %v1261 = vpop.f32.mrf.mxu0
  %1262 = vmatprep.mubr.bf16.mxu0 %v545
  %1263 = vmatmul.mubr.bf16.gmra.mxu0 %v544
  %v1264 = vpop.f32.mrf.mxu0
  %v1265 = vadd.f32 %v1033, %v1264
  %v1266 = vpop.f32.mrf.mxu0
  %v1267 = vpop.f32.mrf.mxu0
  %v1268 = vadd.f32 %v1036, %v1267
  %v1269 = vpop.f32.mrf.mxu0
  %1270 = vmatprep.mubr.bf16.mxu0 %v549
  %1271 = vmatmul.mubr.bf16.gmra.mxu0 %v548
  %v1272 = vpop.f32.mrf.mxu0
  %v1273 = vadd.f32 %v1041, %v1272
  %v1274 = vpop.f32.mrf.mxu0
  %v1275 = vpop.f32.mrf.mxu0
  %v1276 = vadd.f32 %v1044, %v1275
  %v1277 = vpop.f32.mrf.mxu0
  %1278 = vmatprep.mubr.bf16.mxu0 %v553
  %1279 = vmatmul.mubr.bf16.gmra.mxu0 %v552
  %v1280 = vpop.f32.mrf.mxu0
  %v1281 = vadd.f32 %v1049, %v1280
  %v1282 = vpop.f32.mrf.mxu0
  %v1283 = vpop.f32.mrf.mxu0
  %v1284 = vadd.f32 %v1052, %v1283
  %v1285 = vpop.f32.mrf.mxu0
  %1286 = vmatprep.mubr.bf16.mxu0 %v557
  %1287 = vmatmul.mubr.bf16.gmra.mxu0 %v556
  %v1288 = vpop.f32.mrf.mxu0
  %v1289 = vadd.f32 %v1057, %v1288
  %v1290 = vpop.f32.mrf.mxu0
  %v1291 = vpop.f32.mrf.mxu0
  %v1292 = vadd.f32 %v1060, %v1291
  %v1293 = vpop.f32.mrf.mxu0
  %1294 = vmatprep.mubr.bf16.mxu0 %v561
  %1295 = vmatmul.mubr.bf16.gmra.mxu0 %v560
  %v1296 = vpop.f32.mrf.mxu0
  %v1297 = vadd.f32 %v1065, %v1296
  %v1298 = vpop.f32.mrf.mxu0
  %v1299 = vpop.f32.mrf.mxu0
  %v1300 = vadd.f32 %v1068, %v1299
  %v1301 = vpop.f32.mrf.mxu0
  %1302 = vmatprep.mubr.bf16.mxu0 %v565
  %1303 = vmatmul.mubr.bf16.gmra.mxu0 %v564
  %v1304 = vpop.f32.mrf.mxu0
  %v1305 = vadd.f32 %v1073, %v1304
  %v1306 = vpop.f32.mrf.mxu0
  %v1307 = vpop.f32.mrf.mxu0
  %v1308 = vadd.f32 %v1076, %v1307
  %v1309 = vpop.f32.mrf.mxu0
  %1310 = vmatprep.mubr.bf16.mxu0 %v569
  %1311 = vmatmul.mubr.bf16.gmra.mxu0 %v568
  %v1312 = vpop.f32.mrf.mxu0
  %v1313 = vadd.f32 %v1081, %v1312
  %v1314 = vpop.f32.mrf.mxu0
  %v1315 = vpop.f32.mrf.mxu0
  %v1316 = vadd.f32 %v1084, %v1315
  %v1317 = vpop.f32.mrf.mxu0
  %1318 = vmatprep.mubr.bf16.mxu0 %v573
  %1319 = vmatmul.mubr.bf16.gmra.mxu0 %v572
  %v1320 = vpop.f32.mrf.mxu0
  %v1321 = vadd.f32 %v1089, %v1320
  %v1322 = vpop.f32.mrf.mxu0
  %v1323 = vpop.f32.mrf.mxu0
  %v1324 = vadd.f32 %v1092, %v1323
  %v1325 = vpop.f32.mrf.mxu0
  %1326 = vmatprep.mubr.bf16.mxu0 %v577
  %1327 = vmatmul.mubr.bf16.gmra.mxu0 %v576
  %v1328 = vpop.f32.mrf.mxu0
  %v1329 = vadd.f32 %v1097, %v1328
  %v1330 = vpop.f32.mrf.mxu0
  %v1331 = vpop.f32.mrf.mxu0
  %v1332 = vpop.f32.mrf.mxu0
  %1333 = vdwg.mxu0
  %v1334 = vmax.f32 %v1137, 0.0
  %v1335 = vmax.f32 %v1140, 0.0
  %v1336 = vmax.f32 %v1145, 0.0
  %v1337 = vmax.f32 %v1148, 0.0
  %v1338 = vmax.f32 %v1153, 0.0
  %v1339 = vmax.f32 %v1156, 0.0
  %v1340 = vmax.f32 %v1161, 0.0
  %v1341 = vmax.f32 %v1164, 0.0
  %v1342 = vmax.f32 %v1169, 0.0
  %v1343 = vmax.f32 %v1172, 0.0
  %v1344 = vmax.f32 %v1177, 0.0
  %v1345 = vmax.f32 %v1180, 0.0
  %v1346 = vmax.f32 %v1185, 0.0
  %v1347 = vmax.f32 %v1188, 0.0
  %v1348 = vmax.f32 %v1193, 0.0
  %v1349 = vmax.f32 %v1196, 0.0
  %v1350 = vmax.f32 %v1201, 0.0
  %v1351 = vmax.f32 %v1204, 0.0
  %v1352 = vmax.f32 %v1209, 0.0
  %v1353 = vmax.f32 %v1212, 0.0
  %v1354 = vmax.f32 %v1217, 0.0
  %v1355 = vmax.f32 %v1220, 0.0
  %v1356 = vmax.f32 %v1225, 0.0
  %v1357 = vmax.f32 %v1228, 0.0
  %v1358 = vmax.f32 %v1233, 0.0
  %v1359 = vmax.f32 %v1236, 0.0
  %v1360 = vmax.f32 %v1241, 0.0
  %v1361 = vmax.f32 %v1244, 0.0
  %v1362 = vmax.f32 %v1249, 0.0
  %v1363 = vmax.f32 %v1252, 0.0
  %v1364 = vmax.f32 %v1257, 0.0
  %v1365 = vmax.f32 %v1260, 0.0
  %v1366 = vmax.f32 %v1265, 0.0
  %v1367 = vmax.f32 %v1268, 0.0
  %v1368 = vmax.f32 %v1273, 0.0
  %v1369 = vmax.f32 %v1276, 0.0
  %v1370 = vmax.f32 %v1281, 0.0
  %v1371 = vmax.f32 %v1284, 0.0
  %v1372 = vmax.f32 %v1289, 0.0
  %v1373 = vmax.f32 %v1292, 0.0
  %v1374 = vmax.f32 %v1297, 0.0
  %v1375 = vmax.f32 %v1300, 0.0
  %v1376 = vmax.f32 %v1305, 0.0
  %v1377 = vmax.f32 %v1308, 0.0
  %v1378 = vmax.f32 %v1313, 0.0
  %v1379 = vmax.f32 %v1316, 0.0
  %v1380 = vmax.f32 %v1321, 0.0
  %v1381 = vmax.f32 %v1324, 0.0
  %v1382 = vmax.f32 %v1329, 0.0
  %v1383 = vpack.c.bf16 %v1335, %v1334
  %v1384 = vpack.c.bf16 %v1337, %v1336
  %v1385 = vpack.c.bf16 %v1339, %v1338
  %v1386 = vpack.c.bf16 %v1341, %v1340
  %v1387 = vpack.c.bf16 %v1343, %v1342
  %v1388 = vpack.c.bf16 %v1345, %v1344
  %v1389 = vpack.c.bf16 %v1347, %v1346
  %v1390 = vpack.c.bf16 %v1349, %v1348
  %v1391 = vpack.c.bf16 %v1351, %v1350
  %v1392 = vpack.c.bf16 %v1353, %v1352
  %v1393 = vpack.c.bf16 %v1355, %v1354
  %v1394 = vpack.c.bf16 %v1357, %v1356
  %v1395 = vpack.c.bf16 %v1359, %v1358
  %v1396 = vpack.c.bf16 %v1361, %v1360
  %v1397 = vpack.c.bf16 %v1363, %v1362
  %v1398 = vpack.c.bf16 %v1365, %v1364
  %v1399 = vpack.c.bf16 %v1367, %v1366
  %v1400 = vpack.c.bf16 %v1369, %v1368
  %v1401 = vpack.c.bf16 %v1371, %v1370
  %v1402 = vpack.c.bf16 %v1373, %v1372
  %v1403 = vpack.c.bf16 %v1375, %v1374
  %v1404 = vpack.c.bf16 %v1377, %v1376
  %v1405 = vpack.c.bf16 %v1379, %v1378
  %v1406 = vpack.c.bf16 %v1381, %v1380
  %v1407 = vpack.c.bf16 %v1382, %v1382
  %v1433 = vunpack.c.l.b16 %v1383
  %v1434 = vunpack.c.h.b16 %v1383
  %v1435 = vunpack.c.l.b16 %v1384
  %v1436 = vunpack.c.h.b16 %v1384
  %v1437 = vunpack.c.l.b16 %v1385
  %v1438 = vunpack.c.h.b16 %v1385
  %v1439 = vunpack.c.l.b16 %v1386
  %v1440 = vunpack.c.h.b16 %v1386
  %v1441 = vunpack.c.l.b16 %v1387
  %v1442 = vunpack.c.h.b16 %v1387
  %v1443 = vunpack.c.l.b16 %v1388
  %v1444 = vunpack.c.h.b16 %v1388
  %v1445 = vunpack.c.l.b16 %v1389
  %v1446 = vunpack.c.h.b16 %v1389
  %v1447 = vunpack.c.l.b16 %v1390
  %v1448 = vunpack.c.h.b16 %v1390
  %v1449 = vunpack.c.l.b16 %v1391
  %v1450 = vunpack.c.h.b16 %v1391
  %v1451 = vunpack.c.l.b16 %v1392
  %v1452 = vunpack.c.h.b16 %v1392
  %v1453 = vunpack.c.l.b16 %v1393
  %v1454 = vunpack.c.h.b16 %v1393
  %v1455 = vunpack.c.l.b16 %v1394
  %v1456 = vunpack.c.h.b16 %v1394
  %v1457 = vunpack.c.l.b16 %v1395
  %v1458 = vunpack.c.h.b16 %v1395
  %v1459 = vunpack.c.l.b16 %v1396
  %v1460 = vunpack.c.h.b16 %v1396
  %v1461 = vunpack.c.l.b16 %v1397
  %v1462 = vunpack.c.h.b16 %v1397
  %v1463 = vunpack.c.l.b16 %v1398
  %v1464 = vunpack.c.h.b16 %v1398
  %v1465 = vunpack.c.l.b16 %v1399
  %v1466 = vunpack.c.h.b16 %v1399
  %v1467 = vunpack.c.l.b16 %v1400
  %v1468 = vunpack.c.h.b16 %v1400
  %v1469 = vunpack.c.l.b16 %v1401
  %v1470 = vunpack.c.h.b16 %v1401
  %v1471 = vunpack.c.l.b16 %v1402
  %v1472 = vunpack.c.h.b16 %v1402
  %v1473 = vunpack.c.l.b16 %v1403
  %v1474 = vunpack.c.h.b16 %v1403
  %v1475 = vunpack.c.l.b16 %v1404
  %v1476 = vunpack.c.h.b16 %v1404
  %v1477 = vunpack.c.l.b16 %v1405
  %v1478 = vunpack.c.h.b16 %v1405
  %v1479 = vunpack.c.l.b16 %v1406
  %v1480 = vunpack.c.h.b16 %v1406
  %v1481 = vunpack.c.l.b16 %v1407
  %v1482 = vpack.c.b16 %v1433, %v1433
  %v1483 = vpack.c.b16 %v1434, %v1434
  %v1484 = vpack.c.b16 %v1435, %v1435
  %v1485 = vpack.c.b16 %v1436, %v1436
  %v1486 = vpack.c.b16 %v1437, %v1437
  %v1487 = vpack.c.b16 %v1438, %v1438
  %v1488 = vpack.c.b16 %v1439, %v1439
  %v1489 = vpack.c.b16 %v1440, %v1440
  %v1490 = vpack.c.b16 %v1441, %v1441
  %v1491 = vpack.c.b16 %v1442, %v1442
  %v1492 = vpack.c.b16 %v1443, %v1443
  %v1493 = vpack.c.b16 %v1444, %v1444
  %v1494 = vpack.c.b16 %v1445, %v1445
  %v1495 = vpack.c.b16 %v1446, %v1446
  %v1496 = vpack.c.b16 %v1447, %v1447
  %v1497 = vpack.c.b16 %v1448, %v1448
  %v1498 = vpack.c.b16 %v1449, %v1449
  %v1499 = vpack.c.b16 %v1450, %v1450
  %v1500 = vpack.c.b16 %v1451, %v1451
  %v1501 = vpack.c.b16 %v1452, %v1452
  %v1502 = vpack.c.b16 %v1453, %v1453
  %v1503 = vpack.c.b16 %v1454, %v1454
  %v1504 = vpack.c.b16 %v1455, %v1455
  %v1505 = vpack.c.b16 %v1456, %v1456
  %v1506 = vpack.c.b16 %v1457, %v1457
  %v1507 = vpack.c.b16 %v1458, %v1458
  %v1508 = vpack.c.b16 %v1459, %v1459
  %v1509 = vpack.c.b16 %v1460, %v1460
  %v1510 = vpack.c.b16 %v1461, %v1461
  %v1511 = vpack.c.b16 %v1462, %v1462
  %v1512 = vpack.c.b16 %v1463, %v1463
  %v1513 = vpack.c.b16 %v1464, %v1464
  %v1514 = vpack.c.b16 %v1465, %v1465
  %v1515 = vpack.c.b16 %v1466, %v1466
  %v1516 = vpack.c.b16 %v1467, %v1467
  %v1517 = vpack.c.b16 %v1468, %v1468
  %v1518 = vpack.c.b16 %v1469, %v1469
  %v1519 = vpack.c.b16 %v1470, %v1470
  %v1520 = vpack.c.b16 %v1471, %v1471
  %v1521 = vpack.c.b16 %v1472, %v1472
  %v1522 = vpack.c.b16 %v1473, %v1473
  %v1523 = vpack.c.b16 %v1474, %v1474
  %v1524 = vpack.c.b16 %v1475, %v1475
  %v1525 = vpack.c.b16 %v1476, %v1476
  %v1526 = vpack.c.b16 %v1477, %v1477
  %v1527 = vpack.c.b16 %v1478, %v1478
  %v1528 = vpack.c.b16 %v1479, %v1479
  %v1529 = vpack.c.b16 %v1480, %v1480
  %v1530 = vpack.c.b16 %v1481, %v1481
  %vm1580 = vcmask 519168
  %1581 = vst.msk [vmem:[%s3] sm:$0xf] %vm1580, %v1482
  %1582 = vst.msk [vmem:[%s3 + $0x4] sm:$0xf] %vm1580, %v1483
  %1583 = vst.msk [vmem:[%s3 + $0x8] sm:$0xf] %vm1580, %v1484
  %1584 = vst.msk [vmem:[%s3 + $0xc] sm:$0xf] %vm1580, %v1485
  %1585 = vst.msk [vmem:[%s3 + $0x10] sm:$0xf] %vm1580, %v1486
  %1586 = vst.msk [vmem:[%s3 + $0x14] sm:$0xf] %vm1580, %v1487
  %1587 = vst.msk [vmem:[%s3 + $0x18] sm:$0xf] %vm1580, %v1488
  %1588 = vst.msk [vmem:[%s3 + $0x1c] sm:$0xf] %vm1580, %v1489
  %1589 = vst.msk [vmem:[%s3 + $0x20] sm:$0xf] %vm1580, %v1490
  %1590 = vst.msk [vmem:[%s3 + $0x24] sm:$0xf] %vm1580, %v1491
  %1591 = vst.msk [vmem:[%s3 + $0x28] sm:$0xf] %vm1580, %v1492
  %1592 = vst.msk [vmem:[%s3 + $0x2c] sm:$0xf] %vm1580, %v1493
  %1593 = vst.msk [vmem:[%s3 + $0x30] sm:$0xf] %vm1580, %v1494
  %1594 = vst.msk [vmem:[%s3 + $0x34] sm:$0xf] %vm1580, %v1495
  %1595 = vst.msk [vmem:[%s3 + $0x38] sm:$0xf] %vm1580, %v1496
  %1596 = vst.msk [vmem:[%s3 + $0x3c] sm:$0xf] %vm1580, %v1497
  %1597 = vst.msk [vmem:[%s3 + $0x40] sm:$0xf] %vm1580, %v1498
  %1598 = vst.msk [vmem:[%s3 + $0x44] sm:$0xf] %vm1580, %v1499
  %1599 = vst.msk [vmem:[%s3 + $0x48] sm:$0xf] %vm1580, %v1500
  %1600 = vst.msk [vmem:[%s3 + $0x4c] sm:$0xf] %vm1580, %v1501
  %1601 = vst.msk [vmem:[%s3 + $0x50] sm:$0xf] %vm1580, %v1502
  %1602 = vst.msk [vmem:[%s3 + $0x54] sm:$0xf] %vm1580, %v1503
  %1603 = vst.msk [vmem:[%s3 + $0x58] sm:$0xf] %vm1580, %v1504
  %1604 = vst.msk [vmem:[%s3 + $0x5c] sm:$0xf] %vm1580, %v1505
  %1605 = vst.msk [vmem:[%s3 + $0x60] sm:$0xf] %vm1580, %v1506
  %1606 = vst.msk [vmem:[%s3 + $0x64] sm:$0xf] %vm1580, %v1507
  %1607 = vst.msk [vmem:[%s3 + $0x68] sm:$0xf] %vm1580, %v1508
  %1608 = vst.msk [vmem:[%s3 + $0x6c] sm:$0xf] %vm1580, %v1509
  %1609 = vst.msk [vmem:[%s3 + $0x70] sm:$0xf] %vm1580, %v1510
  %1610 = vst.msk [vmem:[%s3 + $0x74] sm:$0xf] %vm1580, %v1511
  %1611 = vst.msk [vmem:[%s3 + $0x78] sm:$0xf] %vm1580, %v1512
  %1612 = vst.msk [vmem:[%s3 + $0x7c] sm:$0xf] %vm1580, %v1513
  %1613 = vst.msk [vmem:[%s3 + $0x80] sm:$0xf] %vm1580, %v1514
  %1614 = vst.msk [vmem:[%s3 + $0x84] sm:$0xf] %vm1580, %v1515
  %1615 = vst.msk [vmem:[%s3 + $0x88] sm:$0xf] %vm1580, %v1516
  %1616 = vst.msk [vmem:[%s3 + $0x8c] sm:$0xf] %vm1580, %v1517
  %1617 = vst.msk [vmem:[%s3 + $0x90] sm:$0xf] %vm1580, %v1518
  %1618 = vst.msk [vmem:[%s3 + $0x94] sm:$0xf] %vm1580, %v1519
  %1619 = vst.msk [vmem:[%s3 + $0x98] sm:$0xf] %vm1580, %v1520
  %1620 = vst.msk [vmem:[%s3 + $0x9c] sm:$0xf] %vm1580, %v1521
  %1621 = vst.msk [vmem:[%s3 + $0xa0] sm:$0xf] %vm1580, %v1522
  %1622 = vst.msk [vmem:[%s3 + $0xa4] sm:$0xf] %vm1580, %v1523
  %1623 = vst.msk [vmem:[%s3 + $0xa8] sm:$0xf] %vm1580, %v1524
  %1624 = vst.msk [vmem:[%s3 + $0xac] sm:$0xf] %vm1580, %v1525
  %1625 = vst.msk [vmem:[%s3 + $0xb0] sm:$0xf] %vm1580, %v1526
  %1626 = vst.msk [vmem:[%s3 + $0xb4] sm:$0xf] %vm1580, %v1527
  %1627 = vst.msk [vmem:[%s3 + $0xb8] sm:$0xf] %vm1580, %v1528
  %1628 = vst.msk [vmem:[%s3 + $0xbc] sm:$0xf] %vm1580, %v1529
  %1629 = vst.msk [vmem:[%s3 + $0xc0] sm:$0xf] %vm1580, %v1530
  // Predicated region
  $region14: #{conv_encoder_forward.6} parent=0 // pred_check
    _
  $region15: #{conv_encoder_forward.6} parent=0 // pred_check_branch
    %1631 = sbr.rel (0) target = $region17
  $region16: #{conv_encoder_forward.6} parent=0 // pred_region
    _
  $region17: #{conv_encoder_forward.6} parent=0 // pred_fallthru
    _
  // Predicated region
  $region18: #{conv_encoder_forward.6} parent=0 // pred_check
    _
  $region19: #{conv_encoder_forward.6} parent=0 // pred_check_branch
    %1633 = sbr.rel (0) target = $region21
  $region20: #{conv_encoder_forward.6} parent=0 // pred_region
    _
  $region21: #{conv_encoder_forward.6} parent=0 // pred_fallthru
    _

// kernel: conv_encoder_forward.7
$region0: #{conv_encoder_forward.7}
  #allocation0 [shape = 'u32[]', space=smem, size = 0x4, offset = 0x4, fixed_abs, tag = 'smem constant byte address 0x4 - core index']
  #allocation1 [shape = 'u32[144,128]{1,0:T(1,128)}', space=vmem, size = 0x12000, scoped, tag = 'internal scratch']
  %s0 = inlined_call_operand.vmem [shape: bf16[72,1024], index: 0, kind: input, shape index: {}]
  %s1 = inlined_call_operand.vmem [shape: bf16[1024,128], index: 1, kind: input, shape index: {}]
  %s2 = inlined_call_operand.vmem [shape: f32[1,128], index: 2, kind: input, shape index: {}]
  %s3 = inlined_call_operand.vmem [shape: bf16[72,128], index: 3, kind: output, shape index: {}]
  %s4 = sld [smem:[#allocation0]]
  $region22: #{conv_encoder_forward.7} parent=0
    _
  %s6 = ssub.s32 1, %s4
  %s7 = scalar_select 0, %s6, %s4
  // Predicated region
  $region2: #{conv_encoder_forward.7} parent=0 // pred_check
    _
  $region3: #{conv_encoder_forward.7} parent=0 // pred_check_branch
    %9 = sbr.rel (0) target = $region5
  $region4: #{conv_encoder_forward.7} parent=0 // pred_region
    _
  $region5: #{conv_encoder_forward.7} parent=0 // pred_fallthru
    _
  // Predicated region
  $region6: #{conv_encoder_forward.7} parent=0 // pred_check
    _
  $region7: #{conv_encoder_forward.7} parent=0 // pred_check_branch
    %11 = sbr.rel (0) target = $region9
  $region8: #{conv_encoder_forward.7} parent=0 // pred_region
    _
  $region9: #{conv_encoder_forward.7} parent=0 // pred_fallthru
    _
  // Predicated region
  $region10: #{conv_encoder_forward.7} parent=0 // pred_check
    _
  $region11: #{conv_encoder_forward.7} parent=0 // pred_check_branch
    %13 = sbr.rel (0) target = $region13
  $region12: #{conv_encoder_forward.7} parent=0 // pred_region
    _
  $region13: #{conv_encoder_forward.7} parent=0 // pred_fallthru
    _
  %v15 = vld [vmem:[%s0] sm:$0xff]
  %v16 = vld [vmem:[%s0 + $0x8] sm:$0xff]
  %v17 = vld [vmem:[%s0 + $0x10] sm:$0xff]
  %v18 = vld [vmem:[%s0 + $0x18] sm:$0xff]
  %v19 = vld [vmem:[%s0 + $0x20] sm:$0xff]
  %v20 = vld [vmem:[%s0 + $0x28] sm:$0xff]
  %v21 = vld [vmem:[%s0 + $0x30] sm:$0xff]
  %v22 = vld [vmem:[%s0 + $0x38] sm:$0xff]
  %v23 = vld [vmem:[%s0 + $0x40] sm:$0xff]
  %v24 = vld [vmem:[%s0 + $0x48] sm:$0xff]
  %v25 = vld [vmem:[%s0 + $0x50] sm:$0xff]
  %v26 = vld [vmem:[%s0 + $0x58] sm:$0xff]
  %v27 = vld [vmem:[%s0 + $0x60] sm:$0xff]
  %v28 = vld [vmem:[%s0 + $0x68] sm:$0xff]
  %v29 = vld [vmem:[%s0 + $0x70] sm:$0xff]
  %v30 = vld [vmem:[%s0 + $0x78] sm:$0xff]
  %v31 = vld [vmem:[%s0 + $0x80] sm:$0xff]
  %v32 = vld [vmem:[%s0 + $0x88] sm:$0xff]
  %v33 = vld [vmem:[%s0 + $0x90] sm:$0xff]
  %v34 = vld [vmem:[%s0 + $0x98] sm:$0xff]
  %v35 = vld [vmem:[%s0 + $0xa0] sm:$0xff]
  %v36 = vld [vmem:[%s0 + $0xa8] sm:$0xff]
  %v37 = vld [vmem:[%s0 + $0xb0] sm:$0xff]
  %v38 = vld [vmem:[%s0 + $0xb8] sm:$0xff]
  %v39 = vld [vmem:[%s0 + $0xc0] sm:$0xff]
  %v40 = vld [vmem:[%s0 + $0xc8] sm:$0xff]
  %v41 = vld [vmem:[%s0 + $0xd0] sm:$0xff]
  %v42 = vld [vmem:[%s0 + $0xd8] sm:$0xff]
  %v43 = vld [vmem:[%s0 + $0xe0] sm:$0xff]
  %v44 = vld [vmem:[%s0 + $0xe8] sm:$0xff]
  %v45 = vld [vmem:[%s0 + $0xf0] sm:$0xff]
  %v46 = vld [vmem:[%s0 + $0xf8] sm:$0xff]
  %v47 = vld [vmem:[%s0 + $0x100] sm:$0xff]
  %v48 = vld [vmem:[%s0 + $0x108] sm:$0xff]
  %v49 = vld [vmem:[%s0 + $0x110] sm:$0xff]
  %v50 = vld [vmem:[%s0 + $0x118] sm:$0xff]
  %v51 = vld [vmem:[%s1] sm:$0xf]
  %v52 = vld [vmem:[%s1 + $0x4] sm:$0xf]
  %v53 = vld [vmem:[%s1 + $0x8] sm:$0xf]
  %v54 = vld [vmem:[%s1 + $0xc] sm:$0xf]
  %v55 = vld [vmem:[%s1 + $0x10] sm:$0xf]
  %v56 = vld [vmem:[%s1 + $0x14] sm:$0xf]
  %v57 = vld [vmem:[%s1 + $0x18] sm:$0xf]
  %v58 = vld [vmem:[%s1 + $0x1c] sm:$0xf]
  %v59 = vld [vmem:[%s1 + $0x20] sm:$0xf]
  %v60 = vld [vmem:[%s1 + $0x24] sm:$0xf]
  %v61 = vld [vmem:[%s1 + $0x28] sm:$0xf]
  %v62 = vld [vmem:[%s1 + $0x2c] sm:$0xf]
  %v63 = vld [vmem:[%s1 + $0x30] sm:$0xf]
  %v64 = vld [vmem:[%s1 + $0x34] sm:$0xf]
  %v65 = vld [vmem:[%s1 + $0x38] sm:$0xf]
  %v66 = vld [vmem:[%s1 + $0x3c] sm:$0xf]
  %v67 = vld [vmem:[%s1 + $0x40] sm:$0xf]
  %v68 = vld [vmem:[%s1 + $0x44] sm:$0xf]
  %v69 = vld [vmem:[%s1 + $0x48] sm:$0xf]
  %v70 = vld [vmem:[%s1 + $0x4c] sm:$0xf]
  %v71 = vld [vmem:[%s1 + $0x50] sm:$0xf]
  %v72 = vld [vmem:[%s1 + $0x54] sm:$0xf]
  %v73 = vld [vmem:[%s1 + $0x58] sm:$0xf]
  %v74 = vld [vmem:[%s1 + $0x5c] sm:$0xf]
  %v75 = vld [vmem:[%s1 + $0x60] sm:$0xf]
  %v76 = vld [vmem:[%s1 + $0x64] sm:$0xf]
  %v77 = vld [vmem:[%s1 + $0x68] sm:$0xf]
  %v78 = vld [vmem:[%s1 + $0x6c] sm:$0xf]
  %v79 = vld [vmem:[%s1 + $0x70] sm:$0xf]
  %v80 = vld [vmem:[%s1 + $0x74] sm:$0xf]
  %v81 = vld [vmem:[%s1 + $0x78] sm:$0xf]
  %v82 = vld [vmem:[%s1 + $0x7c] sm:$0xf]
  %v83 = vld [vmem:[%s1 + $0x80] sm:$0xf]
  %v84 = vld [vmem:[%s1 + $0x84] sm:$0xf]
  %v85 = vld [vmem:[%s1 + $0x88] sm:$0xf]
  %v86 = vld [vmem:[%s1 + $0x8c] sm:$0xf]
  %v87 = vld [vmem:[%s1 + $0x90] sm:$0xf]
  %v88 = vld [vmem:[%s1 + $0x94] sm:$0xf]
  %v89 = vld [vmem:[%s1 + $0x98] sm:$0xf]
  %v90 = vld [vmem:[%s1 + $0x9c] sm:$0xf]
  %v91 = vld [vmem:[%s1 + $0xa0] sm:$0xf]
  %v92 = vld [vmem:[%s1 + $0xa4] sm:$0xf]
  %v93 = vld [vmem:[%s1 + $0xa8] sm:$0xf]
  %v94 = vld [vmem:[%s1 + $0xac] sm:$0xf]
  %v95 = vld [vmem:[%s1 + $0xb0] sm:$0xf]
  %v96 = vld [vmem:[%s1 + $0xb4] sm:$0xf]
  %v97 = vld [vmem:[%s1 + $0xb8] sm:$0xf]
  %v98 = vld [vmem:[%s1 + $0xbc] sm:$0xf]
  %v99 = vld [vmem:[%s1 + $0xc0] sm:$0xf]
  %v100 = vld [vmem:[%s1 + $0xc4] sm:$0xf]
  %v101 = vld [vmem:[%s1 + $0xc8] sm:$0xf]
  %v102 = vld [vmem:[%s1 + $0xcc] sm:$0xf]
  %v103 = vld [vmem:[%s1 + $0xd0] sm:$0xf]
  %v104 = vld [vmem:[%s1 + $0xd4] sm:$0xf]
  %v105 = vld [vmem:[%s1 + $0xd8] sm:$0xf]
  %v106 = vld [vmem:[%s1 + $0xdc] sm:$0xf]
  %v107 = vld [vmem:[%s1 + $0xe0] sm:$0xf]
  %v108 = vld [vmem:[%s1 + $0xe4] sm:$0xf]
  %v109 = vld [vmem:[%s1 + $0xe8] sm:$0xf]
  %v110 = vld [vmem:[%s1 + $0xec] sm:$0xf]
  %v111 = vld [vmem:[%s1 + $0xf0] sm:$0xf]
  %v112 = vld [vmem:[%s1 + $0xf4] sm:$0xf]
  %v113 = vld [vmem:[%s1 + $0xf8] sm:$0xf]
  %v114 = vld [vmem:[%s1 + $0xfc] sm:$0xf]
  %v115 = vld [vmem:[%s1 + $0x100] sm:$0xf]
  %v116 = vld [vmem:[%s1 + $0x104] sm:$0xf]
  %v117 = vld [vmem:[%s1 + $0x108] sm:$0xf]
  %v118 = vld [vmem:[%s1 + $0x10c] sm:$0xf]
  %v119 = vld [vmem:[%s1 + $0x110] sm:$0xf]
  %v120 = vld [vmem:[%s1 + $0x114] sm:$0xf]
  %v121 = vld [vmem:[%s1 + $0x118] sm:$0xf]
  %v122 = vld [vmem:[%s1 + $0x11c] sm:$0xf]
  %v123 = vld [vmem:[%s1 + $0x120] sm:$0xf]
  %v124 = vld [vmem:[%s1 + $0x124] sm:$0xf]
  %v125 = vld [vmem:[%s1 + $0x128] sm:$0xf]
  %v126 = vld [vmem:[%s1 + $0x12c] sm:$0xf]
  %v127 = vld [vmem:[%s1 + $0x130] sm:$0xf]
  %v128 = vld [vmem:[%s1 + $0x134] sm:$0xf]
  %v129 = vld [vmem:[%s1 + $0x138] sm:$0xf]
  %v130 = vld [vmem:[%s1 + $0x13c] sm:$0xf]
  %v131 = vld [vmem:[%s1 + $0x140] sm:$0xf]
  %v132 = vld [vmem:[%s1 + $0x144] sm:$0xf]
  %v133 = vld [vmem:[%s1 + $0x148] sm:$0xf]
  %v134 = vld [vmem:[%s1 + $0x14c] sm:$0xf]
  %v135 = vld [vmem:[%s1 + $0x150] sm:$0xf]
  %v136 = vld [vmem:[%s1 + $0x154] sm:$0xf]
  %v137 = vld [vmem:[%s1 + $0x158] sm:$0xf]
  %v138 = vld [vmem:[%s1 + $0x15c] sm:$0xf]
  %v139 = vld [vmem:[%s1 + $0x160] sm:$0xf]
  %v140 = vld [vmem:[%s1 + $0x164] sm:$0xf]
  %v141 = vld [vmem:[%s1 + $0x168] sm:$0xf]
  %v142 = vld [vmem:[%s1 + $0x16c] sm:$0xf]
  %v143 = vld [vmem:[%s1 + $0x170] sm:$0xf]
  %v144 = vld [vmem:[%s1 + $0x174] sm:$0xf]
  %v145 = vld [vmem:[%s1 + $0x178] sm:$0xf]
  %v146 = vld [vmem:[%s1 + $0x17c] sm:$0xf]
  %v147 = vld [vmem:[%s1 + $0x180] sm:$0xf]
  %v148 = vld [vmem:[%s1 + $0x184] sm:$0xf]
  %v149 = vld [vmem:[%s1 + $0x188] sm:$0xf]
  %v150 = vld [vmem:[%s1 + $0x18c] sm:$0xf]
  %v151 = vld [vmem:[%s1 + $0x190] sm:$0xf]
  %v152 = vld [vmem:[%s1 + $0x194] sm:$0xf]
  %v153 = vld [vmem:[%s1 + $0x198] sm:$0xf]
  %v154 = vld [vmem:[%s1 + $0x19c] sm:$0xf]
  %v155 = vld [vmem:[%s1 + $0x1a0] sm:$0xf]
  %v156 = vld [vmem:[%s1 + $0x1a4] sm:$0xf]
  %v157 = vld [vmem:[%s1 + $0x1a8] sm:$0xf]
  %v158 = vld [vmem:[%s1 + $0x1ac] sm:$0xf]
  %v159 = vld [vmem:[%s1 + $0x1b0] sm:$0xf]
  %v160 = vld [vmem:[%s1 + $0x1b4] sm:$0xf]
  %v161 = vld [vmem:[%s1 + $0x1b8] sm:$0xf]
  %v162 = vld [vmem:[%s1 + $0x1bc] sm:$0xf]
  %v163 = vld [vmem:[%s1 + $0x1c0] sm:$0xf]
  %v164 = vld [vmem:[%s1 + $0x1c4] sm:$0xf]
  %v165 = vld [vmem:[%s1 + $0x1c8] sm:$0xf]
  %v166 = vld [vmem:[%s1 + $0x1cc] sm:$0xf]
  %v167 = vld [vmem:[%s1 + $0x1d0] sm:$0xf]
  %v168 = vld [vmem:[%s1 + $0x1d4] sm:$0xf]
  %v169 = vld [vmem:[%s1 + $0x1d8] sm:$0xf]
  %v170 = vld [vmem:[%s1 + $0x1dc] sm:$0xf]
  %v171 = vld [vmem:[%s1 + $0x1e0] sm:$0xf]
  %v172 = vld [vmem:[%s1 + $0x1e4] sm:$0xf]
  %v173 = vld [vmem:[%s1 + $0x1e8] sm:$0xf]
  %v174 = vld [vmem:[%s1 + $0x1ec] sm:$0xf]
  %v175 = vld [vmem:[%s1 + $0x1f0] sm:$0xf]
  %v176 = vld [vmem:[%s1 + $0x1f4] sm:$0xf]
  %v177 = vld [vmem:[%s1 + $0x1f8] sm:$0xf]
  %v178 = vld [vmem:[%s1 + $0x1fc] sm:$0xf]
  %v179 = vld [vmem:[%s2] sm:$0x1]
  %v181 = vlaneseq
  %v182 = vshrl.u32 %v181, 7
  %v183 = vsub.s32 0, %v182
  %v184 = vrot.slane %v179, %v183
  %v222 = vunpack.c.l.b16 %v15
  %v223 = vunpack.c.h.b16 %v15
  %v224 = vunpack.c.l.b16 %v16
  %v225 = vunpack.c.h.b16 %v16
  %v226 = vunpack.c.l.b16 %v17
  %v227 = vunpack.c.h.b16 %v17
  %v228 = vunpack.c.l.b16 %v18
  %v229 = vunpack.c.h.b16 %v18
  %v230 = vunpack.c.l.b16 %v19
  %v231 = vunpack.c.h.b16 %v19
  %v232 = vunpack.c.l.b16 %v20
  %v233 = vunpack.c.h.b16 %v20
  %v234 = vunpack.c.l.b16 %v21
  %v235 = vunpack.c.h.b16 %v21
  %v236 = vunpack.c.l.b16 %v22
  %v237 = vunpack.c.h.b16 %v22
  %v238 = vunpack.c.l.b16 %v23
  %v239 = vunpack.c.h.b16 %v23
  %v240 = vunpack.c.l.b16 %v24
  %v241 = vunpack.c.h.b16 %v24
  %v242 = vunpack.c.l.b16 %v25
  %v243 = vunpack.c.h.b16 %v25
  %v244 = vunpack.c.l.b16 %v26
  %v245 = vunpack.c.h.b16 %v26
  %v246 = vunpack.c.l.b16 %v27
  %v247 = vunpack.c.h.b16 %v27
  %v248 = vunpack.c.l.b16 %v28
  %v249 = vunpack.c.h.b16 %v28
  %v250 = vunpack.c.l.b16 %v29
  %v251 = vunpack.c.h.b16 %v29
  %v252 = vunpack.c.l.b16 %v30
  %v253 = vunpack.c.h.b16 %v30
  %v254 = vunpack.c.l.b16 %v31
  %v255 = vunpack.c.h.b16 %v31
  %v256 = vunpack.c.l.b16 %v32
  %v257 = vunpack.c.h.b16 %v32
  %v258 = vunpack.c.l.b16 %v33
  %v259 = vunpack.c.h.b16 %v33
  %v260 = vunpack.c.l.b16 %v34
  %v261 = vunpack.c.h.b16 %v34
  %v262 = vunpack.c.l.b16 %v35
  %v263 = vunpack.c.h.b16 %v35
  %v264 = vunpack.c.l.b16 %v36
  %v265 = vunpack.c.h.b16 %v36
  %v266 = vunpack.c.l.b16 %v37
  %v267 = vunpack.c.h.b16 %v37
  %v268 = vunpack.c.l.b16 %v38
  %v269 = vunpack.c.h.b16 %v38
  %v270 = vunpack.c.l.b16 %v39
  %v271 = vunpack.c.h.b16 %v39
  %v272 = vunpack.c.l.b16 %v40
  %v273 = vunpack.c.h.b16 %v40
  %v274 = vunpack.c.l.b16 %v41
  %v275 = vunpack.c.h.b16 %v41
  %v276 = vunpack.c.l.b16 %v42
  %v277 = vunpack.c.h.b16 %v42
  %v278 = vunpack.c.l.b16 %v43
  %v279 = vunpack.c.h.b16 %v43
  %v280 = vunpack.c.l.b16 %v44
  %v281 = vunpack.c.h.b16 %v44
  %v282 = vunpack.c.l.b16 %v45
  %v283 = vunpack.c.h.b16 %v45
  %v284 = vunpack.c.l.b16 %v46
  %v285 = vunpack.c.h.b16 %v46
  %v286 = vunpack.c.l.b16 %v47
  %v287 = vunpack.c.h.b16 %v47
  %v288 = vunpack.c.l.b16 %v48
  %v289 = vunpack.c.h.b16 %v48
  %v290 = vunpack.c.l.b16 %v49
  %v291 = vunpack.c.h.b16 %v49
  %v292 = vunpack.c.l.b16 %v50
  %v293 = vunpack.c.h.b16 %v50
  %v294 = vpack.c.b16 %v230, %v222
  %v295 = vpack.c.b16 %v231, %v223
  %v296 = vpack.c.b16 %v232, %v224
  %v297 = vpack.c.b16 %v233, %v225
  %v298 = vpack.c.b16 %v234, %v226
  %v299 = vpack.c.b16 %v235, %v227
  %v300 = vpack.c.b16 %v236, %v228
  %v301 = vpack.c.b16 %v237, %v229
  %v302 = vpack.c.b16 %v246, %v238
  %v303 = vpack.c.b16 %v247, %v239
  %v304 = vpack.c.b16 %v248, %v240
  %v305 = vpack.c.b16 %v249, %v241
  %v306 = vpack.c.b16 %v250, %v242
  %v307 = vpack.c.b16 %v251, %v243
  %v308 = vpack.c.b16 %v252, %v244
  %v309 = vpack.c.b16 %v253, %v245
  %v310 = vpack.c.b16 %v262, %v254
  %v311 = vpack.c.b16 %v263, %v255
  %v312 = vpack.c.b16 %v264, %v256
  %v313 = vpack.c.b16 %v265, %v257
  %v314 = vpack.c.b16 %v266, %v258
  %v315 = vpack.c.b16 %v267, %v259
  %v316 = vpack.c.b16 %v268, %v260
  %v317 = vpack.c.b16 %v269, %v261
  %v318 = vpack.c.b16 %v278, %v270
  %v319 = vpack.c.b16 %v279, %v271
  %v320 = vpack.c.b16 %v280, %v272
  %v321 = vpack.c.b16 %v281, %v273
  %v322 = vpack.c.b16 %v282, %v274
  %v323 = vpack.c.b16 %v283, %v275
  %v324 = vpack.c.b16 %v284, %v276
  %v325 = vpack.c.b16 %v285, %v277
  %v326 = vpack.c.b16 %v286, %v286
  %v327 = vpack.c.b16 %v287, %v287
  %v328 = vpack.c.b16 %v288, %v288
  %v329 = vpack.c.b16 %v289, %v289
  %v330 = vpack.c.b16 %v290, %v290
  %v331 = vpack.c.b16 %v291, %v291
  %v332 = vpack.c.b16 %v292, %v292
  %v333 = vpack.c.b16 %v293, %v293
  %v502 = vunpack.c.l.b16 %v51
  %v503 = vunpack.c.l.b16 %v52
  %v504 = vunpack.c.l.b16 %v53
  %v505 = vunpack.c.l.b16 %v54
  %v506 = vunpack.c.l.b16 %v55
  %v507 = vunpack.c.l.b16 %v56
  %v508 = vunpack.c.l.b16 %v57
  %v509 = vunpack.c.l.b16 %v58
  %v510 = vunpack.c.l.b16 %v59
  %v511 = vunpack.c.l.b16 %v60
  %v512 = vunpack.c.l.b16 %v61
  %v513 = vunpack.c.l.b16 %v62
  %v514 = vunpack.c.l.b16 %v63
  %v515 = vunpack.c.l.b16 %v64
  %v516 = vunpack.c.l.b16 %v65
  %v517 = vunpack.c.l.b16 %v66
  %v518 = vunpack.c.l.b16 %v67
  %v519 = vunpack.c.l.b16 %v68
  %v520 = vunpack.c.l.b16 %v69
  %v521 = vunpack.c.l.b16 %v70
  %v522 = vunpack.c.l.b16 %v71
  %v523 = vunpack.c.l.b16 %v72
  %v524 = vunpack.c.l.b16 %v73
  %v525 = vunpack.c.l.b16 %v74
  %v526 = vunpack.c.l.b16 %v75
  %v527 = vunpack.c.l.b16 %v76
  %v528 = vunpack.c.l.b16 %v77
  %v529 = vunpack.c.l.b16 %v78
  %v530 = vunpack.c.l.b16 %v79
  %v531 = vunpack.c.l.b16 %v80
  %v532 = vunpack.c.l.b16 %v81
  %v533 = vunpack.c.l.b16 %v82
  %v534 = vunpack.c.l.b16 %v83
  %v535 = vunpack.c.l.b16 %v84
  %v536 = vunpack.c.l.b16 %v85
  %v537 = vunpack.c.l.b16 %v86
  %v538 = vunpack.c.l.b16 %v87
  %v539 = vunpack.c.l.b16 %v88
  %v540 = vunpack.c.l.b16 %v89
  %v541 = vunpack.c.l.b16 %v90
  %v542 = vunpack.c.l.b16 %v91
  %v543 = vunpack.c.l.b16 %v92
  %v544 = vunpack.c.l.b16 %v93
  %v545 = vunpack.c.l.b16 %v94
  %v546 = vunpack.c.l.b16 %v95
  %v547 = vunpack.c.l.b16 %v96
  %v548 = vunpack.c.l.b16 %v97
  %v549 = vunpack.c.l.b16 %v98
  %v550 = vunpack.c.l.b16 %v99
  %v551 = vunpack.c.l.b16 %v100
  %v552 = vunpack.c.l.b16 %v101
  %v553 = vunpack.c.l.b16 %v102
  %v554 = vunpack.c.l.b16 %v103
  %v555 = vunpack.c.l.b16 %v104
  %v556 = vunpack.c.l.b16 %v105
  %v557 = vunpack.c.l.b16 %v106
  %v558 = vunpack.c.l.b16 %v107
  %v559 = vunpack.c.l.b16 %v108
  %v560 = vunpack.c.l.b16 %v109
  %v561 = vunpack.c.l.b16 %v110
  %v562 = vunpack.c.l.b16 %v111
  %v563 = vunpack.c.l.b16 %v112
  %v564 = vunpack.c.l.b16 %v113
  %v565 = vunpack.c.l.b16 %v114
  %v566 = vunpack.c.l.b16 %v115
  %v567 = vunpack.c.l.b16 %v116
  %v568 = vunpack.c.l.b16 %v117
  %v569 = vunpack.c.l.b16 %v118
  %v570 = vunpack.c.l.b16 %v119
  %v571 = vunpack.c.l.b16 %v120
  %v572 = vunpack.c.l.b16 %v121
  %v573 = vunpack.c.l.b16 %v122
  %v574 = vunpack.c.l.b16 %v123
  %v575 = vunpack.c.l.b16 %v124
  %v576 = vunpack.c.l.b16 %v125
  %v577 = vunpack.c.l.b16 %v126
  %v578 = vunpack.c.l.b16 %v127
  %v579 = vunpack.c.l.b16 %v128
  %v580 = vunpack.c.l.b16 %v129
  %v581 = vunpack.c.l.b16 %v130
  %v582 = vunpack.c.l.b16 %v131
  %v583 = vunpack.c.l.b16 %v132
  %v584 = vunpack.c.l.b16 %v133
  %v585 = vunpack.c.l.b16 %v134
  %v586 = vunpack.c.l.b16 %v135
  %v587 = vunpack.c.l.b16 %v136
  %v588 = vunpack.c.l.b16 %v137
  %v589 = vunpack.c.l.b16 %v138
  %v590 = vunpack.c.l.b16 %v139
  %v591 = vunpack.c.l.b16 %v140
  %v592 = vunpack.c.l.b16 %v141
  %v593 = vunpack.c.l.b16 %v142
  %v594 = vunpack.c.l.b16 %v143
  %v595 = vunpack.c.l.b16 %v144
  %v596 = vunpack.c.l.b16 %v145
  %v597 = vunpack.c.l.b16 %v146
  %v598 = vunpack.c.l.b16 %v147
  %v599 = vunpack.c.l.b16 %v148
  %v600 = vunpack.c.l.b16 %v149
  %v601 = vunpack.c.l.b16 %v150
  %v602 = vunpack.c.l.b16 %v151
  %v603 = vunpack.c.l.b16 %v152
  %v604 = vunpack.c.l.b16 %v153
  %v605 = vunpack.c.l.b16 %v154
  %v606 = vunpack.c.l.b16 %v155
  %v607 = vunpack.c.l.b16 %v156
  %v608 = vunpack.c.l.b16 %v157
  %v609 = vunpack.c.l.b16 %v158
  %v610 = vunpack.c.l.b16 %v159
  %v611 = vunpack.c.l.b16 %v160
  %v612 = vunpack.c.l.b16 %v161
  %v613 = vunpack.c.l.b16 %v162
  %v614 = vunpack.c.l.b16 %v163
  %v615 = vunpack.c.l.b16 %v164
  %v616 = vunpack.c.l.b16 %v165
  %v617 = vunpack.c.l.b16 %v166
  %v618 = vunpack.c.l.b16 %v167
  %v619 = vunpack.c.l.b16 %v168
  %v620 = vunpack.c.l.b16 %v169
  %v621 = vunpack.c.l.b16 %v170
  %v622 = vunpack.c.l.b16 %v171
  %v623 = vunpack.c.l.b16 %v172
  %v624 = vunpack.c.l.b16 %v173
  %v625 = vunpack.c.l.b16 %v174
  %v626 = vunpack.c.l.b16 %v175
  %v627 = vunpack.c.l.b16 %v176
  %v628 = vunpack.c.l.b16 %v177
  %v629 = vunpack.c.l.b16 %v178
  %v630 = vpack.c.b16 %v503, %v502
  %v631 = vpack.c.b16 %v505, %v504
  %v632 = vpack.c.b16 %v507, %v506
  %v633 = vpack.c.b16 %v509, %v508
  %v634 = vpack.c.b16 %v511, %v510
  %v635 = vpack.c.b16 %v513, %v512
  %v636 = vpack.c.b16 %v515, %v514
  %v637 = vpack.c.b16 %v517, %v516
  %v638 = vpack.c.b16 %v519, %v518
  %v639 = vpack.c.b16 %v521, %v520
  %v640 = vpack.c.b16 %v523, %v522
  %v641 = vpack.c.b16 %v525, %v524
  %v642 = vpack.c.b16 %v527, %v526
  %v643 = vpack.c.b16 %v529, %v528
  %v644 = vpack.c.b16 %v531, %v530
  %v645 = vpack.c.b16 %v533, %v532
  %v646 = vpack.c.b16 %v535, %v534
  %v647 = vpack.c.b16 %v537, %v536
  %v648 = vpack.c.b16 %v539, %v538
  %v649 = vpack.c.b16 %v541, %v540
  %v650 = vpack.c.b16 %v543, %v542
  %v651 = vpack.c.b16 %v545, %v544
  %v652 = vpack.c.b16 %v547, %v546
  %v653 = vpack.c.b16 %v549, %v548
  %v654 = vpack.c.b16 %v551, %v550
  %v655 = vpack.c.b16 %v553, %v552
  %v656 = vpack.c.b16 %v555, %v554
  %v657 = vpack.c.b16 %v557, %v556
  %v658 = vpack.c.b16 %v559, %v558
  %v659 = vpack.c.b16 %v561, %v560
  %v660 = vpack.c.b16 %v563, %v562
  %v661 = vpack.c.b16 %v565, %v564
  %v662 = vpack.c.b16 %v567, %v566
  %v663 = vpack.c.b16 %v569, %v568
  %v664 = vpack.c.b16 %v571, %v570
  %v665 = vpack.c.b16 %v573, %v572
  %v666 = vpack.c.b16 %v575, %v574
  %v667 = vpack.c.b16 %v577, %v576
  %v668 = vpack.c.b16 %v579, %v578
  %v669 = vpack.c.b16 %v581, %v580
  %v670 = vpack.c.b16 %v583, %v582
  %v671 = vpack.c.b16 %v585, %v584
  %v672 = vpack.c.b16 %v587, %v586
  %v673 = vpack.c.b16 %v589, %v588
  %v674 = vpack.c.b16 %v591, %v590
  %v675 = vpack.c.b16 %v593, %v592
  %v676 = vpack.c.b16 %v595, %v594
  %v677 = vpack.c.b16 %v597, %v596
  %v678 = vpack.c.b16 %v599, %v598
  %v679 = vpack.c.b16 %v601, %v600
  %v680 = vpack.c.b16 %v603, %v602
  %v681 = vpack.c.b16 %v605, %v604
  %v682 = vpack.c.b16 %v607, %v606
  %v683 = vpack.c.b16 %v609, %v608
  %v684 = vpack.c.b16 %v611, %v610
  %v685 = vpack.c.b16 %v613, %v612
  %v686 = vpack.c.b16 %v615, %v614
  %v687 = vpack.c.b16 %v617, %v616
  %v688 = vpack.c.b16 %v619, %v618
  %v689 = vpack.c.b16 %v621, %v620
  %v690 = vpack.c.b16 %v623, %v622
  %v691 = vpack.c.b16 %v625, %v624
  %v692 = vpack.c.b16 %v627, %v626
  %v693 = vpack.c.b16 %v629, %v628
  %758 = vmatprep.subr.bf16.mxu0 0
  %759 = vmatpush1.bf16.msra.mxu0 %v637
  %760 = vmatprep.subr.bf16.mxu0 0
  %761 = vmatpush1.bf16.msra.mxu0 %v636
  %762 = vmatprep.subr.bf16.mxu0 0
  %763 = vmatpush1.bf16.msra.mxu0 %v635
  %764 = vmatprep.subr.bf16.mxu0 0
  %765 = vmatpush1.bf16.msra.mxu0 %v634
  %766 = vmatprep.subr.bf16.mxu0 0
  %767 = vmatpush1.bf16.msra.mxu0 %v633
  %768 = vmatprep.subr.bf16.mxu0 0
  %769 = vmatpush1.bf16.msra.mxu0 %v632
  %770 = vmatprep.subr.bf16.mxu0 0
  %771 = vmatpush1.bf16.msra.mxu0 %v631
  %772 = vmatprep.subr.bf16.mxu0 0
  %773 = vmatpush1.bf16.msra.mxu0 %v630
  %774 = vmatprep.subr.bf16.mxu0 0
  %775 = vmatpush2.bf16.msra.mxu0 %v645
  %776 = vmatprep.subr.bf16.mxu0 0
  %777 = vmatpush2.bf16.msra.mxu0 %v644
  %778 = vmatprep.subr.bf16.mxu0 0
  %779 = vmatpush2.bf16.msra.mxu0 %v643
  %780 = vmatprep.subr.bf16.mxu0 0
  %781 = vmatpush2.bf16.msra.mxu0 %v642
  %782 = vmatprep.subr.bf16.mxu0 0
  %783 = vmatpush2.bf16.msra.mxu0 %v641
  %784 = vmatprep.subr.bf16.mxu0 0
  %785 = vmatpush2.bf16.msra.mxu0 %v640
  %786 = vmatprep.subr.bf16.mxu0 0
  %787 = vmatpush2.bf16.msra.mxu0 %v639
  %788 = vmatprep.subr.bf16.mxu0 0
  %789 = vmatpush2.bf16.msra.mxu0 %v638
  %790 = vmatprep.mubr.bf16.mxu0 %v295
  %791 = vmatmul.mubr.bf16.gmra.mxu0 %v294
  %v792 = vpop.f32.mrf.mxu0
  %v793 = vadd.f32 %v184, %v792
  %v794 = vpop.f32.mrf.mxu0
  %v795 = vpop.f32.mrf.mxu0
  %v796 = vadd.f32 %v184, %v795
  %v797 = vpop.f32.mrf.mxu0
  %798 = vmatprep.mubr.bf16.mxu0 %v303
  %799 = vmatmul.mubr.bf16.gmra.mxu0 %v302
  %v800 = vpop.f32.mrf.mxu0
  %v801 = vadd.f32 %v184, %v800
  %v802 = vpop.f32.mrf.mxu0
  %v803 = vpop.f32.mrf.mxu0
  %v804 = vadd.f32 %v184, %v803
  %v805 = vpop.f32.mrf.mxu0
  %806 = vmatprep.mubr.bf16.mxu0 %v311
  %807 = vmatmul.mubr.bf16.gmra.mxu0 %v310
  %v808 = vpop.f32.mrf.mxu0
  %v809 = vadd.f32 %v184, %v808
  %v810 = vpop.f32.mrf.mxu0
  %v811 = vpop.f32.mrf.mxu0
  %v812 = vadd.f32 %v184, %v811
  %v813 = vpop.f32.mrf.mxu0
  %814 = vmatprep.mubr.bf16.mxu0 %v319
  %815 = vmatmul.mubr.bf16.gmra.mxu0 %v318
  %v816 = vpop.f32.mrf.mxu0
  %v817 = vadd.f32 %v184, %v816
  %v818 = vpop.f32.mrf.mxu0
  %v819 = vpop.f32.mrf.mxu0
  %v820 = vadd.f32 %v184, %v819
  %v821 = vpop.f32.mrf.mxu0
  %822 = vmatprep.mubr.bf16.mxu0 %v327
  %823 = vmatmul.mubr.bf16.gmra.mxu0 %v326
  %v824 = vpop.f32.mrf.mxu0
  %v825 = vadd.f32 %v184, %v824
  %v826 = vpop.f32.mrf.mxu0
  %v827 = vpop.f32.mrf.mxu0
  %v828 = vpop.f32.mrf.mxu0
  %829 = vdwg.mxu0
  %830 = vmatprep.subr.bf16.mxu0 0
  %831 = vmatpush1.bf16.msra.mxu0 %v653
  %832 = vmatprep.subr.bf16.mxu0 0
  %833 = vmatpush1.bf16.msra.mxu0 %v652
  %834 = vmatprep.subr.bf16.mxu0 0
  %835 = vmatpush1.bf16.msra.mxu0 %v651
  %836 = vmatprep.subr.bf16.mxu0 0
  %837 = vmatpush1.bf16.msra.mxu0 %v650
  %838 = vmatprep.subr.bf16.mxu0 0
  %839 = vmatpush1.bf16.msra.mxu0 %v649
  %840 = vmatprep.subr.bf16.mxu0 0
  %841 = vmatpush1.bf16.msra.mxu0 %v648
  %842 = vmatprep.subr.bf16.mxu0 0
  %843 = vmatpush1.bf16.msra.mxu0 %v647
  %844 = vmatprep.subr.bf16.mxu0 0
  %845 = vmatpush1.bf16.msra.mxu0 %v646
  %846 = vmatprep.subr.bf16.mxu0 0
  %847 = vmatpush2.bf16.msra.mxu0 %v661
  %848 = vmatprep.subr.bf16.mxu0 0
  %849 = vmatpush2.bf16.msra.mxu0 %v660
  %850 = vmatprep.subr.bf16.mxu0 0
  %851 = vmatpush2.bf16.msra.mxu0 %v659
  %852 = vmatprep.subr.bf16.mxu0 0
  %853 = vmatpush2.bf16.msra.mxu0 %v658
  %854 = vmatprep.subr.bf16.mxu0 0
  %855 = vmatpush2.bf16.msra.mxu0 %v657
  %856 = vmatprep.subr.bf16.mxu0 0
  %857 = vmatpush2.bf16.msra.mxu0 %v656
  %858 = vmatprep.subr.bf16.mxu0 0
  %859 = vmatpush2.bf16.msra.mxu0 %v655
  %860 = vmatprep.subr.bf16.mxu0 0
  %861 = vmatpush2.bf16.msra.mxu0 %v654
  %862 = vmatprep.mubr.bf16.mxu0 %v297
  %863 = vmatmul.mubr.bf16.gmra.mxu0 %v296
  %v864 = vpop.f32.mrf.mxu0
  %v865 = vadd.f32 %v793, %v864
  %v866 = vpop.f32.mrf.mxu0
  %v867 = vpop.f32.mrf.mxu0
  %v868 = vadd.f32 %v796, %v867
  %v869 = vpop.f32.mrf.mxu0
  %870 = vmatprep.mubr.bf16.mxu0 %v305
  %871 = vmatmul.mubr.bf16.gmra.mxu0 %v304
  %v872 = vpop.f32.mrf.mxu0
  %v873 = vadd.f32 %v801, %v872
  %v874 = vpop.f32.mrf.mxu0
  %v875 = vpop.f32.mrf.mxu0
  %v876 = vadd.f32 %v804, %v875
  %v877 = vpop.f32.mrf.mxu0
  %878 = vmatprep.mubr.bf16.mxu0 %v313
  %879 = vmatmul.mubr.bf16.gmra.mxu0 %v312
  %v880 = vpop.f32.mrf.mxu0
  %v881 = vadd.f32 %v809, %v880
  %v882 = vpop.f32.mrf.mxu0
  %v883 = vpop.f32.mrf.mxu0
  %v884 = vadd.f32 %v812, %v883
  %v885 = vpop.f32.mrf.mxu0
  %886 = vmatprep.mubr.bf16.mxu0 %v321
  %887 = vmatmul.mubr.bf16.gmra.mxu0 %v320
  %v888 = vpop.f32.mrf.mxu0
  %v889 = vadd.f32 %v817, %v888
  %v890 = vpop.f32.mrf.mxu0
  %v891 = vpop.f32.mrf.mxu0
  %v892 = vadd.f32 %v820, %v891
  %v893 = vpop.f32.mrf.mxu0
  %894 = vmatprep.mubr.bf16.mxu0 %v329
  %895 = vmatmul.mubr.bf16.gmra.mxu0 %v328
  %v896 = vpop.f32.mrf.mxu0
  %v897 = vadd.f32 %v825, %v896
  %v898 = vpop.f32.mrf.mxu0
  %v899 = vpop.f32.mrf.mxu0
  %v900 = vpop.f32.mrf.mxu0
  %901 = vdwg.mxu0
  %902 = vmatprep.subr.bf16.mxu0 0
  %903 = vmatpush1.bf16.msra.mxu0 %v669
  %904 = vmatprep.subr.bf16.mxu0 0
  %905 = vmatpush1.bf16.msra.mxu0 %v668
  %906 = vmatprep.subr.bf16.mxu0 0
  %907 = vmatpush1.bf16.msra.mxu0 %v667
  %908 = vmatprep.subr.bf16.mxu0 0
  %909 = vmatpush1.bf16.msra.mxu0 %v666
  %910 = vmatprep.subr.bf16.mxu0 0
  %911 = vmatpush1.bf16.msra.mxu0 %v665
  %912 = vmatprep.subr.bf16.mxu0 0
  %913 = vmatpush1.bf16.msra.mxu0 %v664
  %914 = vmatprep.subr.bf16.mxu0 0
  %915 = vmatpush1.bf16.msra.mxu0 %v663
  %916 = vmatprep.subr.bf16.mxu0 0
  %917 = vmatpush1.bf16.msra.mxu0 %v662
  %918 = vmatprep.subr.bf16.mxu0 0
  %919 = vmatpush2.bf16.msra.mxu0 %v677
  %920 = vmatprep.subr.bf16.mxu0 0
  %921 = vmatpush2.bf16.msra.mxu0 %v676
  %922 = vmatprep.subr.bf16.mxu0 0
  %923 = vmatpush2.bf16.msra.mxu0 %v675
  %924 = vmatprep.subr.bf16.mxu0 0
  %925 = vmatpush2.bf16.msra.mxu0 %v674
  %926 = vmatprep.subr.bf16.mxu0 0
  %927 = vmatpush2.bf16.msra.mxu0 %v673
  %928 = vmatprep.subr.bf16.mxu0 0
  %929 = vmatpush2.bf16.msra.mxu0 %v672
  %930 = vmatprep.subr.bf16.mxu0 0
  %931 = vmatpush2.bf16.msra.mxu0 %v671
  %932 = vmatprep.subr.bf16.mxu0 0
  %933 = vmatpush2.bf16.msra.mxu0 %v670
  %934 = vmatprep.mubr.bf16.mxu0 %v299
  %935 = vmatmul.mubr.bf16.gmra.mxu0 %v298
  %v936 = vpop.f32.mrf.mxu0
  %v937 = vadd.f32 %v865, %v936
  %v938 = vpop.f32.mrf.mxu0
  %v939 = vpop.f32.mrf.mxu0
  %v940 = vadd.f32 %v868, %v939
  %v941 = vpop.f32.mrf.mxu0
  %942 = vmatprep.mubr.bf16.mxu0 %v307
  %943 = vmatmul.mubr.bf16.gmra.mxu0 %v306
  %v944 = vpop.f32.mrf.mxu0
  %v945 = vadd.f32 %v873, %v944
  %v946 = vpop.f32.mrf.mxu0
  %v947 = vpop.f32.mrf.mxu0
  %v948 = vadd.f32 %v876, %v947
  %v949 = vpop.f32.mrf.mxu0
  %950 = vmatprep.mubr.bf16.mxu0 %v315
  %951 = vmatmul.mubr.bf16.gmra.mxu0 %v314
  %v952 = vpop.f32.mrf.mxu0
  %v953 = vadd.f32 %v881, %v952
  %v954 = vpop.f32.mrf.mxu0
  %v955 = vpop.f32.mrf.mxu0
  %v956 = vadd.f32 %v884, %v955
  %v957 = vpop.f32.mrf.mxu0
  %958 = vmatprep.mubr.bf16.mxu0 %v323
  %959 = vmatmul.mubr.bf16.gmra.mxu0 %v322
  %v960 = vpop.f32.mrf.mxu0
  %v961 = vadd.f32 %v889, %v960
  %v962 = vpop.f32.mrf.mxu0
  %v963 = vpop.f32.mrf.mxu0
  %v964 = vadd.f32 %v892, %v963
  %v965 = vpop.f32.mrf.mxu0
  %966 = vmatprep.mubr.bf16.mxu0 %v331
  %967 = vmatmul.mubr.bf16.gmra.mxu0 %v330
  %v968 = vpop.f32.mrf.mxu0
  %v969 = vadd.f32 %v897, %v968
  %v970 = vpop.f32.mrf.mxu0
  %v971 = vpop.f32.mrf.mxu0
  %v972 = vpop.f32.mrf.mxu0
  %973 = vdwg.mxu0
  %974 = vmatprep.subr.bf16.mxu0 0
  %975 = vmatpush1.bf16.msra.mxu0 %v685
  %976 = vmatprep.subr.bf16.mxu0 0
  %977 = vmatpush1.bf16.msra.mxu0 %v684
  %978 = vmatprep.subr.bf16.mxu0 0
  %979 = vmatpush1.bf16.msra.mxu0 %v683
  %980 = vmatprep.subr.bf16.mxu0 0
  %981 = vmatpush1.bf16.msra.mxu0 %v682
  %982 = vmatprep.subr.bf16.mxu0 0
  %983 = vmatpush1.bf16.msra.mxu0 %v681
  %984 = vmatprep.subr.bf16.mxu0 0
  %985 = vmatpush1.bf16.msra.mxu0 %v680
  %986 = vmatprep.subr.bf16.mxu0 0
  %987 = vmatpush1.bf16.msra.mxu0 %v679
  %988 = vmatprep.subr.bf16.mxu0 0
  %989 = vmatpush1.bf16.msra.mxu0 %v678
  %990 = vmatprep.subr.bf16.mxu0 0
  %991 = vmatpush2.bf16.msra.mxu0 %v693
  %992 = vmatprep.subr.bf16.mxu0 0
  %993 = vmatpush2.bf16.msra.mxu0 %v692
  %994 = vmatprep.subr.bf16.mxu0 0
  %995 = vmatpush2.bf16.msra.mxu0 %v691
  %996 = vmatprep.subr.bf16.mxu0 0
  %997 = vmatpush2.bf16.msra.mxu0 %v690
  %998 = vmatprep.subr.bf16.mxu0 0
  %999 = vmatpush2.bf16.msra.mxu0 %v689
  %1000 = vmatprep.subr.bf16.mxu0 0
  %1001 = vmatpush2.bf16.msra.mxu0 %v688
  %1002 = vmatprep.subr.bf16.mxu0 0
  %1003 = vmatpush2.bf16.msra.mxu0 %v687
  %1004 = vmatprep.subr.bf16.mxu0 0
  %1005 = vmatpush2.bf16.msra.mxu0 %v686
  %1006 = vmatprep.mubr.bf16.mxu0 %v301
  %1007 = vmatmul.mubr.bf16.gmra.mxu0 %v300
  %v1008 = vpop.f32.mrf.mxu0
  %v1009 = vadd.f32 %v937, %v1008
  %v1010 = vpop.f32.mrf.mxu0
  %v1011 = vpop.f32.mrf.mxu0
  %v1012 = vadd.f32 %v940, %v1011
  %v1013 = vpop.f32.mrf.mxu0
  %1014 = vmatprep.mubr.bf16.mxu0 %v309
  %1015 = vmatmul.mubr.bf16.gmra.mxu0 %v308
  %v1016 = vpop.f32.mrf.mxu0
  %v1017 = vadd.f32 %v945, %v1016
  %v1018 = vpop.f32.mrf.mxu0
  %v1019 = vpop.f32.mrf.mxu0
  %v1020 = vadd.f32 %v948, %v1019
  %v1021 = vpop.f32.mrf.mxu0
  %1022 = vmatprep.mubr.bf16.mxu0 %v317
  %1023 = vmatmul.mubr.bf16.gmra.mxu0 %v316
  %v1024 = vpop.f32.mrf.mxu0
  %v1025 = vadd.f32 %v953, %v1024
  %v1026 = vpop.f32.mrf.mxu0
  %v1027 = vpop.f32.mrf.mxu0
  %v1028 = vadd.f32 %v956, %v1027
  %v1029 = vpop.f32.mrf.mxu0
  %1030 = vmatprep.mubr.bf16.mxu0 %v325
  %1031 = vmatmul.mubr.bf16.gmra.mxu0 %v324
  %v1032 = vpop.f32.mrf.mxu0
  %v1033 = vadd.f32 %v961, %v1032
  %v1034 = vpop.f32.mrf.mxu0
  %v1035 = vpop.f32.mrf.mxu0
  %v1036 = vadd.f32 %v964, %v1035
  %v1037 = vpop.f32.mrf.mxu0
  %1038 = vmatprep.mubr.bf16.mxu0 %v333
  %1039 = vmatmul.mubr.bf16.gmra.mxu0 %v332
  %v1040 = vpop.f32.mrf.mxu0
  %v1041 = vadd.f32 %v969, %v1040
  %v1042 = vpop.f32.mrf.mxu0
  %v1043 = vpop.f32.mrf.mxu0
  %v1044 = vpop.f32.mrf.mxu0
  %1045 = vdwg.mxu0
  %v1046 = vmax.f32 %v1009, 0.0
  %v1047 = vmax.f32 %v1012, 0.0
  %v1048 = vmax.f32 %v1017, 0.0
  %v1049 = vmax.f32 %v1020, 0.0
  %v1050 = vmax.f32 %v1025, 0.0
  %v1051 = vmax.f32 %v1028, 0.0
  %v1052 = vmax.f32 %v1033, 0.0
  %v1053 = vmax.f32 %v1036, 0.0
  %v1054 = vmax.f32 %v1041, 0.0
  %v1055 = vpack.c.bf16 %v1047, %v1046
  %v1056 = vpack.c.bf16 %v1049, %v1048
  %v1057 = vpack.c.bf16 %v1051, %v1050
  %v1058 = vpack.c.bf16 %v1053, %v1052
  %v1059 = vpack.c.bf16 %v1054, %v1054
  %v1065 = vunpack.c.l.b16 %v1055
  %v1066 = vunpack.c.h.b16 %v1055
  %v1067 = vunpack.c.l.b16 %v1056
  %v1068 = vunpack.c.h.b16 %v1056
  %v1069 = vunpack.c.l.b16 %v1057
  %v1070 = vunpack.c.h.b16 %v1057
  %v1071 = vunpack.c.l.b16 %v1058
  %v1072 = vunpack.c.h.b16 %v1058
  %v1073 = vunpack.c.l.b16 %v1059
  %v1074 = vpack.c.b16 %v1065, %v1065
  %v1075 = vpack.c.b16 %v1066, %v1066
  %v1076 = vpack.c.b16 %v1067, %v1067
  %v1077 = vpack.c.b16 %v1068, %v1068
  %v1078 = vpack.c.b16 %v1069, %v1069
  %v1079 = vpack.c.b16 %v1070, %v1070
  %v1080 = vpack.c.b16 %v1071, %v1071
  %v1081 = vpack.c.b16 %v1072, %v1072
  %v1082 = vpack.c.b16 %v1073, %v1073
  %1092 = vst [vmem:[%s3] sm:$0xf] %v1074
  %1093 = vst [vmem:[%s3 + $0x4] sm:$0xf] %v1075
  %1094 = vst [vmem:[%s3 + $0x8] sm:$0xf] %v1076
  %1095 = vst [vmem:[%s3 + $0xc] sm:$0xf] %v1077
  %1096 = vst [vmem:[%s3 + $0x10] sm:$0xf] %v1078
  %1097 = vst [vmem:[%s3 + $0x14] sm:$0xf] %v1079
  %1098 = vst [vmem:[%s3 + $0x18] sm:$0xf] %v1080
  %1099 = vst [vmem:[%s3 + $0x1c] sm:$0xf] %v1081
  %1100 = vst [vmem:[%s3 + $0x20] sm:$0xf] %v1082
  // Predicated region
  $region14: #{conv_encoder_forward.7} parent=0 // pred_check
    _
  $region15: #{conv_encoder_forward.7} parent=0 // pred_check_branch
    %1102 = sbr.rel (0) target = $region17
  $region16: #{conv_encoder_forward.7} parent=0 // pred_region
    _
  $region17: #{conv_encoder_forward.7} parent=0 // pred_fallthru
    _
  // Predicated region
  $region18: #{conv_encoder_forward.7} parent=0 // pred_check
    _
  $region19: #{conv_encoder_forward.7} parent=0 // pred_check_branch
    %1104 = sbr.rel (0) target = $region21
  $region20: #{conv_encoder_forward.7} parent=0 // pred_region
    _
  $region21: #{conv_encoder_forward.7} parent=0 // pred_fallthru
    _

// kernel: conv_encoder_forward.8
$region0: #{conv_encoder_forward.8}
  #allocation0 [shape = 'u32[]', space=smem, size = 0x4, offset = 0x4, fixed_abs, tag = 'smem constant byte address 0x4 - core index']
  #allocation1 [shape = 'u32[144,128]{1,0:T(1,128)}', space=vmem, size = 0x12000, scoped, tag = 'internal scratch']
  %s0 = inlined_call_operand.vmem [shape: bf16[8,2048], index: 0, kind: input, shape index: {}]
  %s1 = inlined_call_operand.vmem [shape: bf16[2048,256], index: 1, kind: input, shape index: {}]
  %s2 = inlined_call_operand.vmem [shape: f32[1,256], index: 2, kind: input, shape index: {}]
  %s3 = inlined_call_operand.vmem [shape: bf16[8,256], index: 3, kind: output, shape index: {}]
  %s4 = sld [smem:[#allocation0]]
  $region22: #{conv_encoder_forward.8} parent=0
    _
  %s6 = ssub.s32 1, %s4
  %s7 = scalar_select 0, %s6, %s4
  // Predicated region
  $region2: #{conv_encoder_forward.8} parent=0 // pred_check
    _
  $region3: #{conv_encoder_forward.8} parent=0 // pred_check_branch
    %9 = sbr.rel (0) target = $region5
  $region4: #{conv_encoder_forward.8} parent=0 // pred_region
    _
  $region5: #{conv_encoder_forward.8} parent=0 // pred_fallthru
    _
  // Predicated region
  $region6: #{conv_encoder_forward.8} parent=0 // pred_check
    _
  $region7: #{conv_encoder_forward.8} parent=0 // pred_check_branch
    %11 = sbr.rel (0) target = $region9
  $region8: #{conv_encoder_forward.8} parent=0 // pred_region
    _
  $region9: #{conv_encoder_forward.8} parent=0 // pred_fallthru
    _
  // Predicated region
  $region10: #{conv_encoder_forward.8} parent=0 // pred_check
    _
  $region11: #{conv_encoder_forward.8} parent=0 // pred_check_branch
    %13 = sbr.rel (0) target = $region13
  $region12: #{conv_encoder_forward.8} parent=0 // pred_region
    _
  $region13: #{conv_encoder_forward.8} parent=0 // pred_fallthru
    _
  %v14 = vld [vmem:[%s0] sm:$0xff]
  %v15 = vld [vmem:[%s0 + $0x8] sm:$0xff]
  %v16 = vld [vmem:[%s0 + $0x10] sm:$0xff]
  %v17 = vld [vmem:[%s0 + $0x18] sm:$0xff]
  %v18 = vld [vmem:[%s0 + $0x20] sm:$0xff]
  %v19 = vld [vmem:[%s0 + $0x28] sm:$0xff]
  %v20 = vld [vmem:[%s0 + $0x30] sm:$0xff]
  %v21 = vld [vmem:[%s0 + $0x38] sm:$0xff]
  %v22 = vld [vmem:[%s1] sm:$0xff]
  %v23 = vld [vmem:[%s1 + $0x8] sm:$0xff]
  %v24 = vld [vmem:[%s1 + $0x10] sm:$0xff]
  %v25 = vld [vmem:[%s1 + $0x18] sm:$0xff]
  %v26 = vld [vmem:[%s1 + $0x20] sm:$0xff]
  %v27 = vld [vmem:[%s1 + $0x28] sm:$0xff]
  %v28 = vld [vmem:[%s1 + $0x30] sm:$0xff]
  %v29 = vld [vmem:[%s1 + $0x38] sm:$0xff]
  %v30 = vld [vmem:[%s1 + $0x40] sm:$0xff]
  %v31 = vld [vmem:[%s1 + $0x48] sm:$0xff]
  %v32 = vld [vmem:[%s1 + $0x50] sm:$0xff]
  %v33 = vld [vmem:[%s1 + $0x58] sm:$0xff]
  %v34 = vld [vmem:[%s1 + $0x60] sm:$0xff]
  %v35 = vld [vmem:[%s1 + $0x68] sm:$0xff]
  %v36 = vld [vmem:[%s1 + $0x70] sm:$0xff]
  %v37 = vld [vmem:[%s1 + $0x78] sm:$0xff]
  %v38 = vld [vmem:[%s1 + $0x80] sm:$0xff]
  %v39 = vld [vmem:[%s1 + $0x88] sm:$0xff]
  %v40 = vld [vmem:[%s1 + $0x90] sm:$0xff]
  %v41 = vld [vmem:[%s1 + $0x98] sm:$0xff]
  %v42 = vld [vmem:[%s1 + $0xa0] sm:$0xff]
  %v43 = vld [vmem:[%s1 + $0xa8] sm:$0xff]
  %v44 = vld [vmem:[%s1 + $0xb0] sm:$0xff]
  %v45 = vld [vmem:[%s1 + $0xb8] sm:$0xff]
  %v46 = vld [vmem:[%s1 + $0xc0] sm:$0xff]
  %v47 = vld [vmem:[%s1 + $0xc8] sm:$0xff]
  %v48 = vld [vmem:[%s1 + $0xd0] sm:$0xff]
  %v49 = vld [vmem:[%s1 + $0xd8] sm:$0xff]
  %v50 = vld [vmem:[%s1 + $0xe0] sm:$0xff]
  %v51 = vld [vmem:[%s1 + $0xe8] sm:$0xff]
  %v52 = vld [vmem:[%s1 + $0xf0] sm:$0xff]
  %v53 = vld [vmem:[%s1 + $0xf8] sm:$0xff]
  %v54 = vld [vmem:[%s1 + $0x100] sm:$0xff]
  %v55 = vld [vmem:[%s1 + $0x108] sm:$0xff]
  %v56 = vld [vmem:[%s1 + $0x110] sm:$0xff]
  %v57 = vld [vmem:[%s1 + $0x118] sm:$0xff]
  %v58 = vld [vmem:[%s1 + $0x120] sm:$0xff]
  %v59 = vld [vmem:[%s1 + $0x128] sm:$0xff]
  %v60 = vld [vmem:[%s1 + $0x130] sm:$0xff]
  %v61 = vld [vmem:[%s1 + $0x138] sm:$0xff]
  %v62 = vld [vmem:[%s1 + $0x140] sm:$0xff]
  %v63 = vld [vmem:[%s1 + $0x148] sm:$0xff]
  %v64 = vld [vmem:[%s1 + $0x150] sm:$0xff]
  %v65 = vld [vmem:[%s1 + $0x158] sm:$0xff]
  %v66 = vld [vmem:[%s1 + $0x160] sm:$0xff]
  %v67 = vld [vmem:[%s1 + $0x168] sm:$0xff]
  %v68 = vld [vmem:[%s1 + $0x170] sm:$0xff]
  %v69 = vld [vmem:[%s1 + $0x178] sm:$0xff]
  %v70 = vld [vmem:[%s1 + $0x180] sm:$0xff]
  %v71 = vld [vmem:[%s1 + $0x188] sm:$0xff]
  %v72 = vld [vmem:[%s1 + $0x190] sm:$0xff]
  %v73 = vld [vmem:[%s1 + $0x198] sm:$0xff]
  %v74 = vld [vmem:[%s1 + $0x1a0] sm:$0xff]
  %v75 = vld [vmem:[%s1 + $0x1a8] sm:$0xff]
  %v76 = vld [vmem:[%s1 + $0x1b0] sm:$0xff]
  %v77 = vld [vmem:[%s1 + $0x1b8] sm:$0xff]
  %v78 = vld [vmem:[%s1 + $0x1c0] sm:$0xff]
  %v79 = vld [vmem:[%s1 + $0x1c8] sm:$0xff]
  %v80 = vld [vmem:[%s1 + $0x1d0] sm:$0xff]
  %v81 = vld [vmem:[%s1 + $0x1d8] sm:$0xff]
  %v82 = vld [vmem:[%s1 + $0x1e0] sm:$0xff]
  %v83 = vld [vmem:[%s1 + $0x1e8] sm:$0xff]
  %v84 = vld [vmem:[%s1 + $0x1f0] sm:$0xff]
  %v85 = vld [vmem:[%s1 + $0x1f8] sm:$0xff]
  %v86 = vld [vmem:[%s1 + $0x200] sm:$0xff]
  %v87 = vld [vmem:[%s1 + $0x208] sm:$0xff]
  %v88 = vld [vmem:[%s1 + $0x210] sm:$0xff]
  %v89 = vld [vmem:[%s1 + $0x218] sm:$0xff]
  %v90 = vld [vmem:[%s1 + $0x220] sm:$0xff]
  %v91 = vld [vmem:[%s1 + $0x228] sm:$0xff]
  %v92 = vld [vmem:[%s1 + $0x230] sm:$0xff]
  %v93 = vld [vmem:[%s1 + $0x238] sm:$0xff]
  %v94 = vld [vmem:[%s1 + $0x240] sm:$0xff]
  %v95 = vld [vmem:[%s1 + $0x248] sm:$0xff]
  %v96 = vld [vmem:[%s1 + $0x250] sm:$0xff]
  %v97 = vld [vmem:[%s1 + $0x258] sm:$0xff]
  %v98 = vld [vmem:[%s1 + $0x260] sm:$0xff]
  %v99 = vld [vmem:[%s1 + $0x268] sm:$0xff]
  %v100 = vld [vmem:[%s1 + $0x270] sm:$0xff]
  %v101 = vld [vmem:[%s1 + $0x278] sm:$0xff]
  %v102 = vld [vmem:[%s1 + $0x280] sm:$0xff]
  %v103 = vld [vmem:[%s1 + $0x288] sm:$0xff]
  %v104 = vld [vmem:[%s1 + $0x290] sm:$0xff]
  %v105 = vld [vmem:[%s1 + $0x298] sm:$0xff]
  %v106 = vld [vmem:[%s1 + $0x2a0] sm:$0xff]
  %v107 = vld [vmem:[%s1 + $0x2a8] sm:$0xff]
  %v108 = vld [vmem:[%s1 + $0x2b0] sm:$0xff]
  %v109 = vld [vmem:[%s1 + $0x2b8] sm:$0xff]
  %v110 = vld [vmem:[%s1 + $0x2c0] sm:$0xff]
  %v111 = vld [vmem:[%s1 + $0x2c8] sm:$0xff]
  %v112 = vld [vmem:[%s1 + $0x2d0] sm:$0xff]
  %v113 = vld [vmem:[%s1 + $0x2d8] sm:$0xff]
  %v114 = vld [vmem:[%s1 + $0x2e0] sm:$0xff]
  %v115 = vld [vmem:[%s1 + $0x2e8] sm:$0xff]
  %v116 = vld [vmem:[%s1 + $0x2f0] sm:$0xff]
  %v117 = vld [vmem:[%s1 + $0x2f8] sm:$0xff]
  %v118 = vld [vmem:[%s1 + $0x300] sm:$0xff]
  %v119 = vld [vmem:[%s1 + $0x308] sm:$0xff]
  %v120 = vld [vmem:[%s1 + $0x310] sm:$0xff]
  %v121 = vld [vmem:[%s1 + $0x318] sm:$0xff]
  %v122 = vld [vmem:[%s1 + $0x320] sm:$0xff]
  %v123 = vld [vmem:[%s1 + $0x328] sm:$0xff]
  %v124 = vld [vmem:[%s1 + $0x330] sm:$0xff]
  %v125 = vld [vmem:[%s1 + $0x338] sm:$0xff]
  %v126 = vld [vmem:[%s1 + $0x340] sm:$0xff]
  %v127 = vld [vmem:[%s1 + $0x348] sm:$0xff]
  %v128 = vld [vmem:[%s1 + $0x350] sm:$0xff]
  %v129 = vld [vmem:[%s1 + $0x358] sm:$0xff]
  %v130 = vld [vmem:[%s1 + $0x360] sm:$0xff]
  %v131 = vld [vmem:[%s1 + $0x368] sm:$0xff]
  %v132 = vld [vmem:[%s1 + $0x370] sm:$0xff]
  %v133 = vld [vmem:[%s1 + $0x378] sm:$0xff]
  %v134 = vld [vmem:[%s1 + $0x380] sm:$0xff]
  %v135 = vld [vmem:[%s1 + $0x388] sm:$0xff]
  %v136 = vld [vmem:[%s1 + $0x390] sm:$0xff]
  %v137 = vld [vmem:[%s1 + $0x398] sm:$0xff]
  %v138 = vld [vmem:[%s1 + $0x3a0] sm:$0xff]
  %v139 = vld [vmem:[%s1 + $0x3a8] sm:$0xff]
  %v140 = vld [vmem:[%s1 + $0x3b0] sm:$0xff]
  %v141 = vld [vmem:[%s1 + $0x3b8] sm:$0xff]
  %v142 = vld [vmem:[%s1 + $0x3c0] sm:$0xff]
  %v143 = vld [vmem:[%s1 + $0x3c8] sm:$0xff]
  %v144 = vld [vmem:[%s1 + $0x3d0] sm:$0xff]
  %v145 = vld [vmem:[%s1 + $0x3d8] sm:$0xff]
  %v146 = vld [vmem:[%s1 + $0x3e0] sm:$0xff]
  %v147 = vld [vmem:[%s1 + $0x3e8] sm:$0xff]
  %v148 = vld [vmem:[%s1 + $0x3f0] sm:$0xff]
  %v149 = vld [vmem:[%s1 + $0x3f8] sm:$0xff]
  %v150 = vld [vmem:[%s1 + $0x400] sm:$0xff]
  %v151 = vld [vmem:[%s1 + $0x408] sm:$0xff]
  %v152 = vld [vmem:[%s1 + $0x410] sm:$0xff]
  %v153 = vld [vmem:[%s1 + $0x418] sm:$0xff]
  %v154 = vld [vmem:[%s1 + $0x420] sm:$0xff]
  %v155 = vld [vmem:[%s1 + $0x428] sm:$0xff]
  %v156 = vld [vmem:[%s1 + $0x430] sm:$0xff]
  %v157 = vld [vmem:[%s1 + $0x438] sm:$0xff]
  %v158 = vld [vmem:[%s1 + $0x440] sm:$0xff]
  %v159 = vld [vmem:[%s1 + $0x448] sm:$0xff]
  %v160 = vld [vmem:[%s1 + $0x450] sm:$0xff]
  %v161 = vld [vmem:[%s1 + $0x458] sm:$0xff]
  %v162 = vld [vmem:[%s1 + $0x460] sm:$0xff]
  %v163 = vld [vmem:[%s1 + $0x468] sm:$0xff]
  %v164 = vld [vmem:[%s1 + $0x470] sm:$0xff]
  %v165 = vld [vmem:[%s1 + $0x478] sm:$0xff]
  %v166 = vld [vmem:[%s1 + $0x480] sm:$0xff]
  %v167 = vld [vmem:[%s1 + $0x488] sm:$0xff]
  %v168 = vld [vmem:[%s1 + $0x490] sm:$0xff]
  %v169 = vld [vmem:[%s1 + $0x498] sm:$0xff]
  %v170 = vld [vmem:[%s1 + $0x4a0] sm:$0xff]
  %v171 = vld [vmem:[%s1 + $0x4a8] sm:$0xff]
  %v172 = vld [vmem:[%s1 + $0x4b0] sm:$0xff]
  %v173 = vld [vmem:[%s1 + $0x4b8] sm:$0xff]
  %v174 = vld [vmem:[%s1 + $0x4c0] sm:$0xff]
  %v175 = vld [vmem:[%s1 + $0x4c8] sm:$0xff]
  %v176 = vld [vmem:[%s1 + $0x4d0] sm:$0xff]
  %v177 = vld [vmem:[%s1 + $0x4d8] sm:$0xff]
  %v178 = vld [vmem:[%s1 + $0x4e0] sm:$0xff]
  %v179 = vld [vmem:[%s1 + $0x4e8] sm:$0xff]
  %v180 = vld [vmem:[%s1 + $0x4f0] sm:$0xff]
  %v181 = vld [vmem:[%s1 + $0x4f8] sm:$0xff]
  %v182 = vld [vmem:[%s1 + $0x500] sm:$0xff]
  %v183 = vld [vmem:[%s1 + $0x508] sm:$0xff]
  %v184 = vld [vmem:[%s1 + $0x510] sm:$0xff]
  %v185 = vld [vmem:[%s1 + $0x518] sm:$0xff]
  %v186 = vld [vmem:[%s1 + $0x520] sm:$0xff]
  %v187 = vld [vmem:[%s1 + $0x528] sm:$0xff]
  %v188 = vld [vmem:[%s1 + $0x530] sm:$0xff]
  %v189 = vld [vmem:[%s1 + $0x538] sm:$0xff]
  %v190 = vld [vmem:[%s1 + $0x540] sm:$0xff]
  %v191 = vld [vmem:[%s1 + $0x548] sm:$0xff]
  %v192 = vld [vmem:[%s1 + $0x550] sm:$0xff]
  %v193 = vld [vmem:[%s1 + $0x558] sm:$0xff]
  %v194 = vld [vmem:[%s1 + $0x560] sm:$0xff]
  %v195 = vld [vmem:[%s1 + $0x568] sm:$0xff]
  %v196 = vld [vmem:[%s1 + $0x570] sm:$0xff]
  %v197 = vld [vmem:[%s1 + $0x578] sm:$0xff]
  %v198 = vld [vmem:[%s1 + $0x580] sm:$0xff]
  %v199 = vld [vmem:[%s1 + $0x588] sm:$0xff]
  %v200 = vld [vmem:[%s1 + $0x590] sm:$0xff]
  %v201 = vld [vmem:[%s1 + $0x598] sm:$0xff]
  %v202 = vld [vmem:[%s1 + $0x5a0] sm:$0xff]
  %v203 = vld [vmem:[%s1 + $0x5a8] sm:$0xff]
  %v204 = vld [vmem:[%s1 + $0x5b0] sm:$0xff]
  %v205 = vld [vmem:[%s1 + $0x5b8] sm:$0xff]
  %v206 = vld [vmem:[%s1 + $0x5c0] sm:$0xff]
  %v207 = vld [vmem:[%s1 + $0x5c8] sm:$0xff]
  %v208 = vld [vmem:[%s1 + $0x5d0] sm:$0xff]
  %v209 = vld [vmem:[%s1 + $0x5d8] sm:$0xff]
  %v210 = vld [vmem:[%s1 + $0x5e0] sm:$0xff]
  %v211 = vld [vmem:[%s1 + $0x5e8] sm:$0xff]
  %v212 = vld [vmem:[%s1 + $0x5f0] sm:$0xff]
  %v213 = vld [vmem:[%s1 + $0x5f8] sm:$0xff]
  %v214 = vld [vmem:[%s1 + $0x600] sm:$0xff]
  %v215 = vld [vmem:[%s1 + $0x608] sm:$0xff]
  %v216 = vld [vmem:[%s1 + $0x610] sm:$0xff]
  %v217 = vld [vmem:[%s1 + $0x618] sm:$0xff]
  %v218 = vld [vmem:[%s1 + $0x620] sm:$0xff]
  %v219 = vld [vmem:[%s1 + $0x628] sm:$0xff]
  %v220 = vld [vmem:[%s1 + $0x630] sm:$0xff]
  %v221 = vld [vmem:[%s1 + $0x638] sm:$0xff]
  %v222 = vld [vmem:[%s1 + $0x640] sm:$0xff]
  %v223 = vld [vmem:[%s1 + $0x648] sm:$0xff]
  %v224 = vld [vmem:[%s1 + $0x650] sm:$0xff]
  %v225 = vld [vmem:[%s1 + $0x658] sm:$0xff]
  %v226 = vld [vmem:[%s1 + $0x660] sm:$0xff]
  %v227 = vld [vmem:[%s1 + $0x668] sm:$0xff]
  %v228 = vld [vmem:[%s1 + $0x670] sm:$0xff]
  %v229 = vld [vmem:[%s1 + $0x678] sm:$0xff]
  %v230 = vld [vmem:[%s1 + $0x680] sm:$0xff]
  %v231 = vld [vmem:[%s1 + $0x688] sm:$0xff]
  %v232 = vld [vmem:[%s1 + $0x690] sm:$0xff]
  %v233 = vld [vmem:[%s1 + $0x698] sm:$0xff]
  %v234 = vld [vmem:[%s1 + $0x6a0] sm:$0xff]
  %v235 = vld [vmem:[%s1 + $0x6a8] sm:$0xff]
  %v236 = vld [vmem:[%s1 + $0x6b0] sm:$0xff]
  %v237 = vld [vmem:[%s1 + $0x6b8] sm:$0xff]
  %v238 = vld [vmem:[%s1 + $0x6c0] sm:$0xff]
  %v239 = vld [vmem:[%s1 + $0x6c8] sm:$0xff]
  %v240 = vld [vmem:[%s1 + $0x6d0] sm:$0xff]
  %v241 = vld [vmem:[%s1 + $0x6d8] sm:$0xff]
  %v242 = vld [vmem:[%s1 + $0x6e0] sm:$0xff]
  %v243 = vld [vmem:[%s1 + $0x6e8] sm:$0xff]
  %v244 = vld [vmem:[%s1 + $0x6f0] sm:$0xff]
  %v245 = vld [vmem:[%s1 + $0x6f8] sm:$0xff]
  %v246 = vld [vmem:[%s1 + $0x700] sm:$0xff]
  %v247 = vld [vmem:[%s1 + $0x708] sm:$0xff]
  %v248 = vld [vmem:[%s1 + $0x710] sm:$0xff]
  %v249 = vld [vmem:[%s1 + $0x718] sm:$0xff]
  %v250 = vld [vmem:[%s1 + $0x720] sm:$0xff]
  %v251 = vld [vmem:[%s1 + $0x728] sm:$0xff]
  %v252 = vld [vmem:[%s1 + $0x730] sm:$0xff]
  %v253 = vld [vmem:[%s1 + $0x738] sm:$0xff]
  %v254 = vld [vmem:[%s1 + $0x740] sm:$0xff]
  %v255 = vld [vmem:[%s1 + $0x748] sm:$0xff]
  %v256 = vld [vmem:[%s1 + $0x750] sm:$0xff]
  %v257 = vld [vmem:[%s1 + $0x758] sm:$0xff]
  %v258 = vld [vmem:[%s1 + $0x760] sm:$0xff]
  %v259 = vld [vmem:[%s1 + $0x768] sm:$0xff]
  %v260 = vld [vmem:[%s1 + $0x770] sm:$0xff]
  %v261 = vld [vmem:[%s1 + $0x778] sm:$0xff]
  %v262 = vld [vmem:[%s1 + $0x780] sm:$0xff]
  %v263 = vld [vmem:[%s1 + $0x788] sm:$0xff]
  %v264 = vld [vmem:[%s1 + $0x790] sm:$0xff]
  %v265 = vld [vmem:[%s1 + $0x798] sm:$0xff]
  %v266 = vld [vmem:[%s1 + $0x7a0] sm:$0xff]
  %v267 = vld [vmem:[%s1 + $0x7a8] sm:$0xff]
  %v268 = vld [vmem:[%s1 + $0x7b0] sm:$0xff]
  %v269 = vld [vmem:[%s1 + $0x7b8] sm:$0xff]
  %v270 = vld [vmem:[%s1 + $0x7c0] sm:$0xff]
  %v271 = vld [vmem:[%s1 + $0x7c8] sm:$0xff]
  %v272 = vld [vmem:[%s1 + $0x7d0] sm:$0xff]
  %v273 = vld [vmem:[%s1 + $0x7d8] sm:$0xff]
  %v274 = vld [vmem:[%s1 + $0x7e0] sm:$0xff]
  %v275 = vld [vmem:[%s1 + $0x7e8] sm:$0xff]
  %v276 = vld [vmem:[%s1 + $0x7f0] sm:$0xff]
  %v277 = vld [vmem:[%s1 + $0x7f8] sm:$0xff]
  %v278 = vld [vmem:[%s2] sm:$0x3]
  %v280 = vlaneseq
  %v281 = vshrl.u32 %v280, 7
  %v282 = vsub.s32 0, %v281
  %v283 = vrot.slane %v278, %v282
  %v284 = vlaneseq
  %v285 = vshrl.u32 %v284, 7
  %v286 = vsub.s32 1, %v285
  %v287 = vrot.slane %v278, %v286
  %v298 = vunpack.c.l.b16 %v14
  %v299 = vunpack.c.h.b16 %v14
  %v300 = vunpack.c.l.b16 %v15
  %v301 = vunpack.c.h.b16 %v15
  %v302 = vunpack.c.l.b16 %v16
  %v303 = vunpack.c.h.b16 %v16
  %v304 = vunpack.c.l.b16 %v17
  %v305 = vunpack.c.h.b16 %v17
  %v306 = vunpack.c.l.b16 %v18
  %v307 = vunpack.c.h.b16 %v18
  %v308 = vunpack.c.l.b16 %v19
  %v309 = vunpack.c.h.b16 %v19
  %v310 = vunpack.c.l.b16 %v20
  %v311 = vunpack.c.h.b16 %v20
  %v312 = vunpack.c.l.b16 %v21
  %v313 = vunpack.c.h.b16 %v21
  %v314 = vpack.c.b16 %v298, %v298
  %v315 = vpack.c.b16 %v299, %v299
  %v316 = vpack.c.b16 %v300, %v300
  %v317 = vpack.c.b16 %v301, %v301
  %v318 = vpack.c.b16 %v302, %v302
  %v319 = vpack.c.b16 %v303, %v303
  %v320 = vpack.c.b16 %v304, %v304
  %v321 = vpack.c.b16 %v305, %v305
  %v322 = vpack.c.b16 %v306, %v306
  %v323 = vpack.c.b16 %v307, %v307
  %v324 = vpack.c.b16 %v308, %v308
  %v325 = vpack.c.b16 %v309, %v309
  %v326 = vpack.c.b16 %v310, %v310
  %v327 = vpack.c.b16 %v311, %v311
  %v328 = vpack.c.b16 %v312, %v312
  %v329 = vpack.c.b16 %v313, %v313
  %v602 = vunpack.c.l.b16 %v22
  %v603 = vunpack.c.h.b16 %v22
  %v604 = vunpack.c.l.b16 %v23
  %v605 = vunpack.c.h.b16 %v23
  %v606 = vunpack.c.l.b16 %v24
  %v607 = vunpack.c.h.b16 %v24
  %v608 = vunpack.c.l.b16 %v25
  %v609 = vunpack.c.h.b16 %v25
  %v610 = vunpack.c.l.b16 %v26
  %v611 = vunpack.c.h.b16 %v26
  %v612 = vunpack.c.l.b16 %v27
  %v613 = vunpack.c.h.b16 %v27
  %v614 = vunpack.c.l.b16 %v28
  %v615 = vunpack.c.h.b16 %v28
  %v616 = vunpack.c.l.b16 %v29
  %v617 = vunpack.c.h.b16 %v29
  %v618 = vunpack.c.l.b16 %v30
  %v619 = vunpack.c.h.b16 %v30
  %v620 = vunpack.c.l.b16 %v31
  %v621 = vunpack.c.h.b16 %v31
  %v622 = vunpack.c.l.b16 %v32
  %v623 = vunpack.c.h.b16 %v32
  %v624 = vunpack.c.l.b16 %v33
  %v625 = vunpack.c.h.b16 %v33
  %v626 = vunpack.c.l.b16 %v34
  %v627 = vunpack.c.h.b16 %v34
  %v628 = vunpack.c.l.b16 %v35
  %v629 = vunpack.c.h.b16 %v35
  %v630 = vunpack.c.l.b16 %v36
  %v631 = vunpack.c.h.b16 %v36
  %v632 = vunpack.c.l.b16 %v37
  %v633 = vunpack.c.h.b16 %v37
  %v634 = vunpack.c.l.b16 %v38
  %v635 = vunpack.c.h.b16 %v38
  %v636 = vunpack.c.l.b16 %v39
  %v637 = vunpack.c.h.b16 %v39
  %v638 = vunpack.c.l.b16 %v40
  %v639 = vunpack.c.h.b16 %v40
  %v640 = vunpack.c.l.b16 %v41
  %v641 = vunpack.c.h.b16 %v41
  %v642 = vunpack.c.l.b16 %v42
  %v643 = vunpack.c.h.b16 %v42
  %v644 = vunpack.c.l.b16 %v43
  %v645 = vunpack.c.h.b16 %v43
  %v646 = vunpack.c.l.b16 %v44
  %v647 = vunpack.c.h.b16 %v44
  %v648 = vunpack.c.l.b16 %v45
  %v649 = vunpack.c.h.b16 %v45
  %v650 = vunpack.c.l.b16 %v46
  %v651 = vunpack.c.h.b16 %v46
  %v652 = vunpack.c.l.b16 %v47
  %v653 = vunpack.c.h.b16 %v47
  %v654 = vunpack.c.l.b16 %v48
  %v655 = vunpack.c.h.b16 %v48
  %v656 = vunpack.c.l.b16 %v49
  %v657 = vunpack.c.h.b16 %v49
  %v658 = vunpack.c.l.b16 %v50
  %v659 = vunpack.c.h.b16 %v50
  %v660 = vunpack.c.l.b16 %v51
  %v661 = vunpack.c.h.b16 %v51
  %v662 = vunpack.c.l.b16 %v52
  %v663 = vunpack.c.h.b16 %v52
  %v664 = vunpack.c.l.b16 %v53
  %v665 = vunpack.c.h.b16 %v53
  %v666 = vunpack.c.l.b16 %v54
  %v667 = vunpack.c.h.b16 %v54
  %v668 = vunpack.c.l.b16 %v55
  %v669 = vunpack.c.h.b16 %v55
  %v670 = vunpack.c.l.b16 %v56
  %v671 = vunpack.c.h.b16 %v56
  %v672 = vunpack.c.l.b16 %v57
  %v673 = vunpack.c.h.b16 %v57
  %v674 = vunpack.c.l.b16 %v58
  %v675 = vunpack.c.h.b16 %v58
  %v676 = vunpack.c.l.b16 %v59
  %v677 = vunpack.c.h.b16 %v59
  %v678 = vunpack.c.l.b16 %v60
  %v679 = vunpack.c.h.b16 %v60
  %v680 = vunpack.c.l.b16 %v61
  %v681 = vunpack.c.h.b16 %v61
  %v682 = vunpack.c.l.b16 %v62
  %v683 = vunpack.c.h.b16 %v62
  %v684 = vunpack.c.l.b16 %v63
  %v685 = vunpack.c.h.b16 %v63
  %v686 = vunpack.c.l.b16 %v64
  %v687 = vunpack.c.h.b16 %v64
  %v688 = vunpack.c.l.b16 %v65
  %v689 = vunpack.c.h.b16 %v65
  %v690 = vunpack.c.l.b16 %v66
  %v691 = vunpack.c.h.b16 %v66
  %v692 = vunpack.c.l.b16 %v67
  %v693 = vunpack.c.h.b16 %v67
  %v694 = vunpack.c.l.b16 %v68
  %v695 = vunpack.c.h.b16 %v68
  %v696 = vunpack.c.l.b16 %v69
  %v697 = vunpack.c.h.b16 %v69
  %v698 = vunpack.c.l.b16 %v70
  %v699 = vunpack.c.h.b16 %v70
  %v700 = vunpack.c.l.b16 %v71
  %v701 = vunpack.c.h.b16 %v71
  %v702 = vunpack.c.l.b16 %v72
  %v703 = vunpack.c.h.b16 %v72
  %v704 = vunpack.c.l.b16 %v73
  %v705 = vunpack.c.h.b16 %v73
  %v706 = vunpack.c.l.b16 %v74
  %v707 = vunpack.c.h.b16 %v74
  %v708 = vunpack.c.l.b16 %v75
  %v709 = vunpack.c.h.b16 %v75
  %v710 = vunpack.c.l.b16 %v76
  %v711 = vunpack.c.h.b16 %v76
  %v712 = vunpack.c.l.b16 %v77
  %v713 = vunpack.c.h.b16 %v77
  %v714 = vunpack.c.l.b16 %v78
  %v715 = vunpack.c.h.b16 %v78
  %v716 = vunpack.c.l.b16 %v79
  %v717 = vunpack.c.h.b16 %v79
  %v718 = vunpack.c.l.b16 %v80
  %v719 = vunpack.c.h.b16 %v80
  %v720 = vunpack.c.l.b16 %v81
  %v721 = vunpack.c.h.b16 %v81
  %v722 = vunpack.c.l.b16 %v82
  %v723 = vunpack.c.h.b16 %v82
  %v724 = vunpack.c.l.b16 %v83
  %v725 = vunpack.c.h.b16 %v83
  %v726 = vunpack.c.l.b16 %v84
  %v727 = vunpack.c.h.b16 %v84
  %v728 = vunpack.c.l.b16 %v85
  %v729 = vunpack.c.h.b16 %v85
  %v730 = vunpack.c.l.b16 %v86
  %v731 = vunpack.c.h.b16 %v86
  %v732 = vunpack.c.l.b16 %v87
  %v733 = vunpack.c.h.b16 %v87
  %v734 = vunpack.c.l.b16 %v88
  %v735 = vunpack.c.h.b16 %v88
  %v736 = vunpack.c.l.b16 %v89
  %v737 = vunpack.c.h.b16 %v89
  %v738 = vunpack.c.l.b16 %v90
  %v739 = vunpack.c.h.b16 %v90
  %v740 = vunpack.c.l.b16 %v91
  %v741 = vunpack.c.h.b16 %v91
  %v742 = vunpack.c.l.b16 %v92
  %v743 = vunpack.c.h.b16 %v92
  %v744 = vunpack.c.l.b16 %v93
  %v745 = vunpack.c.h.b16 %v93
  %v746 = vunpack.c.l.b16 %v94
  %v747 = vunpack.c.h.b16 %v94
  %v748 = vunpack.c.l.b16 %v95
  %v749 = vunpack.c.h.b16 %v95
  %v750 = vunpack.c.l.b16 %v96
  %v751 = vunpack.c.h.b16 %v96
  %v752 = vunpack.c.l.b16 %v97
  %v753 = vunpack.c.h.b16 %v97
  %v754 = vunpack.c.l.b16 %v98
  %v755 = vunpack.c.h.b16 %v98
  %v756 = vunpack.c.l.b16 %v99
  %v757 = vunpack.c.h.b16 %v99
  %v758 = vunpack.c.l.b16 %v100
  %v759 = vunpack.c.h.b16 %v100
  %v760 = vunpack.c.l.b16 %v101
  %v761 = vunpack.c.h.b16 %v101
  %v762 = vunpack.c.l.b16 %v102
  %v763 = vunpack.c.h.b16 %v102
  %v764 = vunpack.c.l.b16 %v103
  %v765 = vunpack.c.h.b16 %v103
  %v766 = vunpack.c.l.b16 %v104
  %v767 = vunpack.c.h.b16 %v104
  %v768 = vunpack.c.l.b16 %v105
  %v769 = vunpack.c.h.b16 %v105
  %v770 = vunpack.c.l.b16 %v106
  %v771 = vunpack.c.h.b16 %v106
  %v772 = vunpack.c.l.b16 %v107
  %v773 = vunpack.c.h.b16 %v107
  %v774 = vunpack.c.l.b16 %v108
  %v775 = vunpack.c.h.b16 %v108
  %v776 = vunpack.c.l.b16 %v109
  %v777 = vunpack.c.h.b16 %v109
  %v778 = vunpack.c.l.b16 %v110
  %v779 = vunpack.c.h.b16 %v110
  %v780 = vunpack.c.l.b16 %v111
  %v781 = vunpack.c.h.b16 %v111
  %v782 = vunpack.c.l.b16 %v112
  %v783 = vunpack.c.h.b16 %v112
  %v784 = vunpack.c.l.b16 %v113
  %v785 = vunpack.c.h.b16 %v113
  %v786 = vunpack.c.l.b16 %v114
  %v787 = vunpack.c.h.b16 %v114
  %v788 = vunpack.c.l.b16 %v115
  %v789 = vunpack.c.h.b16 %v115
  %v790 = vunpack.c.l.b16 %v116
  %v791 = vunpack.c.h.b16 %v116
  %v792 = vunpack.c.l.b16 %v117
  %v793 = vunpack.c.h.b16 %v117
  %v794 = vunpack.c.l.b16 %v118
  %v795 = vunpack.c.h.b16 %v118
  %v796 = vunpack.c.l.b16 %v119
  %v797 = vunpack.c.h.b16 %v119
  %v798 = vunpack.c.l.b16 %v120
  %v799 = vunpack.c.h.b16 %v120
  %v800 = vunpack.c.l.b16 %v121
  %v801 = vunpack.c.h.b16 %v121
  %v802 = vunpack.c.l.b16 %v122
  %v803 = vunpack.c.h.b16 %v122
  %v804 = vunpack.c.l.b16 %v123
  %v805 = vunpack.c.h.b16 %v123
  %v806 = vunpack.c.l.b16 %v124
  %v807 = vunpack.c.h.b16 %v124
  %v808 = vunpack.c.l.b16 %v125
  %v809 = vunpack.c.h.b16 %v125
  %v810 = vunpack.c.l.b16 %v126
  %v811 = vunpack.c.h.b16 %v126
  %v812 = vunpack.c.l.b16 %v127
  %v813 = vunpack.c.h.b16 %v127
  %v814 = vunpack.c.l.b16 %v128
  %v815 = vunpack.c.h.b16 %v128
  %v816 = vunpack.c.l.b16 %v129
  %v817 = vunpack.c.h.b16 %v129
  %v818 = vunpack.c.l.b16 %v130
  %v819 = vunpack.c.h.b16 %v130
  %v820 = vunpack.c.l.b16 %v131
  %v821 = vunpack.c.h.b16 %v131
  %v822 = vunpack.c.l.b16 %v132
  %v823 = vunpack.c.h.b16 %v132
  %v824 = vunpack.c.l.b16 %v133
  %v825 = vunpack.c.h.b16 %v133
  %v826 = vunpack.c.l.b16 %v134
  %v827 = vunpack.c.h.b16 %v134
  %v828 = vunpack.c.l.b16 %v135
  %v829 = vunpack.c.h.b16 %v135
  %v830 = vunpack.c.l.b16 %v136
  %v831 = vunpack.c.h.b16 %v136
  %v832 = vunpack.c.l.b16 %v137
  %v833 = vunpack.c.h.b16 %v137
  %v834 = vunpack.c.l.b16 %v138
  %v835 = vunpack.c.h.b16 %v138
  %v836 = vunpack.c.l.b16 %v139
  %v837 = vunpack.c.h.b16 %v139
  %v838 = vunpack.c.l.b16 %v140
  %v839 = vunpack.c.h.b16 %v140
  %v840 = vunpack.c.l.b16 %v141
  %v841 = vunpack.c.h.b16 %v141
  %v842 = vunpack.c.l.b16 %v142
  %v843 = vunpack.c.h.b16 %v142
  %v844 = vunpack.c.l.b16 %v143
  %v845 = vunpack.c.h.b16 %v143
  %v846 = vunpack.c.l.b16 %v144
  %v847 = vunpack.c.h.b16 %v144
  %v848 = vunpack.c.l.b16 %v145
  %v849 = vunpack.c.h.b16 %v145
  %v850 = vunpack.c.l.b16 %v146
  %v851 = vunpack.c.h.b16 %v146
  %v852 = vunpack.c.l.b16 %v147
  %v853 = vunpack.c.h.b16 %v147
  %v854 = vunpack.c.l.b16 %v148
  %v855 = vunpack.c.h.b16 %v148
  %v856 = vunpack.c.l.b16 %v149
  %v857 = vunpack.c.h.b16 %v149
  %v858 = vunpack.c.l.b16 %v150
  %v859 = vunpack.c.h.b16 %v150
  %v860 = vunpack.c.l.b16 %v151
  %v861 = vunpack.c.h.b16 %v151
  %v862 = vunpack.c.l.b16 %v152
  %v863 = vunpack.c.h.b16 %v152
  %v864 = vunpack.c.l.b16 %v153
  %v865 = vunpack.c.h.b16 %v153
  %v866 = vunpack.c.l.b16 %v154
  %v867 = vunpack.c.h.b16 %v154
  %v868 = vunpack.c.l.b16 %v155
  %v869 = vunpack.c.h.b16 %v155
  %v870 = vunpack.c.l.b16 %v156
  %v871 = vunpack.c.h.b16 %v156
  %v872 = vunpack.c.l.b16 %v157
  %v873 = vunpack.c.h.b16 %v157
  %v874 = vunpack.c.l.b16 %v158
  %v875 = vunpack.c.h.b16 %v158
  %v876 = vunpack.c.l.b16 %v159
  %v877 = vunpack.c.h.b16 %v159
  %v878 = vunpack.c.l.b16 %v160
  %v879 = vunpack.c.h.b16 %v160
  %v880 = vunpack.c.l.b16 %v161
  %v881 = vunpack.c.h.b16 %v161
  %v882 = vunpack.c.l.b16 %v162
  %v883 = vunpack.c.h.b16 %v162
  %v884 = vunpack.c.l.b16 %v163
  %v885 = vunpack.c.h.b16 %v163
  %v886 = vunpack.c.l.b16 %v164
  %v887 = vunpack.c.h.b16 %v164
  %v888 = vunpack.c.l.b16 %v165
  %v889 = vunpack.c.h.b16 %v165
  %v890 = vunpack.c.l.b16 %v166
  %v891 = vunpack.c.h.b16 %v166
  %v892 = vunpack.c.l.b16 %v167
  %v893 = vunpack.c.h.b16 %v167
  %v894 = vunpack.c.l.b16 %v168
  %v895 = vunpack.c.h.b16 %v168
  %v896 = vunpack.c.l.b16 %v169
  %v897 = vunpack.c.h.b16 %v169
  %v898 = vunpack.c.l.b16 %v170
  %v899 = vunpack.c.h.b16 %v170
  %v900 = vunpack.c.l.b16 %v171
  %v901 = vunpack.c.h.b16 %v171
  %v902 = vunpack.c.l.b16 %v172
  %v903 = vunpack.c.h.b16 %v172
  %v904 = vunpack.c.l.b16 %v173
  %v905 = vunpack.c.h.b16 %v173
  %v906 = vunpack.c.l.b16 %v174
  %v907 = vunpack.c.h.b16 %v174
  %v908 = vunpack.c.l.b16 %v175
  %v909 = vunpack.c.h.b16 %v175
  %v910 = vunpack.c.l.b16 %v176
  %v911 = vunpack.c.h.b16 %v176
  %v912 = vunpack.c.l.b16 %v177
  %v913 = vunpack.c.h.b16 %v177
  %v914 = vunpack.c.l.b16 %v178
  %v915 = vunpack.c.h.b16 %v178
  %v916 = vunpack.c.l.b16 %v179
  %v917 = vunpack.c.h.b16 %v179
  %v918 = vunpack.c.l.b16 %v180
  %v919 = vunpack.c.h.b16 %v180
  %v920 = vunpack.c.l.b16 %v181
  %v921 = vunpack.c.h.b16 %v181
  %v922 = vunpack.c.l.b16 %v182
  %v923 = vunpack.c.h.b16 %v182
  %v924 = vunpack.c.l.b16 %v183
  %v925 = vunpack.c.h.b16 %v183
  %v926 = vunpack.c.l.b16 %v184
  %v927 = vunpack.c.h.b16 %v184
  %v928 = vunpack.c.l.b16 %v185
  %v929 = vunpack.c.h.b16 %v185
  %v930 = vunpack.c.l.b16 %v186
  %v931 = vunpack.c.h.b16 %v186
  %v932 = vunpack.c.l.b16 %v187
  %v933 = vunpack.c.h.b16 %v187
  %v934 = vunpack.c.l.b16 %v188
  %v935 = vunpack.c.h.b16 %v188
  %v936 = vunpack.c.l.b16 %v189
  %v937 = vunpack.c.h.b16 %v189
  %v938 = vunpack.c.l.b16 %v190
  %v939 = vunpack.c.h.b16 %v190
  %v940 = vunpack.c.l.b16 %v191
  %v941 = vunpack.c.h.b16 %v191
  %v942 = vunpack.c.l.b16 %v192
  %v943 = vunpack.c.h.b16 %v192
  %v944 = vunpack.c.l.b16 %v193
  %v945 = vunpack.c.h.b16 %v193
  %v946 = vunpack.c.l.b16 %v194
  %v947 = vunpack.c.h.b16 %v194
  %v948 = vunpack.c.l.b16 %v195
  %v949 = vunpack.c.h.b16 %v195
  %v950 = vunpack.c.l.b16 %v196
  %v951 = vunpack.c.h.b16 %v196
  %v952 = vunpack.c.l.b16 %v197
  %v953 = vunpack.c.h.b16 %v197
  %v954 = vunpack.c.l.b16 %v198
  %v955 = vunpack.c.h.b16 %v198
  %v956 = vunpack.c.l.b16 %v199
  %v957 = vunpack.c.h.b16 %v199
  %v958 = vunpack.c.l.b16 %v200
  %v959 = vunpack.c.h.b16 %v200
  %v960 = vunpack.c.l.b16 %v201
  %v961 = vunpack.c.h.b16 %v201
  %v962 = vunpack.c.l.b16 %v202
  %v963 = vunpack.c.h.b16 %v202
  %v964 = vunpack.c.l.b16 %v203
  %v965 = vunpack.c.h.b16 %v203
  %v966 = vunpack.c.l.b16 %v204
  %v967 = vunpack.c.h.b16 %v204
  %v968 = vunpack.c.l.b16 %v205
  %v969 = vunpack.c.h.b16 %v205
  %v970 = vunpack.c.l.b16 %v206
  %v971 = vunpack.c.h.b16 %v206
  %v972 = vunpack.c.l.b16 %v207
  %v973 = vunpack.c.h.b16 %v207
  %v974 = vunpack.c.l.b16 %v208
  %v975 = vunpack.c.h.b16 %v208
  %v976 = vunpack.c.l.b16 %v209
  %v977 = vunpack.c.h.b16 %v209
  %v978 = vunpack.c.l.b16 %v210
  %v979 = vunpack.c.h.b16 %v210
  %v980 = vunpack.c.l.b16 %v211
  %v981 = vunpack.c.h.b16 %v211
  %v982 = vunpack.c.l.b16 %v212
  %v983 = vunpack.c.h.b16 %v212
  %v984 = vunpack.c.l.b16 %v213
  %v985 = vunpack.c.h.b16 %v213
  %v986 = vunpack.c.l.b16 %v214
  %v987 = vunpack.c.h.b16 %v214
  %v988 = vunpack.c.l.b16 %v215
  %v989 = vunpack.c.h.b16 %v215
  %v990 = vunpack.c.l.b16 %v216
  %v991 = vunpack.c.h.b16 %v216
  %v992 = vunpack.c.l.b16 %v217
  %v993 = vunpack.c.h.b16 %v217
  %v994 = vunpack.c.l.b16 %v218
  %v995 = vunpack.c.h.b16 %v218
  %v996 = vunpack.c.l.b16 %v219
  %v997 = vunpack.c.h.b16 %v219
  %v998 = vunpack.c.l.b16 %v220
  %v999 = vunpack.c.h.b16 %v220
  %v1000 = vunpack.c.l.b16 %v221
  %v1001 = vunpack.c.h.b16 %v221
  %v1002 = vunpack.c.l.b16 %v222
  %v1003 = vunpack.c.h.b16 %v222
  %v1004 = vunpack.c.l.b16 %v223
  %v1005 = vunpack.c.h.b16 %v223
  %v1006 = vunpack.c.l.b16 %v224
  %v1007 = vunpack.c.h.b16 %v224
  %v1008 = vunpack.c.l.b16 %v225
  %v1009 = vunpack.c.h.b16 %v225
  %v1010 = vunpack.c.l.b16 %v226
  %v1011 = vunpack.c.h.b16 %v226
  %v1012 = vunpack.c.l.b16 %v227
  %v1013 = vunpack.c.h.b16 %v227
  %v1014 = vunpack.c.l.b16 %v228
  %v1015 = vunpack.c.h.b16 %v228
  %v1016 = vunpack.c.l.b16 %v229
  %v1017 = vunpack.c.h.b16 %v229
  %v1018 = vunpack.c.l.b16 %v230
  %v1019 = vunpack.c.h.b16 %v230
  %v1020 = vunpack.c.l.b16 %v231
  %v1021 = vunpack.c.h.b16 %v231
  %v1022 = vunpack.c.l.b16 %v232
  %v1023 = vunpack.c.h.b16 %v232
  %v1024 = vunpack.c.l.b16 %v233
  %v1025 = vunpack.c.h.b16 %v233
  %v1026 = vunpack.c.l.b16 %v234
  %v1027 = vunpack.c.h.b16 %v234
  %v1028 = vunpack.c.l.b16 %v235
  %v1029 = vunpack.c.h.b16 %v235
  %v1030 = vunpack.c.l.b16 %v236
  %v1031 = vunpack.c.h.b16 %v236
  %v1032 = vunpack.c.l.b16 %v237
  %v1033 = vunpack.c.h.b16 %v237
  %v1034 = vunpack.c.l.b16 %v238
  %v1035 = vunpack.c.h.b16 %v238
  %v1036 = vunpack.c.l.b16 %v239
  %v1037 = vunpack.c.h.b16 %v239
  %v1038 = vunpack.c.l.b16 %v240
  %v1039 = vunpack.c.h.b16 %v240
  %v1040 = vunpack.c.l.b16 %v241
  %v1041 = vunpack.c.h.b16 %v241
  %v1042 = vunpack.c.l.b16 %v242
  %v1043 = vunpack.c.h.b16 %v242
  %v1044 = vunpack.c.l.b16 %v243
  %v1045 = vunpack.c.h.b16 %v243
  %v1046 = vunpack.c.l.b16 %v244
  %v1047 = vunpack.c.h.b16 %v244
  %v1048 = vunpack.c.l.b16 %v245
  %v1049 = vunpack.c.h.b16 %v245
  %v1050 = vunpack.c.l.b16 %v246
  %v1051 = vunpack.c.h.b16 %v246
  %v1052 = vunpack.c.l.b16 %v247
  %v1053 = vunpack.c.h.b16 %v247
  %v1054 = vunpack.c.l.b16 %v248
  %v1055 = vunpack.c.h.b16 %v248
  %v1056 = vunpack.c.l.b16 %v249
  %v1057 = vunpack.c.h.b16 %v249
  %v1058 = vunpack.c.l.b16 %v250
  %v1059 = vunpack.c.h.b16 %v250
  %v1060 = vunpack.c.l.b16 %v251
  %v1061 = vunpack.c.h.b16 %v251
  %v1062 = vunpack.c.l.b16 %v252
  %v1063 = vunpack.c.h.b16 %v252
  %v1064 = vunpack.c.l.b16 %v253
  %v1065 = vunpack.c.h.b16 %v253
  %v1066 = vunpack.c.l.b16 %v254
  %v1067 = vunpack.c.h.b16 %v254
  %v1068 = vunpack.c.l.b16 %v255
  %v1069 = vunpack.c.h.b16 %v255
  %v1070 = vunpack.c.l.b16 %v256
  %v1071 = vunpack.c.h.b16 %v256
  %v1072 = vunpack.c.l.b16 %v257
  %v1073 = vunpack.c.h.b16 %v257
  %v1074 = vunpack.c.l.b16 %v258
  %v1075 = vunpack.c.h.b16 %v258
  %v1076 = vunpack.c.l.b16 %v259
  %v1077 = vunpack.c.h.b16 %v259
  %v1078 = vunpack.c.l.b16 %v260
  %v1079 = vunpack.c.h.b16 %v260
  %v1080 = vunpack.c.l.b16 %v261
  %v1081 = vunpack.c.h.b16 %v261
  %v1082 = vunpack.c.l.b16 %v262
  %v1083 = vunpack.c.h.b16 %v262
  %v1084 = vunpack.c.l.b16 %v263
  %v1085 = vunpack.c.h.b16 %v263
  %v1086 = vunpack.c.l.b16 %v264
  %v1087 = vunpack.c.h.b16 %v264
  %v1088 = vunpack.c.l.b16 %v265
  %v1089 = vunpack.c.h.b16 %v265
  %v1090 = vunpack.c.l.b16 %v266
  %v1091 = vunpack.c.h.b16 %v266
  %v1092 = vunpack.c.l.b16 %v267
  %v1093 = vunpack.c.h.b16 %v267
  %v1094 = vunpack.c.l.b16 %v268
  %v1095 = vunpack.c.h.b16 %v268
  %v1096 = vunpack.c.l.b16 %v269
  %v1097 = vunpack.c.h.b16 %v269
  %v1098 = vunpack.c.l.b16 %v270
  %v1099 = vunpack.c.h.b16 %v270
  %v1100 = vunpack.c.l.b16 %v271
  %v1101 = vunpack.c.h.b16 %v271
  %v1102 = vunpack.c.l.b16 %v272
  %v1103 = vunpack.c.h.b16 %v272
  %v1104 = vunpack.c.l.b16 %v273
  %v1105 = vunpack.c.h.b16 %v273
  %v1106 = vunpack.c.l.b16 %v274
  %v1107 = vunpack.c.h.b16 %v274
  %v1108 = vunpack.c.l.b16 %v275
  %v1109 = vunpack.c.h.b16 %v275
  %v1110 = vunpack.c.l.b16 %v276
  %v1111 = vunpack.c.h.b16 %v276
  %v1112 = vunpack.c.l.b16 %v277
  %v1113 = vunpack.c.h.b16 %v277
  %v1114 = vpack.c.b16 %v604, %v602
  %v1115 = vpack.c.b16 %v605, %v603
  %v1116 = vpack.c.b16 %v608, %v606
  %v1117 = vpack.c.b16 %v609, %v607
  %v1118 = vpack.c.b16 %v612, %v610
  %v1119 = vpack.c.b16 %v613, %v611
  %v1120 = vpack.c.b16 %v616, %v614
  %v1121 = vpack.c.b16 %v617, %v615
  %v1122 = vpack.c.b16 %v620, %v618
  %v1123 = vpack.c.b16 %v621, %v619
  %v1124 = vpack.c.b16 %v624, %v622
  %v1125 = vpack.c.b16 %v625, %v623
  %v1126 = vpack.c.b16 %v628, %v626
  %v1127 = vpack.c.b16 %v629, %v627
  %v1128 = vpack.c.b16 %v632, %v630
  %v1129 = vpack.c.b16 %v633, %v631
  %v1130 = vpack.c.b16 %v636, %v634
  %v1131 = vpack.c.b16 %v637, %v635
  %v1132 = vpack.c.b16 %v640, %v638
  %v1133 = vpack.c.b16 %v641, %v639
  %v1134 = vpack.c.b16 %v644, %v642
  %v1135 = vpack.c.b16 %v645, %v643
  %v1136 = vpack.c.b16 %v648, %v646
  %v1137 = vpack.c.b16 %v649, %v647
  %v1138 = vpack.c.b16 %v652, %v650
  %v1139 = vpack.c.b16 %v653, %v651
  %v1140 = vpack.c.b16 %v656, %v654
  %v1141 = vpack.c.b16 %v657, %v655
  %v1142 = vpack.c.b16 %v660, %v658
  %v1143 = vpack.c.b16 %v661, %v659
  %v1144 = vpack.c.b16 %v664, %v662
  %v1145 = vpack.c.b16 %v665, %v663
  %v1146 = vpack.c.b16 %v668, %v666
  %v1147 = vpack.c.b16 %v669, %v667
  %v1148 = vpack.c.b16 %v672, %v670
  %v1149 = vpack.c.b16 %v673, %v671
  %v1150 = vpack.c.b16 %v676, %v674
  %v1151 = vpack.c.b16 %v677, %v675
  %v1152 = vpack.c.b16 %v680, %v678
  %v1153 = vpack.c.b16 %v681, %v679
  %v1154 = vpack.c.b16 %v684, %v682
  %v1155 = vpack.c.b16 %v685, %v683
  %v1156 = vpack.c.b16 %v688, %v686
  %v1157 = vpack.c.b16 %v689, %v687
  %v1158 = vpack.c.b16 %v692, %v690
  %v1159 = vpack.c.b16 %v693, %v691
  %v1160 = vpack.c.b16 %v696, %v694
  %v1161 = vpack.c.b16 %v697, %v695
  %v1162 = vpack.c.b16 %v700, %v698
  %v1163 = vpack.c.b16 %v701, %v699
  %v1164 = vpack.c.b16 %v704, %v702
  %v1165 = vpack.c.b16 %v705, %v703
  %v1166 = vpack.c.b16 %v708, %v706
  %v1167 = vpack.c.b16 %v709, %v707
  %v1168 = vpack.c.b16 %v712, %v710
  %v1169 = vpack.c.b16 %v713, %v711
  %v1170 = vpack.c.b16 %v716, %v714
  %v1171 = vpack.c.b16 %v717, %v715
  %v1172 = vpack.c.b16 %v720, %v718
  %v1173 = vpack.c.b16 %v721, %v719
  %v1174 = vpack.c.b16 %v724, %v722
  %v1175 = vpack.c.b16 %v725, %v723
  %v1176 = vpack.c.b16 %v728, %v726
  %v1177 = vpack.c.b16 %v729, %v727
  %v1178 = vpack.c.b16 %v732, %v730
  %v1179 = vpack.c.b16 %v733, %v731
  %v1180 = vpack.c.b16 %v736, %v734
  %v1181 = vpack.c.b16 %v737, %v735
  %v1182 = vpack.c.b16 %v740, %v738
  %v1183 = vpack.c.b16 %v741, %v739
  %v1184 = vpack.c.b16 %v744, %v742
  %v1185 = vpack.c.b16 %v745, %v743
  %v1186 = vpack.c.b16 %v748, %v746
  %v1187 = vpack.c.b16 %v749, %v747
  %v1188 = vpack.c.b16 %v752, %v750
  %v1189 = vpack.c.b16 %v753, %v751
  %v1190 = vpack.c.b16 %v756, %v754
  %v1191 = vpack.c.b16 %v757, %v755
  %v1192 = vpack.c.b16 %v760, %v758
  %v1193 = vpack.c.b16 %v761, %v759
  %v1194 = vpack.c.b16 %v764, %v762
  %v1195 = vpack.c.b16 %v765, %v763
  %v1196 = vpack.c.b16 %v768, %v766
  %v1197 = vpack.c.b16 %v769, %v767
  %v1198 = vpack.c.b16 %v772, %v770
  %v1199 = vpack.c.b16 %v773, %v771
  %v1200 = vpack.c.b16 %v776, %v774
  %v1201 = vpack.c.b16 %v777, %v775
  %v1202 = vpack.c.b16 %v780, %v778
  %v1203 = vpack.c.b16 %v781, %v779
  %v1204 = vpack.c.b16 %v784, %v782
  %v1205 = vpack.c.b16 %v785, %v783
  %v1206 = vpack.c.b16 %v788, %v786
  %v1207 = vpack.c.b16 %v789, %v787
  %v1208 = vpack.c.b16 %v792, %v790
  %v1209 = vpack.c.b16 %v793, %v791
  %v1210 = vpack.c.b16 %v796, %v794
  %v1211 = vpack.c.b16 %v797, %v795
  %v1212 = vpack.c.b16 %v800, %v798
  %v1213 = vpack.c.b16 %v801, %v799
  %v1214 = vpack.c.b16 %v804, %v802
  %v1215 = vpack.c.b16 %v805, %v803
  %v1216 = vpack.c.b16 %v808, %v806
  %v1217 = vpack.c.b16 %v809, %v807
  %v1218 = vpack.c.b16 %v812, %v810
  %v1219 = vpack.c.b16 %v813, %v811
  %v1220 = vpack.c.b16 %v816, %v814
  %v1221 = vpack.c.b16 %v817, %v815
  %v1222 = vpack.c.b16 %v820, %v818
  %v1223 = vpack.c.b16 %v821, %v819
  %v1224 = vpack.c.b16 %v824, %v822
  %v1225 = vpack.c.b16 %v825, %v823
  %v1226 = vpack.c.b16 %v828, %v826
  %v1227 = vpack.c.b16 %v829, %v827
  %v1228 = vpack.c.b16 %v832, %v830
  %v1229 = vpack.c.b16 %v833, %v831
  %v1230 = vpack.c.b16 %v836, %v834
  %v1231 = vpack.c.b16 %v837, %v835
  %v1232 = vpack.c.b16 %v840, %v838
  %v1233 = vpack.c.b16 %v841, %v839
  %v1234 = vpack.c.b16 %v844, %v842
  %v1235 = vpack.c.b16 %v845, %v843
  %v1236 = vpack.c.b16 %v848, %v846
  %v1237 = vpack.c.b16 %v849, %v847
  %v1238 = vpack.c.b16 %v852, %v850
  %v1239 = vpack.c.b16 %v853, %v851
  %v1240 = vpack.c.b16 %v856, %v854
  %v1241 = vpack.c.b16 %v857, %v855
  %v1242 = vpack.c.b16 %v860, %v858
  %v1243 = vpack.c.b16 %v861, %v859
  %v1244 = vpack.c.b16 %v864, %v862
  %v1245 = vpack.c.b16 %v865, %v863
  %v1246 = vpack.c.b16 %v868, %v866
  %v1247 = vpack.c.b16 %v869, %v867
  %v1248 = vpack.c.b16 %v872, %v870
  %v1249 = vpack.c.b16 %v873, %v871
  %v1250 = vpack.c.b16 %v876, %v874
  %v1251 = vpack.c.b16 %v877, %v875
  %v1252 = vpack.c.b16 %v880, %v878
  %v1253 = vpack.c.b16 %v881, %v879
  %v1254 = vpack.c.b16 %v884, %v882
  %v1255 = vpack.c.b16 %v885, %v883
  %v1256 = vpack.c.b16 %v888, %v886
  %v1257 = vpack.c.b16 %v889, %v887
  %v1258 = vpack.c.b16 %v892, %v890
  %v1259 = vpack.c.b16 %v893, %v891
  %v1260 = vpack.c.b16 %v896, %v894
  %v1261 = vpack.c.b16 %v897, %v895
  %v1262 = vpack.c.b16 %v900, %v898
  %v1263 = vpack.c.b16 %v901, %v899
  %v1264 = vpack.c.b16 %v904, %v902
  %v1265 = vpack.c.b16 %v905, %v903
  %v1266 = vpack.c.b16 %v908, %v906
  %v1267 = vpack.c.b16 %v909, %v907
  %v1268 = vpack.c.b16 %v912, %v910
  %v1269 = vpack.c.b16 %v913, %v911
  %v1270 = vpack.c.b16 %v916, %v914
  %v1271 = vpack.c.b16 %v917, %v915
  %v1272 = vpack.c.b16 %v920, %v918
  %v1273 = vpack.c.b16 %v921, %v919
  %v1274 = vpack.c.b16 %v924, %v922
  %v1275 = vpack.c.b16 %v925, %v923
  %v1276 = vpack.c.b16 %v928, %v926
  %v1277 = vpack.c.b16 %v929, %v927
  %v1278 = vpack.c.b16 %v932, %v930
  %v1279 = vpack.c.b16 %v933, %v931
  %v1280 = vpack.c.b16 %v936, %v934
  %v1281 = vpack.c.b16 %v937, %v935
  %v1282 = vpack.c.b16 %v940, %v938
  %v1283 = vpack.c.b16 %v941, %v939
  %v1284 = vpack.c.b16 %v944, %v942
  %v1285 = vpack.c.b16 %v945, %v943
  %v1286 = vpack.c.b16 %v948, %v946
  %v1287 = vpack.c.b16 %v949, %v947
  %v1288 = vpack.c.b16 %v952, %v950
  %v1289 = vpack.c.b16 %v953, %v951
  %v1290 = vpack.c.b16 %v956, %v954
  %v1291 = vpack.c.b16 %v957, %v955
  %v1292 = vpack.c.b16 %v960, %v958
  %v1293 = vpack.c.b16 %v961, %v959
  %v1294 = vpack.c.b16 %v964, %v962
  %v1295 = vpack.c.b16 %v965, %v963
  %v1296 = vpack.c.b16 %v968, %v966
  %v1297 = vpack.c.b16 %v969, %v967
  %v1298 = vpack.c.b16 %v972, %v970
  %v1299 = vpack.c.b16 %v973, %v971
  %v1300 = vpack.c.b16 %v976, %v974
  %v1301 = vpack.c.b16 %v977, %v975
  %v1302 = vpack.c.b16 %v980, %v978
  %v1303 = vpack.c.b16 %v981, %v979
  %v1304 = vpack.c.b16 %v984, %v982
  %v1305 = vpack.c.b16 %v985, %v983
  %v1306 = vpack.c.b16 %v988, %v986
  %v1307 = vpack.c.b16 %v989, %v987
  %v1308 = vpack.c.b16 %v992, %v990
  %v1309 = vpack.c.b16 %v993, %v991
  %v1310 = vpack.c.b16 %v996, %v994
  %v1311 = vpack.c.b16 %v997, %v995
  %v1312 = vpack.c.b16 %v1000, %v998
  %v1313 = vpack.c.b16 %v1001, %v999
  %v1314 = vpack.c.b16 %v1004, %v1002
  %v1315 = vpack.c.b16 %v1005, %v1003
  %v1316 = vpack.c.b16 %v1008, %v1006
  %v1317 = vpack.c.b16 %v1009, %v1007
  %v1318 = vpack.c.b16 %v1012, %v1010
  %v1319 = vpack.c.b16 %v1013, %v1011
  %v1320 = vpack.c.b16 %v1016, %v1014
  %v1321 = vpack.c.b16 %v1017, %v1015
  %v1322 = vpack.c.b16 %v1020, %v1018
  %v1323 = vpack.c.b16 %v1021, %v1019
  %v1324 = vpack.c.b16 %v1024, %v1022
  %v1325 = vpack.c.b16 %v1025, %v1023
  %v1326 = vpack.c.b16 %v1028, %v1026
  %v1327 = vpack.c.b16 %v1029, %v1027
  %v1328 = vpack.c.b16 %v1032, %v1030
  %v1329 = vpack.c.b16 %v1033, %v1031
  %v1330 = vpack.c.b16 %v1036, %v1034
  %v1331 = vpack.c.b16 %v1037, %v1035
  %v1332 = vpack.c.b16 %v1040, %v1038
  %v1333 = vpack.c.b16 %v1041, %v1039
  %v1334 = vpack.c.b16 %v1044, %v1042
  %v1335 = vpack.c.b16 %v1045, %v1043
  %v1336 = vpack.c.b16 %v1048, %v1046
  %v1337 = vpack.c.b16 %v1049, %v1047
  %v1338 = vpack.c.b16 %v1052, %v1050
  %v1339 = vpack.c.b16 %v1053, %v1051
  %v1340 = vpack.c.b16 %v1056, %v1054
  %v1341 = vpack.c.b16 %v1057, %v1055
  %v1342 = vpack.c.b16 %v1060, %v1058
  %v1343 = vpack.c.b16 %v1061, %v1059
  %v1344 = vpack.c.b16 %v1064, %v1062
  %v1345 = vpack.c.b16 %v1065, %v1063
  %v1346 = vpack.c.b16 %v1068, %v1066
  %v1347 = vpack.c.b16 %v1069, %v1067
  %v1348 = vpack.c.b16 %v1072, %v1070
  %v1349 = vpack.c.b16 %v1073, %v1071
  %v1350 = vpack.c.b16 %v1076, %v1074
  %v1351 = vpack.c.b16 %v1077, %v1075
  %v1352 = vpack.c.b16 %v1080, %v1078
  %v1353 = vpack.c.b16 %v1081, %v1079
  %v1354 = vpack.c.b16 %v1084, %v1082
  %v1355 = vpack.c.b16 %v1085, %v1083
  %v1356 = vpack.c.b16 %v1088, %v1086
  %v1357 = vpack.c.b16 %v1089, %v1087
  %v1358 = vpack.c.b16 %v1092, %v1090
  %v1359 = vpack.c.b16 %v1093, %v1091
  %v1360 = vpack.c.b16 %v1096, %v1094
  %v1361 = vpack.c.b16 %v1097, %v1095
  %v1362 = vpack.c.b16 %v1100, %v1098
  %v1363 = vpack.c.b16 %v1101, %v1099
  %v1364 = vpack.c.b16 %v1104, %v1102
  %v1365 = vpack.c.b16 %v1105, %v1103
  %v1366 = vpack.c.b16 %v1108, %v1106
  %v1367 = vpack.c.b16 %v1109, %v1107
  %v1368 = vpack.c.b16 %v1112, %v1110
  %v1369 = vpack.c.b16 %v1113, %v1111
  %1626 = vmatprep.subr.bf16.mxu0 %v1129
  %1627 = vmatpush1.bf16.msra.mxu0 %v1128
  %1628 = vmatprep.subr.bf16.mxu0 %v1127
  %1629 = vmatpush1.bf16.msra.mxu0 %v1126
  %1630 = vmatprep.subr.bf16.mxu0 %v1125
  %1631 = vmatpush1.bf16.msra.mxu0 %v1124
  %1632 = vmatprep.subr.bf16.mxu0 %v1123
  %1633 = vmatpush1.bf16.msra.mxu0 %v1122
  %1634 = vmatprep.subr.bf16.mxu0 %v1121
  %1635 = vmatpush1.bf16.msra.mxu0 %v1120
  %1636 = vmatprep.subr.bf16.mxu0 %v1119
  %1637 = vmatpush1.bf16.msra.mxu0 %v1118
  %1638 = vmatprep.subr.bf16.mxu0 %v1117
  %1639 = vmatpush1.bf16.msra.mxu0 %v1116
  %1640 = vmatprep.subr.bf16.mxu0 %v1115
  %1641 = vmatpush1.bf16.msra.mxu0 %v1114
  %1642 = vmatprep.subr.bf16.mxu0 %v1145
  %1643 = vmatpush2.bf16.msra.mxu0 %v1144
  %1644 = vmatprep.subr.bf16.mxu0 %v1143
  %1645 = vmatpush2.bf16.msra.mxu0 %v1142
  %1646 = vmatprep.subr.bf16.mxu0 %v1141
  %1647 = vmatpush2.bf16.msra.mxu0 %v1140
  %1648 = vmatprep.subr.bf16.mxu0 %v1139
  %1649 = vmatpush2.bf16.msra.mxu0 %v1138
  %1650 = vmatprep.subr.bf16.mxu0 %v1137
  %1651 = vmatpush2.bf16.msra.mxu0 %v1136
  %1652 = vmatprep.subr.bf16.mxu0 %v1135
  %1653 = vmatpush2.bf16.msra.mxu0 %v1134
  %1654 = vmatprep.subr.bf16.mxu0 %v1133
  %1655 = vmatpush2.bf16.msra.mxu0 %v1132
  %1656 = vmatprep.subr.bf16.mxu0 %v1131
  %1657 = vmatpush2.bf16.msra.mxu0 %v1130
  %1658 = vmatprep.mubr.bf16.mxu0 %v315
  %1659 = vmatmul.mubr.bf16.gmra.mxu0 %v314
  %v1660 = vpop.f32.mrf.mxu0
  %v1661 = vadd.f32 %v283, %v1660
  %v1662 = vpop.f32.mrf.mxu0
  %v1663 = vadd.f32 %v287, %v1662
  %v1664 = vpop.f32.mrf.mxu0
  %v1665 = vpop.f32.mrf.mxu0
  %1666 = vdwg.mxu0
  %1667 = vmatprep.subr.bf16.mxu0 %v1161
  %1668 = vmatpush1.bf16.msra.mxu0 %v1160
  %1669 = vmatprep.subr.bf16.mxu0 %v1159
  %1670 = vmatpush1.bf16.msra.mxu0 %v1158
  %1671 = vmatprep.subr.bf16.mxu0 %v1157
  %1672 = vmatpush1.bf16.msra.mxu0 %v1156
  %1673 = vmatprep.subr.bf16.mxu0 %v1155
  %1674 = vmatpush1.bf16.msra.mxu0 %v1154
  %1675 = vmatprep.subr.bf16.mxu0 %v1153
  %1676 = vmatpush1.bf16.msra.mxu0 %v1152
  %1677 = vmatprep.subr.bf16.mxu0 %v1151
  %1678 = vmatpush1.bf16.msra.mxu0 %v1150
  %1679 = vmatprep.subr.bf16.mxu0 %v1149
  %1680 = vmatpush1.bf16.msra.mxu0 %v1148
  %1681 = vmatprep.subr.bf16.mxu0 %v1147
  %1682 = vmatpush1.bf16.msra.mxu0 %v1146
  %1683 = vmatprep.subr.bf16.mxu0 %v1177
  %1684 = vmatpush2.bf16.msra.mxu0 %v1176
  %1685 = vmatprep.subr.bf16.mxu0 %v1175
  %1686 = vmatpush2.bf16.msra.mxu0 %v1174
  %1687 = vmatprep.subr.bf16.mxu0 %v1173
  %1688 = vmatpush2.bf16.msra.mxu0 %v1172
  %1689 = vmatprep.subr.bf16.mxu0 %v1171
  %1690 = vmatpush2.bf16.msra.mxu0 %v1170
  %1691 = vmatprep.subr.bf16.mxu0 %v1169
  %1692 = vmatpush2.bf16.msra.mxu0 %v1168
  %1693 = vmatprep.subr.bf16.mxu0 %v1167
  %1694 = vmatpush2.bf16.msra.mxu0 %v1166
  %1695 = vmatprep.subr.bf16.mxu0 %v1165
  %1696 = vmatpush2.bf16.msra.mxu0 %v1164
  %1697 = vmatprep.subr.bf16.mxu0 %v1163
  %1698 = vmatpush2.bf16.msra.mxu0 %v1162
  %1699 = vmatprep.mubr.bf16.mxu0 %v317
  %1700 = vmatmul.mubr.bf16.gmra.mxu0 %v316
  %v1701 = vpop.f32.mrf.mxu0
  %v1702 = vadd.f32 %v1661, %v1701
  %v1703 = vpop.f32.mrf.mxu0
  %v1704 = vadd.f32 %v1663, %v1703
  %v1705 = vpop.f32.mrf.mxu0
  %v1706 = vpop.f32.mrf.mxu0
  %1707 = vdwg.mxu0
  %1708 = vmatprep.subr.bf16.mxu0 %v1193
  %1709 = vmatpush1.bf16.msra.mxu0 %v1192
  %1710 = vmatprep.subr.bf16.mxu0 %v1191
  %1711 = vmatpush1.bf16.msra.mxu0 %v1190
  %1712 = vmatprep.subr.bf16.mxu0 %v1189
  %1713 = vmatpush1.bf16.msra.mxu0 %v1188
  %1714 = vmatprep.subr.bf16.mxu0 %v1187
  %1715 = vmatpush1.bf16.msra.mxu0 %v1186
  %1716 = vmatprep.subr.bf16.mxu0 %v1185
  %1717 = vmatpush1.bf16.msra.mxu0 %v1184
  %1718 = vmatprep.subr.bf16.mxu0 %v1183
  %1719 = vmatpush1.bf16.msra.mxu0 %v1182
  %1720 = vmatprep.subr.bf16.mxu0 %v1181
  %1721 = vmatpush1.bf16.msra.mxu0 %v1180
  %1722 = vmatprep.subr.bf16.mxu0 %v1179
  %1723 = vmatpush1.bf16.msra.mxu0 %v1178
  %1724 = vmatprep.subr.bf16.mxu0 %v1209
  %1725 = vmatpush2.bf16.msra.mxu0 %v1208
  %1726 = vmatprep.subr.bf16.mxu0 %v1207
  %1727 = vmatpush2.bf16.msra.mxu0 %v1206
  %1728 = vmatprep.subr.bf16.mxu0 %v1205
  %1729 = vmatpush2.bf16.msra.mxu0 %v1204
  %1730 = vmatprep.subr.bf16.mxu0 %v1203
  %1731 = vmatpush2.bf16.msra.mxu0 %v1202
  %1732 = vmatprep.subr.bf16.mxu0 %v1201
  %1733 = vmatpush2.bf16.msra.mxu0 %v1200
  %1734 = vmatprep.subr.bf16.mxu0 %v1199
  %1735 = vmatpush2.bf16.msra.mxu0 %v1198
  %1736 = vmatprep.subr.bf16.mxu0 %v1197
  %1737 = vmatpush2.bf16.msra.mxu0 %v1196
  %1738 = vmatprep.subr.bf16.mxu0 %v1195
  %1739 = vmatpush2.bf16.msra.mxu0 %v1194
  %1740 = vmatprep.mubr.bf16.mxu0 %v319
  %1741 = vmatmul.mubr.bf16.gmra.mxu0 %v318
  %v1742 = vpop.f32.mrf.mxu0
  %v1743 = vadd.f32 %v1702, %v1742
  %v1744 = vpop.f32.mrf.mxu0
  %v1745 = vadd.f32 %v1704, %v1744
  %v1746 = vpop.f32.mrf.mxu0
  %v1747 = vpop.f32.mrf.mxu0
  %1748 = vdwg.mxu0
  %1749 = vmatprep.subr.bf16.mxu0 %v1225
  %1750 = vmatpush1.bf16.msra.mxu0 %v1224
  %1751 = vmatprep.subr.bf16.mxu0 %v1223
  %1752 = vmatpush1.bf16.msra.mxu0 %v1222
  %1753 = vmatprep.subr.bf16.mxu0 %v1221
  %1754 = vmatpush1.bf16.msra.mxu0 %v1220
  %1755 = vmatprep.subr.bf16.mxu0 %v1219
  %1756 = vmatpush1.bf16.msra.mxu0 %v1218
  %1757 = vmatprep.subr.bf16.mxu0 %v1217
  %1758 = vmatpush1.bf16.msra.mxu0 %v1216
  %1759 = vmatprep.subr.bf16.mxu0 %v1215
  %1760 = vmatpush1.bf16.msra.mxu0 %v1214
  %1761 = vmatprep.subr.bf16.mxu0 %v1213
  %1762 = vmatpush1.bf16.msra.mxu0 %v1212
  %1763 = vmatprep.subr.bf16.mxu0 %v1211
  %1764 = vmatpush1.bf16.msra.mxu0 %v1210
  %1765 = vmatprep.subr.bf16.mxu0 %v1241
  %1766 = vmatpush2.bf16.msra.mxu0 %v1240
  %1767 = vmatprep.subr.bf16.mxu0 %v1239
  %1768 = vmatpush2.bf16.msra.mxu0 %v1238
  %1769 = vmatprep.subr.bf16.mxu0 %v1237
  %1770 = vmatpush2.bf16.msra.mxu0 %v1236
  %1771 = vmatprep.subr.bf16.mxu0 %v1235
  %1772 = vmatpush2.bf16.msra.mxu0 %v1234
  %1773 = vmatprep.subr.bf16.mxu0 %v1233
  %1774 = vmatpush2.bf16.msra.mxu0 %v1232
  %1775 = vmatprep.subr.bf16.mxu0 %v1231
  %1776 = vmatpush2.bf16.msra.mxu0 %v1230
  %1777 = vmatprep.subr.bf16.mxu0 %v1229
  %1778 = vmatpush2.bf16.msra.mxu0 %v1228
  %1779 = vmatprep.subr.bf16.mxu0 %v1227
  %1780 = vmatpush2.bf16.msra.mxu0 %v1226
  %1781 = vmatprep.mubr.bf16.mxu0 %v321
  %1782 = vmatmul.mubr.bf16.gmra.mxu0 %v320
  %v1783 = vpop.f32.mrf.mxu0
  %v1784 = vadd.f32 %v1743, %v1783
  %v1785 = vpop.f32.mrf.mxu0
  %v1786 = vadd.f32 %v1745, %v1785
  %v1787 = vpop.f32.mrf.mxu0
  %v1788 = vpop.f32.mrf.mxu0
  %1789 = vdwg.mxu0
  %1790 = vmatprep.subr.bf16.mxu0 %v1257
  %1791 = vmatpush1.bf16.msra.mxu0 %v1256
  %1792 = vmatprep.subr.bf16.mxu0 %v1255
  %1793 = vmatpush1.bf16.msra.mxu0 %v1254
  %1794 = vmatprep.subr.bf16.mxu0 %v1253
  %1795 = vmatpush1.bf16.msra.mxu0 %v1252
  %1796 = vmatprep.subr.bf16.mxu0 %v1251
  %1797 = vmatpush1.bf16.msra.mxu0 %v1250
  %1798 = vmatprep.subr.bf16.mxu0 %v1249
  %1799 = vmatpush1.bf16.msra.mxu0 %v1248
  %1800 = vmatprep.subr.bf16.mxu0 %v1247
  %1801 = vmatpush1.bf16.msra.mxu0 %v1246
  %1802 = vmatprep.subr.bf16.mxu0 %v1245
  %1803 = vmatpush1.bf16.msra.mxu0 %v1244
  %1804 = vmatprep.subr.bf16.mxu0 %v1243
  %1805 = vmatpush1.bf16.msra.mxu0 %v1242
  %1806 = vmatprep.subr.bf16.mxu0 %v1273
  %1807 = vmatpush2.bf16.msra.mxu0 %v1272
  %1808 = vmatprep.subr.bf16.mxu0 %v1271
  %1809 = vmatpush2.bf16.msra.mxu0 %v1270
  %1810 = vmatprep.subr.bf16.mxu0 %v1269
  %1811 = vmatpush2.bf16.msra.mxu0 %v1268
  %1812 = vmatprep.subr.bf16.mxu0 %v1267
  %1813 = vmatpush2.bf16.msra.mxu0 %v1266
  %1814 = vmatprep.subr.bf16.mxu0 %v1265
  %1815 = vmatpush2.bf16.msra.mxu0 %v1264
  %1816 = vmatprep.subr.bf16.mxu0 %v1263
  %1817 = vmatpush2.bf16.msra.mxu0 %v1262
  %1818 = vmatprep.subr.bf16.mxu0 %v1261
  %1819 = vmatpush2.bf16.msra.mxu0 %v1260
  %1820 = vmatprep.subr.bf16.mxu0 %v1259
  %1821 = vmatpush2.bf16.msra.mxu0 %v1258
  %1822 = vmatprep.mubr.bf16.mxu0 %v323
  %1823 = vmatmul.mubr.bf16.gmra.mxu0 %v322
  %v1824 = vpop.f32.mrf.mxu0
  %v1825 = vadd.f32 %v1784, %v1824
  %v1826 = vpop.f32.mrf.mxu0
  %v1827 = vadd.f32 %v1786, %v1826
  %v1828 = vpop.f32.mrf.mxu0
  %v1829 = vpop.f32.mrf.mxu0
  %1830 = vdwg.mxu0
  %1831 = vmatprep.subr.bf16.mxu0 %v1289
  %1832 = vmatpush1.bf16.msra.mxu0 %v1288
  %1833 = vmatprep.subr.bf16.mxu0 %v1287
  %1834 = vmatpush1.bf16.msra.mxu0 %v1286
  %1835 = vmatprep.subr.bf16.mxu0 %v1285
  %1836 = vmatpush1.bf16.msra.mxu0 %v1284
  %1837 = vmatprep.subr.bf16.mxu0 %v1283
  %1838 = vmatpush1.bf16.msra.mxu0 %v1282
  %1839 = vmatprep.subr.bf16.mxu0 %v1281
  %1840 = vmatpush1.bf16.msra.mxu0 %v1280
  %1841 = vmatprep.subr.bf16.mxu0 %v1279
  %1842 = vmatpush1.bf16.msra.mxu0 %v1278
  %1843 = vmatprep.subr.bf16.mxu0 %v1277
  %1844 = vmatpush1.bf16.msra.mxu0 %v1276
  %1845 = vmatprep.subr.bf16.mxu0 %v1275
  %1846 = vmatpush1.bf16.msra.mxu0 %v1274
  %1847 = vmatprep.subr.bf16.mxu0 %v1305
  %1848 = vmatpush2.bf16.msra.mxu0 %v1304
  %1849 = vmatprep.subr.bf16.mxu0 %v1303
  %1850 = vmatpush2.bf16.msra.mxu0 %v1302
  %1851 = vmatprep.subr.bf16.mxu0 %v1301
  %1852 = vmatpush2.bf16.msra.mxu0 %v1300
  %1853 = vmatprep.subr.bf16.mxu0 %v1299
  %1854 = vmatpush2.bf16.msra.mxu0 %v1298
  %1855 = vmatprep.subr.bf16.mxu0 %v1297
  %1856 = vmatpush2.bf16.msra.mxu0 %v1296
  %1857 = vmatprep.subr.bf16.mxu0 %v1295
  %1858 = vmatpush2.bf16.msra.mxu0 %v1294
  %1859 = vmatprep.subr.bf16.mxu0 %v1293
  %1860 = vmatpush2.bf16.msra.mxu0 %v1292
  %1861 = vmatprep.subr.bf16.mxu0 %v1291
  %1862 = vmatpush2.bf16.msra.mxu0 %v1290
  %1863 = vmatprep.mubr.bf16.mxu0 %v325
  %1864 = vmatmul.mubr.bf16.gmra.mxu0 %v324
  %v1865 = vpop.f32.mrf.mxu0
  %v1866 = vadd.f32 %v1825, %v1865
  %v1867 = vpop.f32.mrf.mxu0
  %v1868 = vadd.f32 %v1827, %v1867
  %v1869 = vpop.f32.mrf.mxu0
  %v1870 = vpop.f32.mrf.mxu0
  %1871 = vdwg.mxu0
  %1872 = vmatprep.subr.bf16.mxu0 %v1321
  %1873 = vmatpush1.bf16.msra.mxu0 %v1320
  %1874 = vmatprep.subr.bf16.mxu0 %v1319
  %1875 = vmatpush1.bf16.msra.mxu0 %v1318
  %1876 = vmatprep.subr.bf16.mxu0 %v1317
  %1877 = vmatpush1.bf16.msra.mxu0 %v1316
  %1878 = vmatprep.subr.bf16.mxu0 %v1315
  %1879 = vmatpush1.bf16.msra.mxu0 %v1314
  %1880 = vmatprep.subr.bf16.mxu0 %v1313
  %1881 = vmatpush1.bf16.msra.mxu0 %v1312
  %1882 = vmatprep.subr.bf16.mxu0 %v1311
  %1883 = vmatpush1.bf16.msra.mxu0 %v1310
  %1884 = vmatprep.subr.bf16.mxu0 %v1309
  %1885 = vmatpush1.bf16.msra.mxu0 %v1308
  %1886 = vmatprep.subr.bf16.mxu0 %v1307
  %1887 = vmatpush1.bf16.msra.mxu0 %v1306
  %1888 = vmatprep.subr.bf16.mxu0 %v1337
  %1889 = vmatpush2.bf16.msra.mxu0 %v1336
  %1890 = vmatprep.subr.bf16.mxu0 %v1335
  %1891 = vmatpush2.bf16.msra.mxu0 %v1334
  %1892 = vmatprep.subr.bf16.mxu0 %v1333
  %1893 = vmatpush2.bf16.msra.mxu0 %v1332
  %1894 = vmatprep.subr.bf16.mxu0 %v1331
  %1895 = vmatpush2.bf16.msra.mxu0 %v1330
  %1896 = vmatprep.subr.bf16.mxu0 %v1329
  %1897 = vmatpush2.bf16.msra.mxu0 %v1328
  %1898 = vmatprep.subr.bf16.mxu0 %v1327
  %1899 = vmatpush2.bf16.msra.mxu0 %v1326
  %1900 = vmatprep.subr.bf16.mxu0 %v1325
  %1901 = vmatpush2.bf16.msra.mxu0 %v1324
  %1902 = vmatprep.subr.bf16.mxu0 %v1323
  %1903 = vmatpush2.bf16.msra.mxu0 %v1322
  %1904 = vmatprep.mubr.bf16.mxu0 %v327
  %1905 = vmatmul.mubr.bf16.gmra.mxu0 %v326
  %v1906 = vpop.f32.mrf.mxu0
  %v1907 = vadd.f32 %v1866, %v1906
  %v1908 = vpop.f32.mrf.mxu0
  %v1909 = vadd.f32 %v1868, %v1908
  %v1910 = vpop.f32.mrf.mxu0
  %v1911 = vpop.f32.mrf.mxu0
  %1912 = vdwg.mxu0
  %1913 = vmatprep.subr.bf16.mxu0 %v1353
  %1914 = vmatpush1.bf16.msra.mxu0 %v1352
  %1915 = vmatprep.subr.bf16.mxu0 %v1351
  %1916 = vmatpush1.bf16.msra.mxu0 %v1350
  %1917 = vmatprep.subr.bf16.mxu0 %v1349
  %1918 = vmatpush1.bf16.msra.mxu0 %v1348
  %1919 = vmatprep.subr.bf16.mxu0 %v1347
  %1920 = vmatpush1.bf16.msra.mxu0 %v1346
  %1921 = vmatprep.subr.bf16.mxu0 %v1345
  %1922 = vmatpush1.bf16.msra.mxu0 %v1344
  %1923 = vmatprep.subr.bf16.mxu0 %v1343
  %1924 = vmatpush1.bf16.msra.mxu0 %v1342
  %1925 = vmatprep.subr.bf16.mxu0 %v1341
  %1926 = vmatpush1.bf16.msra.mxu0 %v1340
  %1927 = vmatprep.subr.bf16.mxu0 %v1339
  %1928 = vmatpush1.bf16.msra.mxu0 %v1338
  %1929 = vmatprep.subr.bf16.mxu0 %v1369
  %1930 = vmatpush2.bf16.msra.mxu0 %v1368
  %1931 = vmatprep.subr.bf16.mxu0 %v1367
  %1932 = vmatpush2.bf16.msra.mxu0 %v1366
  %1933 = vmatprep.subr.bf16.mxu0 %v1365
  %1934 = vmatpush2.bf16.msra.mxu0 %v1364
  %1935 = vmatprep.subr.bf16.mxu0 %v1363
  %1936 = vmatpush2.bf16.msra.mxu0 %v1362
  %1937 = vmatprep.subr.bf16.mxu0 %v1361
  %1938 = vmatpush2.bf16.msra.mxu0 %v1360
  %1939 = vmatprep.subr.bf16.mxu0 %v1359
  %1940 = vmatpush2.bf16.msra.mxu0 %v1358
  %1941 = vmatprep.subr.bf16.mxu0 %v1357
  %1942 = vmatpush2.bf16.msra.mxu0 %v1356
  %1943 = vmatprep.subr.bf16.mxu0 %v1355
  %1944 = vmatpush2.bf16.msra.mxu0 %v1354
  %1945 = vmatprep.mubr.bf16.mxu0 %v329
  %1946 = vmatmul.mubr.bf16.gmra.mxu0 %v328
  %v1947 = vpop.f32.mrf.mxu0
  %v1948 = vadd.f32 %v1907, %v1947
  %v1949 = vpop.f32.mrf.mxu0
  %v1950 = vadd.f32 %v1909, %v1949
  %v1951 = vpop.f32.mrf.mxu0
  %v1952 = vpop.f32.mrf.mxu0
  %1953 = vdwg.mxu0
  %v1954 = vmax.f32 %v1948, 0.0
  %v1955 = vmax.f32 %v1950, 0.0
  %v1956 = vpack.c.bf16 %v1954, %v1954
  %v1957 = vpack.c.bf16 %v1955, %v1955
  %v1960 = vunpack.c.l.b16 %v1956
  %v1961 = vunpack.c.l.b16 %v1957
  %v1962 = vpack.c.b16 %v1961, %v1960
  %1964 = vst [vmem:[%s3] sm:$0xff] %v1962
  // Predicated region
  $region14: #{conv_encoder_forward.8} parent=0 // pred_check
    _
  $region15: #{conv_encoder_forward.8} parent=0 // pred_check_branch
    %1966 = sbr.rel (0) target = $region17
  $region16: #{conv_encoder_forward.8} parent=0 // pred_region
    _
  $region17: #{conv_encoder_forward.8} parent=0 // pred_fallthru
    _
  // Predicated region
  $region18: #{conv_encoder_forward.8} parent=0 // pred_check
    _
  $region19: #{conv_encoder_forward.8} parent=0 // pred_check_branch
    %1968 = sbr.rel (0) target = $region21
  $region20: #{conv_encoder_forward.8} parent=0 // pred_region
    _
  $region21: #{conv_encoder_forward.8} parent=0 // pred_fallthru
    _

// kernel: conv_encoder_forward.9
$region0: #{conv_encoder_forward.9}
  #allocation0 [shape = 'u32[]', space=smem, size = 0x4, offset = 0x4, fixed_abs, tag = 'smem constant byte address 0x4 - core index']
  #allocation1 [shape = 'u32[144,128]{1,0:T(1,128)}', space=vmem, size = 0x12000, scoped, tag = 'internal scratch']
  %s0 = inlined_call_operand.vmem [shape: bf16[2,1024], index: 0, kind: input, shape index: {}]
  %s1 = inlined_call_operand.vmem [shape: bf16[1024,32], index: 1, kind: input, shape index: {}]
  %s2 = inlined_call_operand.vmem [shape: f32[1,32], index: 2, kind: input, shape index: {}]
  %s3 = inlined_call_operand.hbm [shape: f32[2,32], index: 3, kind: output, shape index: {}]
  %s4 = sld [smem:[#allocation0]]
  $region22: #{conv_encoder_forward.9} parent=0
    _
  %s6 = ssub.s32 1, %s4
  %s7 = scalar_select 0, %s6, %s4
  $region1: #{conv_encoder_forward.9} parent=0
    #allocation2 [shape = 'u8[1024]{0}', space=vmem, size = 0x400, scoped, tag = 'output window, operand 0, single buffered']
    #allocation3 [shape = 's32[1]{0}', space=sflag, size = 0x4, scoped, tag = 'scoped memory for conv_encoder_forward.9']
    %8 = vsyncpa [#allocation3], 0
    // Predicated region
    $region2: #{conv_encoder_forward.9} parent=1 // pred_check
      _
    $region3: #{conv_encoder_forward.9} parent=1 // pred_check_branch
      %10 = sbr.rel (0) target = $region5
    $region4: #{conv_encoder_forward.9} parent=1 // pred_region
      _
    $region5: #{conv_encoder_forward.9} parent=1 // pred_fallthru
      _
    // Predicated region
    $region6: #{conv_encoder_forward.9} parent=1 // pred_check
      _
    $region7: #{conv_encoder_forward.9} parent=1 // pred_check_branch
      %12 = sbr.rel (0) target = $region9
    $region8: #{conv_encoder_forward.9} parent=1 // pred_region
      _
    $region9: #{conv_encoder_forward.9} parent=1 // pred_fallthru
      _
    // Predicated region
    $region10: #{conv_encoder_forward.9} parent=1 // pred_check
      _
    $region11: #{conv_encoder_forward.9} parent=1 // pred_check_branch
      %14 = sbr.rel (0) target = $region13
    $region12: #{conv_encoder_forward.9} parent=1 // pred_region
      _
    $region13: #{conv_encoder_forward.9} parent=1 // pred_fallthru
      _
    %v16 = vld [vmem:[%s0] sm:$0xff]
    %v17 = vld [vmem:[%s1] sm:$0xf]
    %v18 = vld [vmem:[%s1 + $0x4] sm:$0xf]
    %v19 = vld [vmem:[%s1 + $0x8] sm:$0xf]
    %v20 = vld [vmem:[%s1 + $0xc] sm:$0xf]
    %v21 = vld [vmem:[%s1 + $0x10] sm:$0xf]
    %v22 = vld [vmem:[%s1 + $0x14] sm:$0xf]
    %v23 = vld [vmem:[%s1 + $0x18] sm:$0xf]
    %v24 = vld [vmem:[%s1 + $0x1c] sm:$0xf]
    %v25 = vld [vmem:[%s1 + $0x20] sm:$0xf]
    %v26 = vld [vmem:[%s1 + $0x24] sm:$0xf]
    %v27 = vld [vmem:[%s1 + $0x28] sm:$0xf]
    %v28 = vld [vmem:[%s1 + $0x2c] sm:$0xf]
    %v29 = vld [vmem:[%s1 + $0x30] sm:$0xf]
    %v30 = vld [vmem:[%s1 + $0x34] sm:$0xf]
    %v31 = vld [vmem:[%s1 + $0x38] sm:$0xf]
    %v32 = vld [vmem:[%s1 + $0x3c] sm:$0xf]
    %v33 = vld [vmem:[%s1 + $0x40] sm:$0xf]
    %v34 = vld [vmem:[%s1 + $0x44] sm:$0xf]
    %v35 = vld [vmem:[%s1 + $0x48] sm:$0xf]
    %v36 = vld [vmem:[%s1 + $0x4c] sm:$0xf]
    %v37 = vld [vmem:[%s1 + $0x50] sm:$0xf]
    %v38 = vld [vmem:[%s1 + $0x54] sm:$0xf]
    %v39 = vld [vmem:[%s1 + $0x58] sm:$0xf]
    %v40 = vld [vmem:[%s1 + $0x5c] sm:$0xf]
    %v41 = vld [vmem:[%s1 + $0x60] sm:$0xf]
    %v42 = vld [vmem:[%s1 + $0x64] sm:$0xf]
    %v43 = vld [vmem:[%s1 + $0x68] sm:$0xf]
    %v44 = vld [vmem:[%s1 + $0x6c] sm:$0xf]
    %v45 = vld [vmem:[%s1 + $0x70] sm:$0xf]
    %v46 = vld [vmem:[%s1 + $0x74] sm:$0xf]
    %v47 = vld [vmem:[%s1 + $0x78] sm:$0xf]
    %v48 = vld [vmem:[%s1 + $0x7c] sm:$0xf]
    %v49 = vld [vmem:[%s1 + $0x80] sm:$0xf]
    %v50 = vld [vmem:[%s1 + $0x84] sm:$0xf]
    %v51 = vld [vmem:[%s1 + $0x88] sm:$0xf]
    %v52 = vld [vmem:[%s1 + $0x8c] sm:$0xf]
    %v53 = vld [vmem:[%s1 + $0x90] sm:$0xf]
    %v54 = vld [vmem:[%s1 + $0x94] sm:$0xf]
    %v55 = vld [vmem:[%s1 + $0x98] sm:$0xf]
    %v56 = vld [vmem:[%s1 + $0x9c] sm:$0xf]
    %v57 = vld [vmem:[%s1 + $0xa0] sm:$0xf]
    %v58 = vld [vmem:[%s1 + $0xa4] sm:$0xf]
    %v59 = vld [vmem:[%s1 + $0xa8] sm:$0xf]
    %v60 = vld [vmem:[%s1 + $0xac] sm:$0xf]
    %v61 = vld [vmem:[%s1 + $0xb0] sm:$0xf]
    %v62 = vld [vmem:[%s1 + $0xb4] sm:$0xf]
    %v63 = vld [vmem:[%s1 + $0xb8] sm:$0xf]
    %v64 = vld [vmem:[%s1 + $0xbc] sm:$0xf]
    %v65 = vld [vmem:[%s1 + $0xc0] sm:$0xf]
    %v66 = vld [vmem:[%s1 + $0xc4] sm:$0xf]
    %v67 = vld [vmem:[%s1 + $0xc8] sm:$0xf]
    %v68 = vld [vmem:[%s1 + $0xcc] sm:$0xf]
    %v69 = vld [vmem:[%s1 + $0xd0] sm:$0xf]
    %v70 = vld [vmem:[%s1 + $0xd4] sm:$0xf]
    %v71 = vld [vmem:[%s1 + $0xd8] sm:$0xf]
    %v72 = vld [vmem:[%s1 + $0xdc] sm:$0xf]
    %v73 = vld [vmem:[%s1 + $0xe0] sm:$0xf]
    %v74 = vld [vmem:[%s1 + $0xe4] sm:$0xf]
    %v75 = vld [vmem:[%s1 + $0xe8] sm:$0xf]
    %v76 = vld [vmem:[%s1 + $0xec] sm:$0xf]
    %v77 = vld [vmem:[%s1 + $0xf0] sm:$0xf]
    %v78 = vld [vmem:[%s1 + $0xf4] sm:$0xf]
    %v79 = vld [vmem:[%s1 + $0xf8] sm:$0xf]
    %v80 = vld [vmem:[%s1 + $0xfc] sm:$0xf]
    %v81 = vld [vmem:[%s1 + $0x100] sm:$0xf]
    %v82 = vld [vmem:[%s1 + $0x104] sm:$0xf]
    %v83 = vld [vmem:[%s1 + $0x108] sm:$0xf]
    %v84 = vld [vmem:[%s1 + $0x10c] sm:$0xf]
    %v85 = vld [vmem:[%s1 + $0x110] sm:$0xf]
    %v86 = vld [vmem:[%s1 + $0x114] sm:$0xf]
    %v87 = vld [vmem:[%s1 + $0x118] sm:$0xf]
    %v88 = vld [vmem:[%s1 + $0x11c] sm:$0xf]
    %v89 = vld [vmem:[%s1 + $0x120] sm:$0xf]
    %v90 = vld [vmem:[%s1 + $0x124] sm:$0xf]
    %v91 = vld [vmem:[%s1 + $0x128] sm:$0xf]
    %v92 = vld [vmem:[%s1 + $0x12c] sm:$0xf]
    %v93 = vld [vmem:[%s1 + $0x130] sm:$0xf]
    %v94 = vld [vmem:[%s1 + $0x134] sm:$0xf]
    %v95 = vld [vmem:[%s1 + $0x138] sm:$0xf]
    %v96 = vld [vmem:[%s1 + $0x13c] sm:$0xf]
    %v97 = vld [vmem:[%s1 + $0x140] sm:$0xf]
    %v98 = vld [vmem:[%s1 + $0x144] sm:$0xf]
    %v99 = vld [vmem:[%s1 + $0x148] sm:$0xf]
    %v100 = vld [vmem:[%s1 + $0x14c] sm:$0xf]
    %v101 = vld [vmem:[%s1 + $0x150] sm:$0xf]
    %v102 = vld [vmem:[%s1 + $0x154] sm:$0xf]
    %v103 = vld [vmem:[%s1 + $0x158] sm:$0xf]
    %v104 = vld [vmem:[%s1 + $0x15c] sm:$0xf]
    %v105 = vld [vmem:[%s1 + $0x160] sm:$0xf]
    %v106 = vld [vmem:[%s1 + $0x164] sm:$0xf]
    %v107 = vld [vmem:[%s1 + $0x168] sm:$0xf]
    %v108 = vld [vmem:[%s1 + $0x16c] sm:$0xf]
    %v109 = vld [vmem:[%s1 + $0x170] sm:$0xf]
    %v110 = vld [vmem:[%s1 + $0x174] sm:$0xf]
    %v111 = vld [vmem:[%s1 + $0x178] sm:$0xf]
    %v112 = vld [vmem:[%s1 + $0x17c] sm:$0xf]
    %v113 = vld [vmem:[%s1 + $0x180] sm:$0xf]
    %v114 = vld [vmem:[%s1 + $0x184] sm:$0xf]
    %v115 = vld [vmem:[%s1 + $0x188] sm:$0xf]
    %v116 = vld [vmem:[%s1 + $0x18c] sm:$0xf]
    %v117 = vld [vmem:[%s1 + $0x190] sm:$0xf]
    %v118 = vld [vmem:[%s1 + $0x194] sm:$0xf]
    %v119 = vld [vmem:[%s1 + $0x198] sm:$0xf]
    %v120 = vld [vmem:[%s1 + $0x19c] sm:$0xf]
    %v121 = vld [vmem:[%s1 + $0x1a0] sm:$0xf]
    %v122 = vld [vmem:[%s1 + $0x1a4] sm:$0xf]
    %v123 = vld [vmem:[%s1 + $0x1a8] sm:$0xf]
    %v124 = vld [vmem:[%s1 + $0x1ac] sm:$0xf]
    %v125 = vld [vmem:[%s1 + $0x1b0] sm:$0xf]
    %v126 = vld [vmem:[%s1 + $0x1b4] sm:$0xf]
    %v127 = vld [vmem:[%s1 + $0x1b8] sm:$0xf]
    %v128 = vld [vmem:[%s1 + $0x1bc] sm:$0xf]
    %v129 = vld [vmem:[%s1 + $0x1c0] sm:$0xf]
    %v130 = vld [vmem:[%s1 + $0x1c4] sm:$0xf]
    %v131 = vld [vmem:[%s1 + $0x1c8] sm:$0xf]
    %v132 = vld [vmem:[%s1 + $0x1cc] sm:$0xf]
    %v133 = vld [vmem:[%s1 + $0x1d0] sm:$0xf]
    %v134 = vld [vmem:[%s1 + $0x1d4] sm:$0xf]
    %v135 = vld [vmem:[%s1 + $0x1d8] sm:$0xf]
    %v136 = vld [vmem:[%s1 + $0x1dc] sm:$0xf]
    %v137 = vld [vmem:[%s1 + $0x1e0] sm:$0xf]
    %v138 = vld [vmem:[%s1 + $0x1e4] sm:$0xf]
    %v139 = vld [vmem:[%s1 + $0x1e8] sm:$0xf]
    %v140 = vld [vmem:[%s1 + $0x1ec] sm:$0xf]
    %v141 = vld [vmem:[%s1 + $0x1f0] sm:$0xf]
    %v142 = vld [vmem:[%s1 + $0x1f4] sm:$0xf]
    %v143 = vld [vmem:[%s1 + $0x1f8] sm:$0xf]
    %v144 = vld [vmem:[%s1 + $0x1fc] sm:$0xf]
    %v145 = vld [vmem:[%s2] sm:$0x1]
    %v147 = vlaneseq
    %v148 = vshrl.u32 %v147, 7
    %v149 = vsub.s32 0, %v148
    %v150 = vrot.slane %v145, %v149
    %v153 = vcombine.high %v16, %v16
    %v155 = vunpack.c.l.s4 1966171168
    %v156 = vunpack.c.0.s8 %v155
    %v157 = vlaneseq
    %v158 = vshrl.u32 %v157, 7
    %v159 = vsub.s32 %v156, %v158
    %v160 = vrot.slane %v16, %v159
    %v162 = vunpack.c.l.s4 1966171168
    %v163 = vunpack.c.0.s8 %v162
    %v164 = vlaneseq
    %v165 = vshrl.u32 %v164, 7
    %v166 = vsub.s32 %v163, %v165
    %v167 = vrot.slane %v153, %v166
    %v168 = vcombine.high %v160, %v160
    %v169 = vcombine.high %v167, %v167
    %v171 = vunpack.c.l.s4 1966171168
    %v172 = vunpack.c.0.s8 %v171
    %v173 = vlaneseq
    %v174 = vshrl.u32 %v173, 7
    %v175 = vsub.s32 %v172, %v174
    %v176 = vrot.slane %v160, %v175
    %v178 = vunpack.c.l.s4 1966171168
    %v179 = vunpack.c.0.s8 %v178
    %v180 = vlaneseq
    %v181 = vshrl.u32 %v180, 7
    %v182 = vsub.s32 %v179, %v181
    %v183 = vrot.slane %v167, %v182
    %v185 = vunpack.c.l.s4 1966171168
    %v186 = vunpack.c.0.s8 %v185
    %v187 = vlaneseq
    %v188 = vshrl.u32 %v187, 7
    %v189 = vsub.s32 %v186, %v188
    %v190 = vrot.slane %v168, %v189
    %v192 = vunpack.c.l.s4 1966171168
    %v193 = vunpack.c.0.s8 %v192
    %v194 = vlaneseq
    %v195 = vshrl.u32 %v194, 7
    %v196 = vsub.s32 %v193, %v195
    %v197 = vrot.slane %v169, %v196
    %v198 = vcombine.high %v176, %v176
    %v199 = vcombine.high %v183, %v183
    %v200 = vcombine.high %v190, %v190
    %v201 = vcombine.high %v197, %v197
    %v338 = vunpack.c.l.b16 %v17
    %v339 = vunpack.c.l.b16 %v18
    %v340 = vunpack.c.l.b16 %v19
    %v341 = vunpack.c.l.b16 %v20
    %v342 = vunpack.c.l.b16 %v21
    %v343 = vunpack.c.l.b16 %v22
    %v344 = vunpack.c.l.b16 %v23
    %v345 = vunpack.c.l.b16 %v24
    %v346 = vunpack.c.l.b16 %v25
    %v347 = vunpack.c.l.b16 %v26
    %v348 = vunpack.c.l.b16 %v27
    %v349 = vunpack.c.l.b16 %v28
    %v350 = vunpack.c.l.b16 %v29
    %v351 = vunpack.c.l.b16 %v30
    %v352 = vunpack.c.l.b16 %v31
    %v353 = vunpack.c.l.b16 %v32
    %v354 = vunpack.c.l.b16 %v33
    %v355 = vunpack.c.l.b16 %v34
    %v356 = vunpack.c.l.b16 %v35
    %v357 = vunpack.c.l.b16 %v36
    %v358 = vunpack.c.l.b16 %v37
    %v359 = vunpack.c.l.b16 %v38
    %v360 = vunpack.c.l.b16 %v39
    %v361 = vunpack.c.l.b16 %v40
    %v362 = vunpack.c.l.b16 %v41
    %v363 = vunpack.c.l.b16 %v42
    %v364 = vunpack.c.l.b16 %v43
    %v365 = vunpack.c.l.b16 %v44
    %v366 = vunpack.c.l.b16 %v45
    %v367 = vunpack.c.l.b16 %v46
    %v368 = vunpack.c.l.b16 %v47
    %v369 = vunpack.c.l.b16 %v48
    %v370 = vunpack.c.l.b16 %v49
    %v371 = vunpack.c.l.b16 %v50
    %v372 = vunpack.c.l.b16 %v51
    %v373 = vunpack.c.l.b16 %v52
    %v374 = vunpack.c.l.b16 %v53
    %v375 = vunpack.c.l.b16 %v54
    %v376 = vunpack.c.l.b16 %v55
    %v377 = vunpack.c.l.b16 %v56
    %v378 = vunpack.c.l.b16 %v57
    %v379 = vunpack.c.l.b16 %v58
    %v380 = vunpack.c.l.b16 %v59
    %v381 = vunpack.c.l.b16 %v60
    %v382 = vunpack.c.l.b16 %v61
    %v383 = vunpack.c.l.b16 %v62
    %v384 = vunpack.c.l.b16 %v63
    %v385 = vunpack.c.l.b16 %v64
    %v386 = vunpack.c.l.b16 %v65
    %v387 = vunpack.c.l.b16 %v66
    %v388 = vunpack.c.l.b16 %v67
    %v389 = vunpack.c.l.b16 %v68
    %v390 = vunpack.c.l.b16 %v69
    %v391 = vunpack.c.l.b16 %v70
    %v392 = vunpack.c.l.b16 %v71
    %v393 = vunpack.c.l.b16 %v72
    %v394 = vunpack.c.l.b16 %v73
    %v395 = vunpack.c.l.b16 %v74
    %v396 = vunpack.c.l.b16 %v75
    %v397 = vunpack.c.l.b16 %v76
    %v398 = vunpack.c.l.b16 %v77
    %v399 = vunpack.c.l.b16 %v78
    %v400 = vunpack.c.l.b16 %v79
    %v401 = vunpack.c.l.b16 %v80
    %v402 = vunpack.c.l.b16 %v81
    %v403 = vunpack.c.l.b16 %v82
    %v404 = vunpack.c.l.b16 %v83
    %v405 = vunpack.c.l.b16 %v84
    %v406 = vunpack.c.l.b16 %v85
    %v407 = vunpack.c.l.b16 %v86
    %v408 = vunpack.c.l.b16 %v87
    %v409 = vunpack.c.l.b16 %v88
    %v410 = vunpack.c.l.b16 %v89
    %v411 = vunpack.c.l.b16 %v90
    %v412 = vunpack.c.l.b16 %v91
    %v413 = vunpack.c.l.b16 %v92
    %v414 = vunpack.c.l.b16 %v93
    %v415 = vunpack.c.l.b16 %v94
    %v416 = vunpack.c.l.b16 %v95
    %v417 = vunpack.c.l.b16 %v96
    %v418 = vunpack.c.l.b16 %v97
    %v419 = vunpack.c.l.b16 %v98
    %v420 = vunpack.c.l.b16 %v99
    %v421 = vunpack.c.l.b16 %v100
    %v422 = vunpack.c.l.b16 %v101
    %v423 = vunpack.c.l.b16 %v102
    %v424 = vunpack.c.l.b16 %v103
    %v425 = vunpack.c.l.b16 %v104
    %v426 = vunpack.c.l.b16 %v105
    %v427 = vunpack.c.l.b16 %v106
    %v428 = vunpack.c.l.b16 %v107
    %v429 = vunpack.c.l.b16 %v108
    %v430 = vunpack.c.l.b16 %v109
    %v431 = vunpack.c.l.b16 %v110
    %v432 = vunpack.c.l.b16 %v111
    %v433 = vunpack.c.l.b16 %v112
    %v434 = vunpack.c.l.b16 %v113
    %v435 = vunpack.c.l.b16 %v114
    %v436 = vunpack.c.l.b16 %v115
    %v437 = vunpack.c.l.b16 %v116
    %v438 = vunpack.c.l.b16 %v117
    %v439 = vunpack.c.l.b16 %v118
    %v440 = vunpack.c.l.b16 %v119
    %v441 = vunpack.c.l.b16 %v120
    %v442 = vunpack.c.l.b16 %v121
    %v443 = vunpack.c.l.b16 %v122
    %v444 = vunpack.c.l.b16 %v123
    %v445 = vunpack.c.l.b16 %v124
    %v446 = vunpack.c.l.b16 %v125
    %v447 = vunpack.c.l.b16 %v126
    %v448 = vunpack.c.l.b16 %v127
    %v449 = vunpack.c.l.b16 %v128
    %v450 = vunpack.c.l.b16 %v129
    %v451 = vunpack.c.l.b16 %v130
    %v452 = vunpack.c.l.b16 %v131
    %v453 = vunpack.c.l.b16 %v132
    %v454 = vunpack.c.l.b16 %v133
    %v455 = vunpack.c.l.b16 %v134
    %v456 = vunpack.c.l.b16 %v135
    %v457 = vunpack.c.l.b16 %v136
    %v458 = vunpack.c.l.b16 %v137
    %v459 = vunpack.c.l.b16 %v138
    %v460 = vunpack.c.l.b16 %v139
    %v461 = vunpack.c.l.b16 %v140
    %v462 = vunpack.c.l.b16 %v141
    %v463 = vunpack.c.l.b16 %v142
    %v464 = vunpack.c.l.b16 %v143
    %v465 = vunpack.c.l.b16 %v144
    %v466 = vpack.c.b16 %v339, %v338
    %v467 = vpack.c.b16 %v341, %v340
    %v468 = vpack.c.b16 %v343, %v342
    %v469 = vpack.c.b16 %v345, %v344
    %v470 = vpack.c.b16 %v347, %v346
    %v471 = vpack.c.b16 %v349, %v348
    %v472 = vpack.c.b16 %v351, %v350
    %v473 = vpack.c.b16 %v353, %v352
    %v474 = vpack.c.b16 %v355, %v354
    %v475 = vpack.c.b16 %v357, %v356
    %v476 = vpack.c.b16 %v359, %v358
    %v477 = vpack.c.b16 %v361, %v360
    %v478 = vpack.c.b16 %v363, %v362
    %v479 = vpack.c.b16 %v365, %v364
    %v480 = vpack.c.b16 %v367, %v366
    %v481 = vpack.c.b16 %v369, %v368
    %v482 = vpack.c.b16 %v371, %v370
    %v483 = vpack.c.b16 %v373, %v372
    %v484 = vpack.c.b16 %v375, %v374
    %v485 = vpack.c.b16 %v377, %v376
    %v486 = vpack.c.b16 %v379, %v378
    %v487 = vpack.c.b16 %v381, %v380
    %v488 = vpack.c.b16 %v383, %v382
    %v489 = vpack.c.b16 %v385, %v384
    %v490 = vpack.c.b16 %v387, %v386
    %v491 = vpack.c.b16 %v389, %v388
    %v492 = vpack.c.b16 %v391, %v390
    %v493 = vpack.c.b16 %v393, %v392
    %v494 = vpack.c.b16 %v395, %v394
    %v495 = vpack.c.b16 %v397, %v396
    %v496 = vpack.c.b16 %v399, %v398
    %v497 = vpack.c.b16 %v401, %v400
    %v498 = vpack.c.b16 %v403, %v402
    %v499 = vpack.c.b16 %v405, %v404
    %v500 = vpack.c.b16 %v407, %v406
    %v501 = vpack.c.b16 %v409, %v408
    %v502 = vpack.c.b16 %v411, %v410
    %v503 = vpack.c.b16 %v413, %v412
    %v504 = vpack.c.b16 %v415, %v414
    %v505 = vpack.c.b16 %v417, %v416
    %v506 = vpack.c.b16 %v419, %v418
    %v507 = vpack.c.b16 %v421, %v420
    %v508 = vpack.c.b16 %v423, %v422
    %v509 = vpack.c.b16 %v425, %v424
    %v510 = vpack.c.b16 %v427, %v426
    %v511 = vpack.c.b16 %v429, %v428
    %v512 = vpack.c.b16 %v431, %v430
    %v513 = vpack.c.b16 %v433, %v432
    %v514 = vpack.c.b16 %v435, %v434
    %v515 = vpack.c.b16 %v437, %v436
    %v516 = vpack.c.b16 %v439, %v438
    %v517 = vpack.c.b16 %v441, %v440
    %v518 = vpack.c.b16 %v443, %v442
    %v519 = vpack.c.b16 %v445, %v444
    %v520 = vpack.c.b16 %v447, %v446
    %v521 = vpack.c.b16 %v449, %v448
    %v522 = vpack.c.b16 %v451, %v450
    %v523 = vpack.c.b16 %v453, %v452
    %v524 = vpack.c.b16 %v455, %v454
    %v525 = vpack.c.b16 %v457, %v456
    %v526 = vpack.c.b16 %v459, %v458
    %v527 = vpack.c.b16 %v461, %v460
    %v528 = vpack.c.b16 %v463, %v462
    %v529 = vpack.c.b16 %v465, %v464
    %594 = vmatprep.subr.bf16.mxu0 0
    %595 = vmatpush1.bf16.msra.mxu0 %v473
    %596 = vmatprep.subr.bf16.mxu0 0
    %597 = vmatpush1.bf16.msra.mxu0 %v472
    %598 = vmatprep.subr.bf16.mxu0 0
    %599 = vmatpush1.bf16.msra.mxu0 %v471
    %600 = vmatprep.subr.bf16.mxu0 0
    %601 = vmatpush1.bf16.msra.mxu0 %v470
    %602 = vmatprep.subr.bf16.mxu0 0
    %603 = vmatpush1.bf16.msra.mxu0 %v469
    %604 = vmatprep.subr.bf16.mxu0 0
    %605 = vmatpush1.bf16.msra.mxu0 %v468
    %606 = vmatprep.subr.bf16.mxu0 0
    %607 = vmatpush1.bf16.msra.mxu0 %v467
    %608 = vmatprep.subr.bf16.mxu0 0
    %609 = vmatpush1.bf16.msra.mxu0 %v466
    %610 = vmatprep.subr.bf16.mxu0 0
    %611 = vmatpush2.bf16.msra.mxu0 %v481
    %612 = vmatprep.subr.bf16.mxu0 0
    %613 = vmatpush2.bf16.msra.mxu0 %v480
    %614 = vmatprep.subr.bf16.mxu0 0
    %615 = vmatpush2.bf16.msra.mxu0 %v479
    %616 = vmatprep.subr.bf16.mxu0 0
    %617 = vmatpush2.bf16.msra.mxu0 %v478
    %618 = vmatprep.subr.bf16.mxu0 0
    %619 = vmatpush2.bf16.msra.mxu0 %v477
    %620 = vmatprep.subr.bf16.mxu0 0
    %621 = vmatpush2.bf16.msra.mxu0 %v476
    %622 = vmatprep.subr.bf16.mxu0 0
    %623 = vmatpush2.bf16.msra.mxu0 %v475
    %624 = vmatprep.subr.bf16.mxu0 0
    %625 = vmatpush2.bf16.msra.mxu0 %v474
    %626 = vmatprep.mubr.bf16.mxu0 %v190
    %627 = vmatmul.mubr.bf16.gmra.mxu0 %v176
    %v628 = vpop.f32.mrf.mxu0
    %v629 = vadd.f32 %v150, %v628
    %v630 = vpop.f32.mrf.mxu0
    %v631 = vpop.f32.mrf.mxu0
    %v632 = vpop.f32.mrf.mxu0
    %633 = vdwg.mxu0
    %634 = vmatprep.subr.bf16.mxu0 0
    %635 = vmatpush1.bf16.msra.mxu0 %v489
    %636 = vmatprep.subr.bf16.mxu0 0
    %637 = vmatpush1.bf16.msra.mxu0 %v488
    %638 = vmatprep.subr.bf16.mxu0 0
    %639 = vmatpush1.bf16.msra.mxu0 %v487
    %640 = vmatprep.subr.bf16.mxu0 0
    %641 = vmatpush1.bf16.msra.mxu0 %v486
    %642 = vmatprep.subr.bf16.mxu0 0
    %643 = vmatpush1.bf16.msra.mxu0 %v485
    %644 = vmatprep.subr.bf16.mxu0 0
    %645 = vmatpush1.bf16.msra.mxu0 %v484
    %646 = vmatprep.subr.bf16.mxu0 0
    %647 = vmatpush1.bf16.msra.mxu0 %v483
    %648 = vmatprep.subr.bf16.mxu0 0
    %649 = vmatpush1.bf16.msra.mxu0 %v482
    %650 = vmatprep.subr.bf16.mxu0 0
    %651 = vmatpush2.bf16.msra.mxu0 %v497
    %652 = vmatprep.subr.bf16.mxu0 0
    %653 = vmatpush2.bf16.msra.mxu0 %v496
    %654 = vmatprep.subr.bf16.mxu0 0
    %655 = vmatpush2.bf16.msra.mxu0 %v495
    %656 = vmatprep.subr.bf16.mxu0 0
    %657 = vmatpush2.bf16.msra.mxu0 %v494
    %658 = vmatprep.subr.bf16.mxu0 0
    %659 = vmatpush2.bf16.msra.mxu0 %v493
    %660 = vmatprep.subr.bf16.mxu0 0
    %661 = vmatpush2.bf16.msra.mxu0 %v492
    %662 = vmatprep.subr.bf16.mxu0 0
    %663 = vmatpush2.bf16.msra.mxu0 %v491
    %664 = vmatprep.subr.bf16.mxu0 0
    %665 = vmatpush2.bf16.msra.mxu0 %v490
    %666 = vmatprep.mubr.bf16.mxu0 %v200
    %667 = vmatmul.mubr.bf16.gmra.mxu0 %v198
    %v668 = vpop.f32.mrf.mxu0
    %v669 = vadd.f32 %v629, %v668
    %v670 = vpop.f32.mrf.mxu0
    %v671 = vpop.f32.mrf.mxu0
    %v672 = vpop.f32.mrf.mxu0
    %673 = vdwg.mxu0
    %674 = vmatprep.subr.bf16.mxu0 0
    %675 = vmatpush1.bf16.msra.mxu0 %v505
    %676 = vmatprep.subr.bf16.mxu0 0
    %677 = vmatpush1.bf16.msra.mxu0 %v504
    %678 = vmatprep.subr.bf16.mxu0 0
    %679 = vmatpush1.bf16.msra.mxu0 %v503
    %680 = vmatprep.subr.bf16.mxu0 0
    %681 = vmatpush1.bf16.msra.mxu0 %v502
    %682 = vmatprep.subr.bf16.mxu0 0
    %683 = vmatpush1.bf16.msra.mxu0 %v501
    %684 = vmatprep.subr.bf16.mxu0 0
    %685 = vmatpush1.bf16.msra.mxu0 %v500
    %686 = vmatprep.subr.bf16.mxu0 0
    %687 = vmatpush1.bf16.msra.mxu0 %v499
    %688 = vmatprep.subr.bf16.mxu0 0
    %689 = vmatpush1.bf16.msra.mxu0 %v498
    %690 = vmatprep.subr.bf16.mxu0 0
    %691 = vmatpush2.bf16.msra.mxu0 %v513
    %692 = vmatprep.subr.bf16.mxu0 0
    %693 = vmatpush2.bf16.msra.mxu0 %v512
    %694 = vmatprep.subr.bf16.mxu0 0
    %695 = vmatpush2.bf16.msra.mxu0 %v511
    %696 = vmatprep.subr.bf16.mxu0 0
    %697 = vmatpush2.bf16.msra.mxu0 %v510
    %698 = vmatprep.subr.bf16.mxu0 0
    %699 = vmatpush2.bf16.msra.mxu0 %v509
    %700 = vmatprep.subr.bf16.mxu0 0
    %701 = vmatpush2.bf16.msra.mxu0 %v508
    %702 = vmatprep.subr.bf16.mxu0 0
    %703 = vmatpush2.bf16.msra.mxu0 %v507
    %704 = vmatprep.subr.bf16.mxu0 0
    %705 = vmatpush2.bf16.msra.mxu0 %v506
    %706 = vmatprep.mubr.bf16.mxu0 %v197
    %707 = vmatmul.mubr.bf16.gmra.mxu0 %v183
    %v708 = vpop.f32.mrf.mxu0
    %v709 = vadd.f32 %v669, %v708
    %v710 = vpop.f32.mrf.mxu0
    %v711 = vpop.f32.mrf.mxu0
    %v712 = vpop.f32.mrf.mxu0
    %713 = vdwg.mxu0
    %714 = vmatprep.subr.bf16.mxu0 0
    %715 = vmatpush1.bf16.msra.mxu0 %v521
    %716 = vmatprep.subr.bf16.mxu0 0
    %717 = vmatpush1.bf16.msra.mxu0 %v520
    %718 = vmatprep.subr.bf16.mxu0 0
    %719 = vmatpush1.bf16.msra.mxu0 %v519
    %720 = vmatprep.subr.bf16.mxu0 0
    %721 = vmatpush1.bf16.msra.mxu0 %v518
    %722 = vmatprep.subr.bf16.mxu0 0
    %723 = vmatpush1.bf16.msra.mxu0 %v517
    %724 = vmatprep.subr.bf16.mxu0 0
    %725 = vmatpush1.bf16.msra.mxu0 %v516
    %726 = vmatprep.subr.bf16.mxu0 0
    %727 = vmatpush1.bf16.msra.mxu0 %v515
    %728 = vmatprep.subr.bf16.mxu0 0
    %729 = vmatpush1.bf16.msra.mxu0 %v514
    %730 = vmatprep.subr.bf16.mxu0 0
    %731 = vmatpush2.bf16.msra.mxu0 %v529
    %732 = vmatprep.subr.bf16.mxu0 0
    %733 = vmatpush2.bf16.msra.mxu0 %v528
    %734 = vmatprep.subr.bf16.mxu0 0
    %735 = vmatpush2.bf16.msra.mxu0 %v527
    %736 = vmatprep.subr.bf16.mxu0 0
    %737 = vmatpush2.bf16.msra.mxu0 %v526
    %738 = vmatprep.subr.bf16.mxu0 0
    %739 = vmatpush2.bf16.msra.mxu0 %v525
    %740 = vmatprep.subr.bf16.mxu0 0
    %741 = vmatpush2.bf16.msra.mxu0 %v524
    %742 = vmatprep.subr.bf16.mxu0 0
    %743 = vmatpush2.bf16.msra.mxu0 %v523
    %744 = vmatprep.subr.bf16.mxu0 0
    %745 = vmatpush2.bf16.msra.mxu0 %v522
    %746 = vmatprep.mubr.bf16.mxu0 %v201
    %747 = vmatmul.mubr.bf16.gmra.mxu0 %v199
    %v748 = vpop.f32.mrf.mxu0
    %v749 = vadd.f32 %v709, %v748
    %v750 = vpop.f32.mrf.mxu0
    %v751 = vpop.f32.mrf.mxu0
    %v752 = vpop.f32.mrf.mxu0
    %753 = vdwg.mxu0
    %vm754 = vcmask 254976
    %755 = vst.msk [vmem:[#allocation2] sm:$0x3] %vm754, %v749
    // Predicated region
    $region14: #{conv_encoder_forward.9} parent=1 // pred_check
      _
    $region15: #{conv_encoder_forward.9} parent=1 // pred_check_branch
      %757 = sbr.rel (0) target = $region17
    $region16: #{conv_encoder_forward.9} parent=1 // pred_region
      %s759 = ssub.s32 32, 32
      %760 = vsyncadd [#allocation3], %s759
      %s762 = sshll.u32 [#allocation2], 4
      %s763 = int_to_ptr.vmem [resolvable:$true] %s762
      %765 = dma.vmem_to_hbm [thread:$0]  %s763, 32, %s3, [#allocation3]
    $region17: #{conv_encoder_forward.9} parent=1 // pred_fallthru
      _
    // Predicated region
    $region18: #{conv_encoder_forward.9} parent=1 // pred_check
      _
    $region19: #{conv_encoder_forward.9} parent=1 // pred_check_branch
      %767 = sbr.rel (0) target = $region21
    $region20: #{conv_encoder_forward.9} parent=1 // pred_region
      %768 = dma.done [#allocation3], 32
    $region21: #{conv_encoder_forward.9} parent=1 // pred_fallthru
      _
    %769 = vsyncpa [#allocation3], 1

</llo_original>
